<compile_context>
chip_gen: v6e
topology: v6e:2x2x1
jax: 0.10.0
libtpu: 0.0.40
codegen_flags: <defaults>
</compile_context>

<pallas_src>
import functools
import math

import jax
import jax.numpy as jnp
from jax import lax
from jax.experimental import pallas as pl
from jax.experimental.pallas import tpu as pltpu

LANE = 128


# --------------------------------------------------------------------------
# helpers
# --------------------------------------------------------------------------
def _round_up(x, m):
    return (x + m - 1) // m * m


def _cpad(c):
    return max(LANE, _round_up(c, LANE))


def _vmem_capacity_bytes():
    try:
        return int(pltpu.get_tpu_info().vmem_capacity_bytes)
    except Exception:
        return 64 * 1024 * 1024        # conservative fallback (v7x per-TC size)


def _pick_bm(m, per_row_bytes, budget_bytes, min_steps=4):
    """Largest power-of-two row block inside the VMEM budget, keeping >= min_steps
    grid steps so both TensorCores get work and DMA overlaps compute."""
    bm = 8
    while bm * 2 <= 512 and (bm * 2) * per_row_bytes <= budget_bytes:
        bm *= 2
    while bm > 8 and (m + bm - 1) // bm < min_steps:
        bm //= 2
    return bm


def _bn_scale_shift(gamma, beta, mean, var, conv_bias=None, eps=1e-5):
    scale = gamma / jnp.sqrt(var + eps)
    bias = conv_bias if conv_bias is not None else 0.0
    shift = beta + (bias - mean) * scale
    return scale, shift


def _fold_pointwise(w, b, bn, cin_p, cout_p, col_off, eps, dtype):
    """torch (Co,Ci,1,1) 1x1 conv + BN  ->  (Ci_p, Cout_p) weight with the BN scale
    folded into the columns, placed at column offset `col_off`; plus the shift."""
    co, ci = w.shape[0], w.shape[1]
    scale, shift = _bn_scale_shift(*bn, conv_bias=b, eps=eps)
    wm = jnp.transpose(w[:, :, 0, 0]) * scale[None, :]                     # (Ci, Co)
    wm = jnp.pad(wm, ((0, cin_p - ci), (col_off, cout_p - col_off - co)))
    shift_full = jnp.zeros((cout_p,), jnp.float32).at[col_off:col_off + co].set(shift)
    return wm.astype(dtype), shift_full


def _fold_temporal(w, b, bn, c_p, cout_p, col_off, eps, dtype):
    """torch (Co,Ci,K,1) temporal conv + BN -> (K, Ci_p, Cout_p) with BN scale folded
    in and the Co columns placed at `col_off`; plus the shift."""
    co, ci = w.shape[0], w.shape[1]
    scale, shift = _bn_scale_shift(*bn, conv_bias=b, eps=eps)
    wm = jnp.transpose(w[:, :, :, 0], (2, 1, 0)) * scale[None, None, :]    # (K,Ci,Co)
    wm = jnp.pad(wm, ((0, 0), (0, c_p - ci), (col_off, cout_p - col_off - co)))
    shift_full = jnp.zeros((cout_p,), jnp.float32).at[col_off:col_off + co].set(shift)
    return wm.astype(dtype), shift_full


def _fold_pool_scatter(bn, c_br, c_p, cout_p, col_off, eps, dtype):
    """BN-after-maxpool as a (Ci_p, Cout_p) placement matmul: diag = BN scale."""
    scale, shift = _bn_scale_shift(*bn, eps=eps)
    m = jnp.zeros((c_p, cout_p), jnp.float32)
    m = m.at[jnp.arange(c_br), col_off + jnp.arange(c_br)].set(scale)
    shift_full = jnp.zeros((cout_p,), jnp.float32).at[col_off:col_off + c_br].set(shift)
    return m.astype(dtype), shift_full


# --------------------------------------------------------------------------
# fused kernel: all branches + residual, one x read, one lane-dense store
# --------------------------------------------------------------------------
def _fused_mstcn_kernel(x_ref, w1_ref, t1_ref, w2_ref, wpool_ref, wpw_ref,
                        shift_ref, *rest, ks, dilations, stride, halo,
                        has_residual):
    if has_residual:
        wres_ref, o_ref, h_ref = rest
    else:
        o_ref, h_ref = rest
        wres_ref = None

    bm, t_in, _ = x_ref.shape
    t_out, cout_p = o_ref.shape[1], o_ref.shape[2]
    c_p = h_ref.shape[2]
    nb_tcn = len(dilations)
    dn = (((2,), (0,)), ((), ()))

    x_full = x_ref[...]
    if stride == 1:
        xs = x_full
    else:
        xs = x_ref[:, pl.ds(0, t_out, stride=stride), :]

    # strided 1x1 branch starts the accumulator value (no zero-init pass); the
    # residual (identity matrix or folded 1x1-conv+BN) and the pre-summed post-stage
    # BN shifts are added here too.
    out = lax.dot_general(xs, wpw_ref[...], dn, preferred_element_type=jnp.float32)
    if has_residual:
        out += lax.dot_general(xs, wres_ref[...], dn,
                               preferred_element_type=jnp.float32)
    out += shift_ref[...].reshape(1, 1, cout_p)

    # zero the temporal halo once; branches only overwrite the middle rows.
    zeros = jnp.zeros((bm, halo, c_p), h_ref.dtype)
    h_ref[:, 0:halo, :] = zeros
    h_ref[:, halo + t_in:halo + 2 * halo + t_in, :] = zeros

    def pointwise_relu(idx):
        h = lax.dot_general(x_full, w1_ref[idx], dn,
                            preferred_element_type=jnp.float32)
        h = jnp.maximum(h + t1_ref[idx].reshape(1, 1, c_p), 0.0)
        h_ref[:, halo:halo + t_in, :] = h.astype(h_ref.dtype)

    def tap(off):
        if stride == 1:
            return h_ref[:, off:off + t_out, :]
        return h_ref[:, pl.ds(off, t_out, stride=stride), :]

    # dilated temporal-conv branches: K taps, each a lane-padded-contraction MXU
    # matmul whose weights are already placed at the branch's output columns.
    for b, d in enumerate(dilations):
        pointwise_relu(b)
        pad = ((ks - 1) * d) // 2
        br = lax.dot_general(tap(halo - pad), w2_ref[b * ks], dn,
                             preferred_element_type=jnp.float32)
        for k in range(1, ks):
            br += lax.dot_general(tap(halo - pad + k * d), w2_ref[b * ks + k], dn,
                                  preferred_element_type=jnp.float32)
        out += br

    # maxpool(3,1) branch (zero halo == -inf halo because h >= 0 after ReLU);
    # BN scale + channel placement are folded into one scatter matmul.
    pointwise_relu(nb_tcn)
    pooled = jnp.maximum(jnp.maximum(tap(halo - 1), tap(halo)), tap(halo + 1))
    out += lax.dot_general(pooled, wpool_ref[...], dn,
                           preferred_element_type=jnp.float32)

    o_ref[...] = out.astype(o_ref.dtype)


# --------------------------------------------------------------------------
# module forward
# --------------------------------------------------------------------------
def multiscale_tcn_forward(x, params, *, stride=1, eps=1e-5,
                           compute_dtype=jnp.float32):
    """x: (N, C_in, T, V) NCHW -> (N, C_out, T_out, V).  Eval-mode BN."""
    N, C_in, T, V = x.shape
    branches = params["branches"]
    nb_tcn = len(branches)
    c_br = branches[0]["conv1_w"].shape[0]
    C_out = c_br * (nb_tcn + 2)
    ks = branches[0]["ks"]
    dilations = tuple(b["dilation"] for b in branches)
    # TODO(synk): per-branch kernel_size lists are not supported (module default is a single int).
    assert all(b["ks"] == ks for b in branches)
    assert all(((ks - 1) * d) % 2 == 0 for d in dilations), \
        "(K-1)*dilation must be even for exact SAME temporal padding"
    t_out = (T - 1) // stride + 1
    out_dtype = x.dtype

    cin_p = _cpad(C_in)
    c_p = _cpad(c_br)
    cout_p = _cpad(C_out)

    pads = [((ks - 1) * d) // 2 for d in dilations]
    halo = max(max(pads), 1)                      # >=1 for the maxpool(3) branch

    # ---- fold every conv + eval-mode BN into lane-padded matmul operands ---------
    shift_sum = jnp.zeros((cout_p,), jnp.float32)
    w1_list, t1_list, w2_list = [], [], []
    for b_idx, b in enumerate(branches):
        w1, t1 = _fold_pointwise(b["conv1_w"], b["conv1_b"], b["bn1"],
                                 cin_p, c_p, 0, eps, compute_dtype)
        w2, sh2 = _fold_temporal(b["conv2_w"], b["conv2_b"], b["bn2"],
                                 c_p, cout_p, b_idx * c_br, eps, compute_dtype)
        w1_list.append(w1)
        t1_list.append(t1)
        w2_list.append(w2)
        shift_sum = shift_sum + sh2

    p = params["pool"]
    w1, t1 = _fold_pointwise(p["conv1_w"], p["conv1_b"], p["bn1"],
                             cin_p, c_p, 0, eps, compute_dtype)
    w1_list.append(w1)
    t1_list.append(t1)
    wpool, shp = _fold_pool_scatter(p["bn2"], c_br, c_p, cout_p,
                                    nb_tcn * c_br, eps, compute_dtype)
    shift_sum = shift_sum + shp

    q = params["pw"]
    wpw, shq = _fold_pointwise(q["conv1_w"], q["conv1_b"], q["bn1"],
                               cin_p, cout_p, (nb_tcn + 1) * c_br, eps, compute_dtype)
    shift_sum = shift_sum + shq

    r = params["residual"]
    has_residual = r is not None
    if r == "identity":
        assert stride == 1 and C_in == C_out, \
            "identity residual requires stride==1 and C_in==C_out"
        wres = (jnp.zeros((cin_p, cout_p), jnp.float32)
                .at[jnp.arange(C_in), jnp.arange(C_in)].set(1.0)).astype(compute_dtype)
    elif has_residual:
        # TODO(synk): only residual_kernel_size == 1 (the module default) is supported.
        wres, shr = _fold_pointwise(r["conv_w"], r["conv_b"], r["bn"],
                                    cin_p, cout_p, 0, eps, compute_dtype)
        shift_sum = shift_sum + shr
    else:
        wres = None

    nb_pw = nb_tcn + 1
    w1_all = jnp.stack(w1_list)                                   # (nb_pw, cin_p, c_p)
    t1_all = jnp.stack(t1_list).reshape(nb_pw, 1, c_p).astype(jnp.float32)
    w2_all = jnp.stack(w2_list).reshape(nb_tcn * ks, c_p, cout_p)
    shift = shift_sum.reshape(1, cout_p)

    # ---- NCHW -> channels-last (N*V, T, C), lane-padded channels ------------------
    M = N * V
    x3 = jnp.transpose(x, (0, 3, 2, 1)).reshape(M, T, C_in)
    x3 = jnp.pad(x3, ((0, 0), (0, 0), (0, cin_p - C_in))).astype(compute_dtype)

    # ---- generation-aware VMEM budget / row-block size ----------------------------
    cap = _vmem_capacity_bytes()
    cbytes = jnp.dtype(compute_dtype).itemsize
    obytes = jnp.dtype(out_dtype).itemsize
    per_row = (2 * T * cin_p * cbytes                 # x block (double-buffered)
               + 2 * t_out * cout_p * obytes          # out block (double-buffered)
               + (T + 2 * halo) * c_p * cbytes        # halo'd activation scratch
               + 3 * t_out * cout_p * 4               # f32 accumulator value + spills
               + T * c_p * 4)                         # pointwise f32 temp
    bm = _pick_bm(M, per_row, budget_bytes=int(cap * 0.30))
    vmem_limit = int(min(cap * 0.60, 100 * 1024 * 1024))
    m_pad = _round_up(M, bm)                          # handles N*V % bm != 0 (e.g. V=25)
    if m_pad > M:
        x3 = jnp.pad(x3, ((0, m_pad - M), (0, 0), (0, 0)))

    # ---- one fused pallas_call -----------------------------------------------------
    kern = functools.partial(_fused_mstcn_kernel, ks=ks, dilations=dilations,
                             stride=stride, halo=halo, has_residual=has_residual)

    in_specs = [
        pl.BlockSpec((bm, T, cin_p), lambda i: (i, 0, 0)),
        pl.BlockSpec((nb_pw, cin_p, c_p), lambda i: (0, 0, 0)),
        pl.BlockSpec((nb_pw, 1, c_p), lambda i: (0, 0, 0)),
        pl.BlockSpec((nb_tcn * ks, c_p, cout_p), lambda i: (0, 0, 0)),
        pl.BlockSpec((c_p, cout_p), lambda i: (0, 0)),
        pl.BlockSpec((cin_p, cout_p), lambda i: (0, 0)),
        pl.BlockSpec((1, cout_p), lambda i: (0, 0)),
    ]
    args = [x3, w1_all, t1_all, w2_all, wpool, wpw, shift]
    if has_residual:
        in_specs.append(pl.BlockSpec((cin_p, cout_p), lambda i: (0, 0)))
        args.append(wres)

    weight_bytes = (w1_all.size + w2_all.size + wpool.size + wpw.size
                    + (wres.size if has_residual else 0)) * cbytes
    flops = 2 * m_pad * (t_out * cin_p * cout_p * (1 + int(has_residual))
                         + nb_pw * T * cin_p * c_p
                         + (nb_tcn * ks + 1) * t_out * c_p * cout_p)
    bytes_acc = (x3.size * cbytes + weight_bytes
                 + m_pad * t_out * cout_p * obytes)

    out = pl.pallas_call(
        kern,
        out_shape=jax.ShapeDtypeStruct((m_pad, t_out, cout_p), out_dtype),
        grid=(m_pad // bm,),
        in_specs=in_specs,
        out_specs=pl.BlockSpec((bm, t_out, cout_p), lambda i: (i, 0, 0)),
        scratch_shapes=[pltpu.VMEM((bm, T + 2 * halo, c_p), compute_dtype)],
        compiler_params=pltpu.CompilerParams(
            dimension_semantics=("parallel",),
            vmem_limit_bytes=vmem_limit),
        cost_estimate=pl.CostEstimate(flops=int(flops), transcendentals=0,
                                      bytes_accessed=int(bytes_acc)),
    )(*args)

    out = out[:M, :, :C_out]
    # (M, t_out, C_out) -> (N, C_out, t_out, V)
    return jnp.transpose(out.reshape(N, V, t_out, C_out), (0, 3, 2, 1))


# --------------------------------------------------------------------------
# parameter init (mirrors weights_init) and pure-JAX reference
# --------------------------------------------------------------------------
def init_params(key, in_ch, out_ch, *, kernel_size=3, stride=1,
                dilations=(1, 2, 3, 4), residual=True, residual_ks=1):
    num_branches = len(dilations) + 2
    assert out_ch % num_branches == 0
    c_br = out_ch // num_branches

    def conv_init(k, co, ci, kh, kw):
        fan_out = co * kh * kw
        w = jax.random.normal(k, (co, ci, kh, kw), jnp.float32) * math.sqrt(2.0 / fan_out)
        return w, jnp.zeros((co,), jnp.float32)

    def bn_init(k, c):
        g = 1.0 + 0.02 * jax.random.normal(k, (c,), jnp.float32)
        return (g, jnp.zeros((c,), jnp.float32),
                jnp.zeros((c,), jnp.float32), jnp.ones((c,), jnp.float32))

    keys = iter(jax.random.split(key, 64))
    branches = []
    for d in dilations:
        w1, b1 = conv_init(next(keys), c_br, in_ch, 1, 1)
        bn1 = bn_init(next(keys), c_br)
        w2, b2 = conv_init(next(keys), c_br, c_br, kernel_size, 1)
        bn2 = bn_init(next(keys), c_br)
        branches.append(dict(conv1_w=w1, conv1_b=b1, bn1=bn1,
                             conv2_w=w2, conv2_b=b2, bn2=bn2,
                             ks=kernel_size, dilation=d))
    w1, b1 = conv_init(next(keys), c_br, in_ch, 1, 1)
    pool = dict(conv1_w=w1, conv1_b=b1, bn1=bn_init(next(keys), c_br),
                bn2=bn_init(next(keys), c_br))
    w1, b1 = conv_init(next(keys), c_br, in_ch, 1, 1)
    pw = dict(conv1_w=w1, conv1_b=b1, bn1=bn_init(next(keys), c_br))

    if not residual:
        res = None
    elif in_ch == out_ch and stride == 1:
        res = "identity"
    else:
        w, b = conv_init(next(keys), out_ch, in_ch, residual_ks, 1)
        res = dict(conv_w=w, conv_b=b, bn=bn_init(next(keys), out_ch))
    return dict(branches=branches, pool=pool, pw=pw, residual=res)


def _reference(x, params, *, stride=1, eps=1e-5):
    def bn4(y, g, b, m, v):
        return ((y - m[None, :, None, None]) / jnp.sqrt(v[None, :, None, None] + eps)
                * g[None, :, None, None] + b[None, :, None, None])

    def conv2d(y, w, b, stride_t=1, pad_t=0, dil_t=1):
        o = lax.conv_general_dilated(
            y, w, window_strides=(stride_t, 1), padding=((pad_t, pad_t), (0, 0)),
            rhs_dilation=(dil_t, 1), dimension_numbers=("NCHW", "OIHW", "NCHW"))
        return o + b[None, :, None, None]

    branch_outs = []
    for br in params["branches"]:
        h = jax.nn.relu(bn4(conv2d(x, br["conv1_w"], br["conv1_b"]), *br["bn1"]))
        pad = (br["dilation"] * (br["ks"] - 1)) // 2
        h = conv2d(h, br["conv2_w"], br["conv2_b"], stride_t=stride,
                   pad_t=pad, dil_t=br["dilation"])
        branch_outs.append(bn4(h, *br["bn2"]))

    p = params["pool"]
    h = jax.nn.relu(bn4(conv2d(x, p["conv1_w"], p["conv1_b"]), *p["bn1"]))
    h = lax.reduce_window(h, -jnp.inf, lax.max, (1, 1, 3, 1),
                          (1, 1, stride, 1), ((0, 0), (0, 0), (1, 1), (0, 0)))
    branch_outs.append(bn4(h, *p["bn2"]))

    q = params["pw"]
    branch_outs.append(bn4(conv2d(x, q["conv1_w"], q["conv1_b"], stride_t=stride),
                           *q["bn1"]))

    out = jnp.concatenate(branch_outs, axis=1)
    r = params["residual"]
    if r == "identity":
        res = x
    elif r is None:
        res = 0.0
    else:
        res = bn4(conv2d(x, r["conv_w"], r["conv_b"], stride_t=stride), *r["bn"])
    return out + res


# --------------------------------------------------------------------------
# demo / self-test
# --------------------------------------------------------------------------
if __name__ == "__main__":
    # Small shapes consistent with the module (x is NCHW = N, C_in, T, V).
    N, C_in, C_out, T, V = 2, 8, 12, 16, 16          # C_out % 6 == 0
    kernel_size, stride, dilations = 3, 1, (1, 2, 3, 4)

    key = jax.random.PRNGKey(0)
    kx, kp = jax.random.split(key)
    x = jax.random.normal(kx, (N, C_in, T, V), dtype=jnp.float32)
    params = init_params(kp, C_in, C_out, kernel_size=kernel_size,
                         stride=stride, dilations=dilations, residual=True)

    y = multiscale_tcn_forward(x, params, stride=stride)
    y = jax.block_until_ready(y)

    y_ref = _reference(x, params, stride=stride)
    t_out = (T - 1) // stride + 1
    assert y.shape == (N, C_out, t_out, V), y.shape
    # tolerance covers TPU default-precision (bf16-pass) matmul/conv rounding in
    # both the kernel and the XLA reference
    err = float(jnp.max(jnp.abs(y - y_ref)))
    assert jnp.allclose(y, y_ref, atol=2e-2, rtol=2e-2), err

    print("KERNEL_OK")
</pallas_src>

<mosaic_0001>
module attributes {stable_mosaic.version = 11 : i64} {
  func.func @_fused_mstcn_kernel(%arg0: i32, %arg1: memref<8x16x128xf32, #tpu.memory_space<vmem>>, %arg2: memref<5x128x128xf32, #tpu.memory_space<vmem>>, %arg3: memref<5x1x128xf32, #tpu.memory_space<vmem>>, %arg4: memref<12x128x128xf32, #tpu.memory_space<vmem>>, %arg5: memref<128x128xf32, #tpu.memory_space<vmem>>, %arg6: memref<128x128xf32, #tpu.memory_space<vmem>>, %arg7: memref<1x128xf32, #tpu.memory_space<vmem>>, %arg8: memref<128x128xf32, #tpu.memory_space<vmem>>, %arg9: memref<8x16x128xf32, #tpu.memory_space<vmem>>, %arg10: memref<8x24x128xf32, #tpu.memory_space<vmem>>) attributes {dimension_semantics = [#tpu.dimension_semantics<parallel>], iteration_bounds = array<i64: 4>, scalar_prefetch = 0 : i64, scratch_operands = 1 : i64, tpu.core_type = #tpu.core_type<tc>, window_params = [{transform_indices = @transform_0, window_bounds = array<i64: 8, 16, 128>}, {pipeline_mode = #tpu.pipeline_mode<synchronous>, transform_indices = @transform_1, window_bounds = array<i64: 5, 128, 128>}, {pipeline_mode = #tpu.pipeline_mode<synchronous>, transform_indices = @transform_2, window_bounds = array<i64: 5, 1, 128>}, {pipeline_mode = #tpu.pipeline_mode<synchronous>, transform_indices = @transform_3, window_bounds = array<i64: 12, 128, 128>}, {pipeline_mode = #tpu.pipeline_mode<synchronous>, transform_indices = @transform_4, window_bounds = array<i64: 128, 128>}, {pipeline_mode = #tpu.pipeline_mode<synchronous>, transform_indices = @transform_5, window_bounds = array<i64: 128, 128>}, {pipeline_mode = #tpu.pipeline_mode<synchronous>, transform_indices = @transform_6, window_bounds = array<i64: 1, 128>}, {pipeline_mode = #tpu.pipeline_mode<synchronous>, transform_indices = @transform_7, window_bounds = array<i64: 128, 128>}, {transform_indices = @transform_8, window_bounds = array<i64: 8, 16, 128>}]} {
    %c0 = arith.constant 0 : index
    %c0_0 = arith.constant 0 : index
    %c0_1 = arith.constant 0 : index
    %0 = vector.load %arg1[%c0, %c0_0, %c0_1] : memref<8x16x128xf32, #tpu.memory_space<vmem>>, vector<8x16x128xf32>
    %c0_2 = arith.constant 0 : index
    %c0_3 = arith.constant 0 : index
    %1 = vector.load %arg6[%c0_2, %c0_3] : memref<128x128xf32, #tpu.memory_space<vmem>>, vector<128x128xf32>
    %cst = arith.constant dense<0.000000e+00> : vector<8x16x128xf32>
    %2 = tpu.matmul %0, %1, %cst {dimension_numbers = #tpu.dot_dimension_numbers<[2], [0], [0, 1], [1], [0, 0, 0, 1, 1, 1], [], []>} : vector<8x16x128xf32>, vector<128x128xf32>, vector<8x16x128xf32> -> vector<8x16x128xf32>
    %c0_4 = arith.constant 0 : index
    %c0_5 = arith.constant 0 : index
    %3 = vector.load %arg8[%c0_4, %c0_5] : memref<128x128xf32, #tpu.memory_space<vmem>>, vector<128x128xf32>
    %cst_6 = arith.constant dense<0.000000e+00> : vector<8x16x128xf32>
    %4 = tpu.matmul %0, %3, %cst_6 {dimension_numbers = #tpu.dot_dimension_numbers<[2], [0], [0, 1], [1], [0, 0, 0, 1, 1, 1], [], []>} : vector<8x16x128xf32>, vector<128x128xf32>, vector<8x16x128xf32> -> vector<8x16x128xf32>
    %5 = arith.addf %2, %4 : vector<8x16x128xf32>
    %c0_7 = arith.constant 0 : index
    %c0_8 = arith.constant 0 : index
    %6 = vector.load %arg7[%c0_7, %c0_8] : memref<1x128xf32, #tpu.memory_space<vmem>>, vector<1x128xf32>
    %7 = vector.shape_cast %6 : vector<1x128xf32> to vector<1x1x128xf32>
    %8 = vector.broadcast %7 : vector<1x1x128xf32> to vector<8x16x128xf32>
    %9 = arith.addf %5, %8 : vector<8x16x128xf32>
    %cst_9 = arith.constant 0.000000e+00 : f32
    %10 = vector.broadcast %cst_9 : f32 to vector<8x4x128xf32>
    %c0_10 = arith.constant 0 : index
    %c0_11 = arith.constant 0 : index
    %c0_12 = arith.constant 0 : index
    %11 = vector.load %arg10[%c0_10, %c0_11, %c0_12] : memref<8x24x128xf32, #tpu.memory_space<vmem>>, vector<8x4x128xf32>
    tpu.vector_store %arg10[%c0_10, %c0_11, %c0_12], %10 {strides = array<i32>} : memref<8x24x128xf32, #tpu.memory_space<vmem>>, vector<8x4x128xf32>,
    %c0_13 = arith.constant 0 : index
    %c20 = arith.constant 20 : index
    %c0_14 = arith.constant 0 : index
    %12 = vector.load %arg10[%c0_13, %c20, %c0_14] : memref<8x24x128xf32, #tpu.memory_space<vmem>>, vector<8x4x128xf32>
    tpu.vector_store %arg10[%c0_13, %c20, %c0_14], %10 {strides = array<i32>} : memref<8x24x128xf32, #tpu.memory_space<vmem>>, vector<8x4x128xf32>,
    %c0_15 = arith.constant 0 : index
    %c0_16 = arith.constant 0 : index
    %c0_17 = arith.constant 0 : index
    %13 = vector.load %arg2[%c0_15, %c0_16, %c0_17] : memref<5x128x128xf32, #tpu.memory_space<vmem>>, vector<1x128x128xf32>
    %14 = vector.shape_cast %13 : vector<1x128x128xf32> to vector<128x128xf32>
    %cst_18 = arith.constant dense<0.000000e+00> : vector<8x16x128xf32>
    %15 = tpu.matmul %0, %14, %cst_18 {dimension_numbers = #tpu.dot_dimension_numbers<[2], [0], [0, 1], [1], [0, 0, 0, 1, 1, 1], [], []>} : vector<8x16x128xf32>, vector<128x128xf32>, vector<8x16x128xf32> -> vector<8x16x128xf32>
    %c0_19 = arith.constant 0 : index
    %c0_20 = arith.constant 0 : index
    %c0_21 = arith.constant 0 : index
    %16 = vector.load %arg3[%c0_19, %c0_20, %c0_21] : memref<5x1x128xf32, #tpu.memory_space<vmem>>, vector<1x1x128xf32>
    %17 = vector.shape_cast %16 : vector<1x1x128xf32> to vector<1x128xf32>
    %18 = vector.shape_cast %17 : vector<1x128xf32> to vector<1x1x128xf32>
    %19 = vector.broadcast %18 : vector<1x1x128xf32> to vector<8x16x128xf32>
    %20 = arith.addf %15, %19 : vector<8x16x128xf32>
    %cst_22 = arith.constant 0.000000e+00 : f32
    %21 = vector.broadcast %cst_22 : f32 to vector<8x16x128xf32>
    %22 = arith.maximumf %20, %21 : vector<8x16x128xf32>
    %c0_23 = arith.constant 0 : index
    %c4 = arith.constant 4 : index
    %c0_24 = arith.constant 0 : index
    %23 = vector.load %arg10[%c0_23, %c4, %c0_24] : memref<8x24x128xf32, #tpu.memory_space<vmem>>, vector<8x16x128xf32>
    tpu.vector_store %arg10[%c0_23, %c4, %c0_24], %22 {strides = array<i32>} : memref<8x24x128xf32, #tpu.memory_space<vmem>>, vector<8x16x128xf32>,
    %c0_25 = arith.constant 0 : index
    %c3 = arith.constant 3 : index
    %c0_26 = arith.constant 0 : index
    %24 = vector.load %arg10[%c0_25, %c3, %c0_26] : memref<8x24x128xf32, #tpu.memory_space<vmem>>, vector<8x16x128xf32>
    %c0_27 = arith.constant 0 : index
    %c0_28 = arith.constant 0 : index
    %c0_29 = arith.constant 0 : index
    %25 = vector.load %arg4[%c0_27, %c0_28, %c0_29] : memref<12x128x128xf32, #tpu.memory_space<vmem>>, vector<1x128x128xf32>
    %26 = vector.shape_cast %25 : vector<1x128x128xf32> to vector<128x128xf32>
    %cst_30 = arith.constant dense<0.000000e+00> : vector<8x16x128xf32>
    %27 = tpu.matmul %24, %26, %cst_30 {dimension_numbers = #tpu.dot_dimension_numbers<[2], [0], [0, 1], [1], [0, 0, 0, 1, 1, 1], [], []>} : vector<8x16x128xf32>, vector<128x128xf32>, vector<8x16x128xf32> -> vector<8x16x128xf32>
    %c0_31 = arith.constant 0 : index
    %c4_32 = arith.constant 4 : index
    %c0_33 = arith.constant 0 : index
    %28 = vector.load %arg10[%c0_31, %c4_32, %c0_33] : memref<8x24x128xf32, #tpu.memory_space<vmem>>, vector<8x16x128xf32>
    %c1 = arith.constant 1 : index
    %c0_34 = arith.constant 0 : index
    %c0_35 = arith.constant 0 : index
    %29 = vector.load %arg4[%c1, %c0_34, %c0_35] : memref<12x128x128xf32, #tpu.memory_space<vmem>>, vector<1x128x128xf32>
    %30 = vector.shape_cast %29 : vector<1x128x128xf32> to vector<128x128xf32>
    %cst_36 = arith.constant dense<0.000000e+00> : vector<8x16x128xf32>
    %31 = tpu.matmul %28, %30, %cst_36 {dimension_numbers = #tpu.dot_dimension_numbers<[2], [0], [0, 1], [1], [0, 0, 0, 1, 1, 1], [], []>} : vector<8x16x128xf32>, vector<128x128xf32>, vector<8x16x128xf32> -> vector<8x16x128xf32>
    %32 = arith.addf %27, %31 : vector<8x16x128xf32>
    %c0_37 = arith.constant 0 : index
    %c5 = arith.constant 5 : index
    %c0_38 = arith.constant 0 : index
    %33 = vector.load %arg10[%c0_37, %c5, %c0_38] : memref<8x24x128xf32, #tpu.memory_space<vmem>>, vector<8x16x128xf32>
    %c2 = arith.constant 2 : index
    %c0_39 = arith.constant 0 : index
    %c0_40 = arith.constant 0 : index
    %34 = vector.load %arg4[%c2, %c0_39, %c0_40] : memref<12x128x128xf32, #tpu.memory_space<vmem>>, vector<1x128x128xf32>
    %35 = vector.shape_cast %34 : vector<1x128x128xf32> to vector<128x128xf32>
    %cst_41 = arith.constant dense<0.000000e+00> : vector<8x16x128xf32>
    %36 = tpu.matmul %33, %35, %cst_41 {dimension_numbers = #tpu.dot_dimension_numbers<[2], [0], [0, 1], [1], [0, 0, 0, 1, 1, 1], [], []>} : vector<8x16x128xf32>, vector<128x128xf32>, vector<8x16x128xf32> -> vector<8x16x128xf32>
    %37 = arith.addf %32, %36 : vector<8x16x128xf32>
    %38 = arith.addf %9, %37 : vector<8x16x128xf32>
    %c1_42 = arith.constant 1 : index
    %c0_43 = arith.constant 0 : index
    %c0_44 = arith.constant 0 : index
    %39 = vector.load %arg2[%c1_42, %c0_43, %c0_44] : memref<5x128x128xf32, #tpu.memory_space<vmem>>, vector<1x128x128xf32>
    %40 = vector.shape_cast %39 : vector<1x128x128xf32> to vector<128x128xf32>
    %cst_45 = arith.constant dense<0.000000e+00> : vector<8x16x128xf32>
    %41 = tpu.matmul %0, %40, %cst_45 {dimension_numbers = #tpu.dot_dimension_numbers<[2], [0], [0, 1], [1], [0, 0, 0, 1, 1, 1], [], []>} : vector<8x16x128xf32>, vector<128x128xf32>, vector<8x16x128xf32> -> vector<8x16x128xf32>
    %c1_46 = arith.constant 1 : index
    %c0_47 = arith.constant 0 : index
    %c0_48 = arith.constant 0 : index
    %42 = vector.load %arg3[%c1_46, %c0_47, %c0_48] : memref<5x1x128xf32, #tpu.memory_space<vmem>>, vector<1x1x128xf32>
    %43 = vector.shape_cast %42 : vector<1x1x128xf32> to vector<1x128xf32>
    %44 = vector.shape_cast %43 : vector<1x128xf32> to vector<1x1x128xf32>
    %45 = vector.broadcast %44 : vector<1x1x128xf32> to vector<8x16x128xf32>
    %46 = arith.addf %41, %45 : vector<8x16x128xf32>
    %cst_49 = arith.constant 0.000000e+00 : f32
    %47 = vector.broadcast %cst_49 : f32 to vector<8x16x128xf32>
    %48 = arith.maximumf %46, %47 : vector<8x16x128xf32>
    %c0_50 = arith.constant 0 : index
    %c4_51 = arith.constant 4 : index
    %c0_52 = arith.constant 0 : index
    %49 = vector.load %arg10[%c0_50, %c4_51, %c0_52] : memref<8x24x128xf32, #tpu.memory_space<vmem>>, vector<8x16x128xf32>
    tpu.vector_store %arg10[%c0_50, %c4_51, %c0_52], %48 {strides = array<i32>} : memref<8x24x128xf32, #tpu.memory_space<vmem>>, vector<8x16x128xf32>,
    %c0_53 = arith.constant 0 : index
    %c2_54 = arith.constant 2 : index
    %c0_55 = arith.constant 0 : index
    %50 = vector.load %arg10[%c0_53, %c2_54, %c0_55] : memref<8x24x128xf32, #tpu.memory_space<vmem>>, vector<8x16x128xf32>
    %c3_56 = arith.constant 3 : index
    %c0_57 = arith.constant 0 : index
    %c0_58 = arith.constant 0 : index
    %51 = vector.load %arg4[%c3_56, %c0_57, %c0_58] : memref<12x128x128xf32, #tpu.memory_space<vmem>>, vector<1x128x128xf32>
    %52 = vector.shape_cast %51 : vector<1x128x128xf32> to vector<128x128xf32>
    %cst_59 = arith.constant dense<0.000000e+00> : vector<8x16x128xf32>
    %53 = tpu.matmul %50, %52, %cst_59 {dimension_numbers = #tpu.dot_dimension_numbers<[2], [0], [0, 1], [1], [0, 0, 0, 1, 1, 1], [], []>} : vector<8x16x128xf32>, vector<128x128xf32>, vector<8x16x128xf32> -> vector<8x16x128xf32>
    %c0_60 = arith.constant 0 : index
    %c4_61 = arith.constant 4 : index
    %c0_62 = arith.constant 0 : index
    %54 = vector.load %arg10[%c0_60, %c4_61, %c0_62] : memref<8x24x128xf32, #tpu.memory_space<vmem>>, vector<8x16x128xf32>
    %c4_63 = arith.constant 4 : index
    %c0_64 = arith.constant 0 : index
    %c0_65 = arith.constant 0 : index
    %55 = vector.load %arg4[%c4_63, %c0_64, %c0_65] : memref<12x128x128xf32, #tpu.memory_space<vmem>>, vector<1x128x128xf32>
    %56 = vector.shape_cast %55 : vector<1x128x128xf32> to vector<128x128xf32>
    %cst_66 = arith.constant dense<0.000000e+00> : vector<8x16x128xf32>
    %57 = tpu.matmul %54, %56, %cst_66 {dimension_numbers = #tpu.dot_dimension_numbers<[2], [0], [0, 1], [1], [0, 0, 0, 1, 1, 1], [], []>} : vector<8x16x128xf32>, vector<128x128xf32>, vector<8x16x128xf32> -> vector<8x16x128xf32>
    %58 = arith.addf %53, %57 : vector<8x16x128xf32>
    %c0_67 = arith.constant 0 : index
    %c6 = arith.constant 6 : index
    %c0_68 = arith.constant 0 : index
    %59 = vector.load %arg10[%c0_67, %c6, %c0_68] : memref<8x24x128xf32, #tpu.memory_space<vmem>>, vector<8x16x128xf32>
    %c5_69 = arith.constant 5 : index
    %c0_70 = arith.constant 0 : index
    %c0_71 = arith.constant 0 : index
    %60 = vector.load %arg4[%c5_69, %c0_70, %c0_71] : memref<12x128x128xf32, #tpu.memory_space<vmem>>, vector<1x128x128xf32>
    %61 = vector.shape_cast %60 : vector<1x128x128xf32> to vector<128x128xf32>
    %cst_72 = arith.constant dense<0.000000e+00> : vector<8x16x128xf32>
    %62 = tpu.matmul %59, %61, %cst_72 {dimension_numbers = #tpu.dot_dimension_numbers<[2], [0], [0, 1], [1], [0, 0, 0, 1, 1, 1], [], []>} : vector<8x16x128xf32>, vector<128x128xf32>, vector<8x16x128xf32> -> vector<8x16x128xf32>
    %63 = arith.addf %58, %62 : vector<8x16x128xf32>
    %64 = arith.addf %38, %63 : vector<8x16x128xf32>
    %c2_73 = arith.constant 2 : index
    %c0_74 = arith.constant 0 : index
    %c0_75 = arith.constant 0 : index
    %65 = vector.load %arg2[%c2_73, %c0_74, %c0_75] : memref<5x128x128xf32, #tpu.memory_space<vmem>>, vector<1x128x128xf32>
    %66 = vector.shape_cast %65 : vector<1x128x128xf32> to vector<128x128xf32>
    %cst_76 = arith.constant dense<0.000000e+00> : vector<8x16x128xf32>
    %67 = tpu.matmul %0, %66, %cst_76 {dimension_numbers = #tpu.dot_dimension_numbers<[2], [0], [0, 1], [1], [0, 0, 0, 1, 1, 1], [], []>} : vector<8x16x128xf32>, vector<128x128xf32>, vector<8x16x128xf32> -> vector<8x16x128xf32>
    %c2_77 = arith.constant 2 : index
    %c0_78 = arith.constant 0 : index
    %c0_79 = arith.constant 0 : index
    %68 = vector.load %arg3[%c2_77, %c0_78, %c0_79] : memref<5x1x128xf32, #tpu.memory_space<vmem>>, vector<1x1x128xf32>
    %69 = vector.shape_cast %68 : vector<1x1x128xf32> to vector<1x128xf32>
    %70 = vector.shape_cast %69 : vector<1x128xf32> to vector<1x1x128xf32>
    %71 = vector.broadcast %70 : vector<1x1x128xf32> to vector<8x16x128xf32>
    %72 = arith.addf %67, %71 : vector<8x16x128xf32>
    %cst_80 = arith.constant 0.000000e+00 : f32
    %73 = vector.broadcast %cst_80 : f32 to vector<8x16x128xf32>
    %74 = arith.maximumf %72, %73 : vector<8x16x128xf32>
    %c0_81 = arith.constant 0 : index
    %c4_82 = arith.constant 4 : index
    %c0_83 = arith.constant 0 : index
    %75 = vector.load %arg10[%c0_81, %c4_82, %c0_83] : memref<8x24x128xf32, #tpu.memory_space<vmem>>, vector<8x16x128xf32>
    tpu.vector_store %arg10[%c0_81, %c4_82, %c0_83], %74 {strides = array<i32>} : memref<8x24x128xf32, #tpu.memory_space<vmem>>, vector<8x16x128xf32>,
    %c0_84 = arith.constant 0 : index
    %c1_85 = arith.constant 1 : index
    %c0_86 = arith.constant 0 : index
    %76 = vector.load %arg10[%c0_84, %c1_85, %c0_86] : memref<8x24x128xf32, #tpu.memory_space<vmem>>, vector<8x16x128xf32>
    %c6_87 = arith.constant 6 : index
    %c0_88 = arith.constant 0 : index
    %c0_89 = arith.constant 0 : index
    %77 = vector.load %arg4[%c6_87, %c0_88, %c0_89] : memref<12x128x128xf32, #tpu.memory_space<vmem>>, vector<1x128x128xf32>
    %78 = vector.shape_cast %77 : vector<1x128x128xf32> to vector<128x128xf32>
    %cst_90 = arith.constant dense<0.000000e+00> : vector<8x16x128xf32>
    %79 = tpu.matmul %76, %78, %cst_90 {dimension_numbers = #tpu.dot_dimension_numbers<[2], [0], [0, 1], [1], [0, 0, 0, 1, 1, 1], [], []>} : vector<8x16x128xf32>, vector<128x128xf32>, vector<8x16x128xf32> -> vector<8x16x128xf32>
    %c0_91 = arith.constant 0 : index
    %c4_92 = arith.constant 4 : index
    %c0_93 = arith.constant 0 : index
    %80 = vector.load %arg10[%c0_91, %c4_92, %c0_93] : memref<8x24x128xf32, #tpu.memory_space<vmem>>, vector<8x16x128xf32>
    %c7 = arith.constant 7 : index
    %c0_94 = arith.constant 0 : index
    %c0_95 = arith.constant 0 : index
    %81 = vector.load %arg4[%c7, %c0_94, %c0_95] : memref<12x128x128xf32, #tpu.memory_space<vmem>>, vector<1x128x128xf32>
    %82 = vector.shape_cast %81 : vector<1x128x128xf32> to vector<128x128xf32>
    %cst_96 = arith.constant dense<0.000000e+00> : vector<8x16x128xf32>
    %83 = tpu.matmul %80, %82, %cst_96 {dimension_numbers = #tpu.dot_dimension_numbers<[2], [0], [0, 1], [1], [0, 0, 0, 1, 1, 1], [], []>} : vector<8x16x128xf32>, vector<128x128xf32>, vector<8x16x128xf32> -> vector<8x16x128xf32>
    %84 = arith.addf %79, %83 : vector<8x16x128xf32>
    %c0_97 = arith.constant 0 : index
    %c7_98 = arith.constant 7 : index
    %c0_99 = arith.constant 0 : index
    %85 = vector.load %arg10[%c0_97, %c7_98, %c0_99] : memref<8x24x128xf32, #tpu.memory_space<vmem>>, vector<8x16x128xf32>
    %c8 = arith.constant 8 : index
    %c0_100 = arith.constant 0 : index
    %c0_101 = arith.constant 0 : index
    %86 = vector.load %arg4[%c8, %c0_100, %c0_101] : memref<12x128x128xf32, #tpu.memory_space<vmem>>, vector<1x128x128xf32>
    %87 = vector.shape_cast %86 : vector<1x128x128xf32> to vector<128x128xf32>
    %cst_102 = arith.constant dense<0.000000e+00> : vector<8x16x128xf32>
    %88 = tpu.matmul %85, %87, %cst_102 {dimension_numbers = #tpu.dot_dimension_numbers<[2], [0], [0, 1], [1], [0, 0, 0, 1, 1, 1], [], []>} : vector<8x16x128xf32>, vector<128x128xf32>, vector<8x16x128xf32> -> vector<8x16x128xf32>
    %89 = arith.addf %84, %88 : vector<8x16x128xf32>
    %90 = arith.addf %64, %89 : vector<8x16x128xf32>
    %c3_103 = arith.constant 3 : index
    %c0_104 = arith.constant 0 : index
    %c0_105 = arith.constant 0 : index
    %91 = vector.load %arg2[%c3_103, %c0_104, %c0_105] : memref<5x128x128xf32, #tpu.memory_space<vmem>>, vector<1x128x128xf32>
    %92 = vector.shape_cast %91 : vector<1x128x128xf32> to vector<128x128xf32>
    %cst_106 = arith.constant dense<0.000000e+00> : vector<8x16x128xf32>
    %93 = tpu.matmul %0, %92, %cst_106 {dimension_numbers = #tpu.dot_dimension_numbers<[2], [0], [0, 1], [1], [0, 0, 0, 1, 1, 1], [], []>} : vector<8x16x128xf32>, vector<128x128xf32>, vector<8x16x128xf32> -> vector<8x16x128xf32>
    %c3_107 = arith.constant 3 : index
    %c0_108 = arith.constant 0 : index
    %c0_109 = arith.constant 0 : index
    %94 = vector.load %arg3[%c3_107, %c0_108, %c0_109] : memref<5x1x128xf32, #tpu.memory_space<vmem>>, vector<1x1x128xf32>
    %95 = vector.shape_cast %94 : vector<1x1x128xf32> to vector<1x128xf32>
    %96 = vector.shape_cast %95 : vector<1x128xf32> to vector<1x1x128xf32>
    %97 = vector.broadcast %96 : vector<1x1x128xf32> to vector<8x16x128xf32>
    %98 = arith.addf %93, %97 : vector<8x16x128xf32>
    %cst_110 = arith.constant 0.000000e+00 : f32
    %99 = vector.broadcast %cst_110 : f32 to vector<8x16x128xf32>
    %100 = arith.maximumf %98, %99 : vector<8x16x128xf32>
    %c0_111 = arith.constant 0 : index
    %c4_112 = arith.constant 4 : index
    %c0_113 = arith.constant 0 : index
    %101 = vector.load %arg10[%c0_111, %c4_112, %c0_113] : memref<8x24x128xf32, #tpu.memory_space<vmem>>, vector<8x16x128xf32>
    tpu.vector_store %arg10[%c0_111, %c4_112, %c0_113], %100 {strides = array<i32>} : memref<8x24x128xf32, #tpu.memory_space<vmem>>, vector<8x16x128xf32>,
    %c0_114 = arith.constant 0 : index
    %c0_115 = arith.constant 0 : index
    %c0_116 = arith.constant 0 : index
    %102 = vector.load %arg10[%c0_114, %c0_115, %c0_116] : memref<8x24x128xf32, #tpu.memory_space<vmem>>, vector<8x16x128xf32>
    %c9 = arith.constant 9 : index
    %c0_117 = arith.constant 0 : index
    %c0_118 = arith.constant 0 : index
    %103 = vector.load %arg4[%c9, %c0_117, %c0_118] : memref<12x128x128xf32, #tpu.memory_space<vmem>>, vector<1x128x128xf32>
    %104 = vector.shape_cast %103 : vector<1x128x128xf32> to vector<128x128xf32>
    %cst_119 = arith.constant dense<0.000000e+00> : vector<8x16x128xf32>
    %105 = tpu.matmul %102, %104, %cst_119 {dimension_numbers = #tpu.dot_dimension_numbers<[2], [0], [0, 1], [1], [0, 0, 0, 1, 1, 1], [], []>} : vector<8x16x128xf32>, vector<128x128xf32>, vector<8x16x128xf32> -> vector<8x16x128xf32>
    %c0_120 = arith.constant 0 : index
    %c4_121 = arith.constant 4 : index
    %c0_122 = arith.constant 0 : index
    %106 = vector.load %arg10[%c0_120, %c4_121, %c0_122] : memref<8x24x128xf32, #tpu.memory_space<vmem>>, vector<8x16x128xf32>
    %c10 = arith.constant 10 : index
    %c0_123 = arith.constant 0 : index
    %c0_124 = arith.constant 0 : index
    %107 = vector.load %arg4[%c10, %c0_123, %c0_124] : memref<12x128x128xf32, #tpu.memory_space<vmem>>, vector<1x128x128xf32>
    %108 = vector.shape_cast %107 : vector<1x128x128xf32> to vector<128x128xf32>
    %cst_125 = arith.constant dense<0.000000e+00> : vector<8x16x128xf32>
    %109 = tpu.matmul %106, %108, %cst_125 {dimension_numbers = #tpu.dot_dimension_numbers<[2], [0], [0, 1], [1], [0, 0, 0, 1, 1, 1], [], []>} : vector<8x16x128xf32>, vector<128x128xf32>, vector<8x16x128xf32> -> vector<8x16x128xf32>
    %110 = arith.addf %105, %109 : vector<8x16x128xf32>
    %c0_126 = arith.constant 0 : index
    %c8_127 = arith.constant 8 : index
    %c0_128 = arith.constant 0 : index
    %111 = vector.load %arg10[%c0_126, %c8_127, %c0_128] : memref<8x24x128xf32, #tpu.memory_space<vmem>>, vector<8x16x128xf32>
    %c11 = arith.constant 11 : index
    %c0_129 = arith.constant 0 : index
    %c0_130 = arith.constant 0 : index
    %112 = vector.load %arg4[%c11, %c0_129, %c0_130] : memref<12x128x128xf32, #tpu.memory_space<vmem>>, vector<1x128x128xf32>
    %113 = vector.shape_cast %112 : vector<1x128x128xf32> to vector<128x128xf32>
    %cst_131 = arith.constant dense<0.000000e+00> : vector<8x16x128xf32>
    %114 = tpu.matmul %111, %113, %cst_131 {dimension_numbers = #tpu.dot_dimension_numbers<[2], [0], [0, 1], [1], [0, 0, 0, 1, 1, 1], [], []>} : vector<8x16x128xf32>, vector<128x128xf32>, vector<8x16x128xf32> -> vector<8x16x128xf32>
    %115 = arith.addf %110, %114 : vector<8x16x128xf32>
    %116 = arith.addf %90, %115 : vector<8x16x128xf32>
    %c4_132 = arith.constant 4 : index
    %c0_133 = arith.constant 0 : index
    %c0_134 = arith.constant 0 : index
    %117 = vector.load %arg2[%c4_132, %c0_133, %c0_134] : memref<5x128x128xf32, #tpu.memory_space<vmem>>, vector<1x128x128xf32>
    %118 = vector.shape_cast %117 : vector<1x128x128xf32> to vector<128x128xf32>
    %cst_135 = arith.constant dense<0.000000e+00> : vector<8x16x128xf32>
    %119 = tpu.matmul %0, %118, %cst_135 {dimension_numbers = #tpu.dot_dimension_numbers<[2], [0], [0, 1], [1], [0, 0, 0, 1, 1, 1], [], []>} : vector<8x16x128xf32>, vector<128x128xf32>, vector<8x16x128xf32> -> vector<8x16x128xf32>
    %c4_136 = arith.constant 4 : index
    %c0_137 = arith.constant 0 : index
    %c0_138 = arith.constant 0 : index
    %120 = vector.load %arg3[%c4_136, %c0_137, %c0_138] : memref<5x1x128xf32, #tpu.memory_space<vmem>>, vector<1x1x128xf32>
    %121 = vector.shape_cast %120 : vector<1x1x128xf32> to vector<1x128xf32>
    %122 = vector.shape_cast %121 : vector<1x128xf32> to vector<1x1x128xf32>
    %123 = vector.broadcast %122 : vector<1x1x128xf32> to vector<8x16x128xf32>
    %124 = arith.addf %119, %123 : vector<8x16x128xf32>
    %cst_139 = arith.constant 0.000000e+00 : f32
    %125 = vector.broadcast %cst_139 : f32 to vector<8x16x128xf32>
    %126 = arith.maximumf %124, %125 : vector<8x16x128xf32>
    %c0_140 = arith.constant 0 : index
    %c4_141 = arith.constant 4 : index
    %c0_142 = arith.constant 0 : index
    %127 = vector.load %arg10[%c0_140, %c4_141, %c0_142] : memref<8x24x128xf32, #tpu.memory_space<vmem>>, vector<8x16x128xf32>
    tpu.vector_store %arg10[%c0_140, %c4_141, %c0_142], %126 {strides = array<i32>} : memref<8x24x128xf32, #tpu.memory_space<vmem>>, vector<8x16x128xf32>,
    %c0_143 = arith.constant 0 : index
    %c3_144 = arith.constant 3 : index
    %c0_145 = arith.constant 0 : index
    %128 = vector.load %arg10[%c0_143, %c3_144, %c0_145] : memref<8x24x128xf32, #tpu.memory_space<vmem>>, vector<8x16x128xf32>
    %c0_146 = arith.constant 0 : index
    %c4_147 = arith.constant 4 : index
    %c0_148 = arith.constant 0 : index
    %129 = vector.load %arg10[%c0_146, %c4_147, %c0_148] : memref<8x24x128xf32, #tpu.memory_space<vmem>>, vector<8x16x128xf32>
    %130 = arith.maximumf %128, %129 : vector<8x16x128xf32>
    %c0_149 = arith.constant 0 : index
    %c5_150 = arith.constant 5 : index
    %c0_151 = arith.constant 0 : index
    %131 = vector.load %arg10[%c0_149, %c5_150, %c0_151] : memref<8x24x128xf32, #tpu.memory_space<vmem>>, vector<8x16x128xf32>
    %132 = arith.maximumf %130, %131 : vector<8x16x128xf32>
    %c0_152 = arith.constant 0 : index
    %c0_153 = arith.constant 0 : index
    %133 = vector.load %arg5[%c0_152, %c0_153] : memref<128x128xf32, #tpu.memory_space<vmem>>, vector<128x128xf32>
    %cst_154 = arith.constant dense<0.000000e+00> : vector<8x16x128xf32>
    %134 = tpu.matmul %132, %133, %cst_154 {dimension_numbers = #tpu.dot_dimension_numbers<[2], [0], [0, 1], [1], [0, 0, 0, 1, 1, 1], [], []>} : vector<8x16x128xf32>, vector<128x128xf32>, vector<8x16x128xf32> -> vector<8x16x128xf32>
    %135 = arith.addf %116, %134 : vector<8x16x128xf32>
    %c0_155 = arith.constant 0 : index
    %c0_156 = arith.constant 0 : index
    %c0_157 = arith.constant 0 : index
    %136 = vector.load %arg9[%c0_155, %c0_156, %c0_157] : memref<8x16x128xf32, #tpu.memory_space<vmem>>, vector<8x16x128xf32>
    tpu.vector_store %arg9[%c0_155, %c0_156, %c0_157], %135 {strides = array<i32>} : memref<8x16x128xf32, #tpu.memory_space<vmem>>, vector<8x16x128xf32>,
    return
  }
  func.func @transform_0(%arg0: i32) -> (i32, i32, i32) {
    %c0_i32 = arith.constant 0 : i32
    %c0_i32_0 = arith.constant 0 : i32
    %c0_i32_1 = arith.constant 0 : i32
    return %arg0, %c0_i32, %c0_i32_0 : i32, i32, i32
  }
  func.func @transform_1(%arg0: i32) -> (i32, i32, i32) {
    %c0_i32 = arith.constant 0 : i32
    %c0_i32_0 = arith.constant 0 : i32
    %c0_i32_1 = arith.constant 0 : i32
    %c0_i32_2 = arith.constant 0 : i32
    return %c0_i32, %c0_i32_0, %c0_i32_1 : i32, i32, i32
  }
  func.func @transform_2(%arg0: i32) -> (i32, i32, i32) {
    %c0_i32 = arith.constant 0 : i32
    %c0_i32_0 = arith.constant 0 : i32
    %c0_i32_1 = arith.constant 0 : i32
    %c0_i32_2 = arith.constant 0 : i32
    return %c0_i32, %c0_i32_0, %c0_i32_1 : i32, i32, i32
  }
  func.func @transform_3(%arg0: i32) -> (i32, i32, i32) {
    %c0_i32 = arith.constant 0 : i32
    %c0_i32_0 = arith.constant 0 : i32
    %c0_i32_1 = arith.constant 0 : i32
    %c0_i32_2 = arith.constant 0 : i32
    return %c0_i32, %c0_i32_0, %c0_i32_1 : i32, i32, i32
  }
  func.func @transform_4(%arg0: i32) -> (i32, i32) {
    %c0_i32 = arith.constant 0 : i32
    %c0_i32_0 = arith.constant 0 : i32
    %c0_i32_1 = arith.constant 0 : i32
    return %c0_i32, %c0_i32_0 : i32, i32
  }
  func.func @transform_5(%arg0: i32) -> (i32, i32) {
    %c0_i32 = arith.constant 0 : i32
    %c0_i32_0 = arith.constant 0 : i32
    %c0_i32_1 = arith.constant 0 : i32
    return %c0_i32, %c0_i32_0 : i32, i32
  }
  func.func @transform_6(%arg0: i32) -> (i32, i32) {
    %c0_i32 = arith.constant 0 : i32
    %c0_i32_0 = arith.constant 0 : i32
    %c0_i32_1 = arith.constant 0 : i32
    return %c0_i32, %c0_i32_0 : i32, i32
  }
  func.func @transform_7(%arg0: i32) -> (i32, i32) {
    %c0_i32 = arith.constant 0 : i32
    %c0_i32_0 = arith.constant 0 : i32
    %c0_i32_1 = arith.constant 0 : i32
    return %c0_i32, %c0_i32_0 : i32, i32
  }
  func.func @transform_8(%arg0: i32) -> (i32, i32, i32) {
    %c0_i32 = arith.constant 0 : i32
    %c0_i32_0 = arith.constant 0 : i32
    %c0_i32_1 = arith.constant 0 : i32
    return %arg0, %c0_i32, %c0_i32_0 : i32, i32, i32
  }
}

</mosaic_0001>

<llo_original>
// kernel: tpu_custom_call.1
$region0: #{tpu_custom_call.1}
  #allocation0 [shape = 'u32[]', space=smem, size = 0x4, offset = 0x4, fixed_abs, tag = 'smem constant byte address 0x4 - core index']
  #allocation1 [shape = 'u32[144,128]{1,0:T(1,128)}', space=vmem, size = 0x12000, scoped, tag = 'internal scratch']
  #allocation2 [shape = 'f32[8,24,128]{2,1,0:T(8,128)}', space=vmem, size = 0x18000, scoped, tag = 'scratch operand']
  %s0 = inlined_call_operand.hbm [shape: f32[32,16,128], index: 0, kind: input, shape index: {}]
  %s1 = inlined_call_operand.hbm [shape: f32[5,128,128], index: 1, kind: input, shape index: {}]
  %s2 = inlined_call_operand.hbm [shape: f32[5,1,128], index: 2, kind: input, shape index: {}]
  %s3 = inlined_call_operand.hbm [shape: f32[12,128,128], index: 3, kind: input, shape index: {}]
  %s4 = inlined_call_operand.hbm [shape: f32[128,128], index: 4, kind: input, shape index: {}]
  %s5 = inlined_call_operand.hbm [shape: f32[128,128], index: 5, kind: input, shape index: {}]
  %s6 = inlined_call_operand.vmem [shape: f32[1,128], index: 6, kind: input, shape index: {}]
  %s7 = inlined_call_operand.hbm [shape: f32[128,128], index: 7, kind: input, shape index: {}]
  %s8 = inlined_call_operand.hbm [shape: f32[32,16,128], index: 8, kind: output, shape index: {}]
  %s9 = sld [smem:[#allocation0]]
  $region93: #{tpu_custom_call.1} parent=0
    _
  %s11 = ssub.s32 1, %s9
  %s12 = scalar_select 0, %s11, %s9
  $region1: #{tpu_custom_call.1} parent=0
    #allocation3 [shape = 'u8[131072]{0}', space=vmem, size = 0x20000, scoped, tag = 'input window, operand 0']
    #allocation4 [shape = 's32[2]{0}', space=sflag, size = 0x8, scoped, tag = 'scoped memory for tpu_custom_call.1']
    #allocation5 [shape = 's32[2]{0}', space=sflag, size = 0x8, scoped, tag = 'scoped memory for tpu_custom_call.1']
    #allocation6 [shape = 'u8[327680]{0}', space=vmem, size = 0x50000, scoped, tag = 'input window, operand 1, single buffered']
    #allocation7 [shape = 's32[1]{0}', space=sflag, size = 0x4, scoped, tag = 'scoped memory for tpu_custom_call.1']
    #allocation8 [shape = 'u8[2560]{0}', space=vmem, size = 0xc00, scoped, tag = 'input window, operand 2, single buffered']
    #allocation9 [shape = 'u8[786432]{0}', space=vmem, size = 0xc0000, scoped, tag = 'input window, operand 3, single buffered']
    #allocation10 [shape = 's32[1]{0}', space=sflag, size = 0x4, scoped, tag = 'scoped memory for tpu_custom_call.1']
    #allocation11 [shape = 'u8[65536]{0}', space=vmem, size = 0x10000, scoped, tag = 'input window, operand 4, single buffered']
    #allocation12 [shape = 'u8[65536]{0}', space=vmem, size = 0x10000, scoped, tag = 'input window, operand 5, single buffered']
    #allocation13 [shape = 's32[1]{0}', space=sflag, size = 0x4, scoped, tag = 'scoped memory for tpu_custom_call.1']
    #allocation14 [shape = 'u8[65536]{0}', space=vmem, size = 0x10000, scoped, tag = 'input window, operand 7, single buffered']
    #allocation15 [shape = 'u8[131072]{0}', space=vmem, size = 0x20000, scoped, tag = 'output window, operand 0']
    %13 = vsyncpa [#allocation4], 0
    %s14 = scalar_lea.sflag [#allocation4], 1
    %15 = vsyncpa %s14, 0
    %16 = vsyncpa [#allocation7], 0
    %17 = vsyncpa [#allocation10], 0
    %18 = vsyncpa [#allocation13], 0
    %19 = vsyncpa [#allocation5], 0
    %s20 = scalar_lea.sflag [#allocation5], 1
    %21 = vsyncpa %s20, 0
    loop: start=0, step=1, limit=6
    $region2: #{tpu_custom_call.1} parent=1 // loop_pre_header
      _
    $region3: #{tpu_custom_call.1} parent=1 // loop_header
      %s23 = sphi 0, %s27
      %p24 = scmp.ge.s32.totalorder %s23, 6
      %s33 = sphi 0, %s35
      %s36 = sphi 0, %s33
      %s37 = sphi 0, %s36
      %s53 = sphi 0, %s37
      %s57 = sphi 0, %s57
      %s59 = sphi 0, %s57
      %s60 = sphi 0, %s59
      %s74 = sphi 0, %s60
      %s78 = sphi 0, %s78
      %s80 = sphi 0, %s78
      %s81 = sphi 0, %s80
      %s95 = sphi 0, %s81
      %s99 = sphi 0, %s99
      %s101 = sphi 0, %s99
      %s102 = sphi 0, %s101
      %s116 = sphi 0, %s102
      %s120 = sphi 0, %s120
      %s122 = sphi 0, %s120
      %s123 = sphi 0, %s122
      %s137 = sphi 0, %s123
      %s141 = sphi 0, %s141
      %s143 = sphi 0, %s141
      %s144 = sphi 0, %s143
      %s158 = sphi 0, %s144
      %s162 = sphi 0, %s162
      %s164 = sphi 0, %s162
      %s165 = sphi 0, %s164
      %s179 = sphi 0, %s165
      %s183 = sphi 0, %s183
      %s185 = sphi 0, %s183
      %s186 = sphi 0, %s185
      %s200 = sphi 0, %s186
      %s206 = sphi 0, %s208
      %s209 = sphi 0, %s206
      %s210 = sphi 0, %s209
      %s226 = sphi 0, %s210
    $region4: #{tpu_custom_call.1} parent=1 // loop_header_branch
      %26 = sbr.rel (%p24) target = $region8
    $region5: #{tpu_custom_call.1} parent=1 // loop_body
      %s28 = ssub.s32 %s23, 1
      %s29 = ssub.s32 %s23, 2
      %s30 = sadd.s32 %s23, 1
      %s31 = ssub.s32 %s23, %s30
      %p32 = scmp.eq.s32.totalorder %s31, 0
      %s34 = sadd.s32 %s33, 1
      %s35 = scalar_select %p32, %s33, %s34
      %p38 = pneg %p32
      %p39 = scmp.eq.s32.totalorder %s23, 3
      %p40 = por %p38, %p39
      %p41 = scmp.ne.s32.totalorder %s33, %s36
      %p42 = scmp.eq.s32.totalorder %s23, 0
      %p43 = por %p41, %p42
      %p44 = scmp.ne.s32.totalorder %s33, %s36
      %p45 = scmp.eq.s32.totalorder %s28, 3
      %p46 = por %p44, %p45
      %p47 = scmp.ne.s32.totalorder %s36, %s37
      %p48 = scmp.eq.s32.totalorder %s28, 0
      %p49 = por %p47, %p48
      %p50 = scmp.ne.s32.totalorder %s36, %s37
      %p51 = scmp.eq.s32.totalorder %s29, 3
      %p52 = por %p50, %p51
      %p54 = scmp.ne.s32.totalorder %s37, %s53
      %p55 = scmp.eq.s32.totalorder %s29, 0
      %p56 = por %p54, %p55
      %s58 = sadd.s32 %s57, 1
      %p61 = scmp.eq.s32.totalorder %s23, 3
      %p62 = scmp.ne.s32.totalorder %s57, %s59
      %p63 = scmp.eq.s32.totalorder %s23, 0
      %p64 = por %p62, %p63
      %p65 = scmp.ne.s32.totalorder %s57, %s59
      %p66 = scmp.eq.s32.totalorder %s28, 3
      %p67 = por %p65, %p66
      %p68 = scmp.ne.s32.totalorder %s59, %s60
      %p69 = scmp.eq.s32.totalorder %s28, 0
      %p70 = por %p68, %p69
      %p71 = scmp.ne.s32.totalorder %s59, %s60
      %p72 = scmp.eq.s32.totalorder %s29, 3
      %p73 = por %p71, %p72
      %p75 = scmp.ne.s32.totalorder %s60, %s74
      %p76 = scmp.eq.s32.totalorder %s29, 0
      %p77 = por %p75, %p76
      %s79 = sadd.s32 %s78, 1
      %p82 = scmp.eq.s32.totalorder %s23, 3
      %p83 = scmp.ne.s32.totalorder %s78, %s80
      %p84 = scmp.eq.s32.totalorder %s23, 0
      %p85 = por %p83, %p84
      %p86 = scmp.ne.s32.totalorder %s78, %s80
      %p87 = scmp.eq.s32.totalorder %s28, 3
      %p88 = por %p86, %p87
      %p89 = scmp.ne.s32.totalorder %s80, %s81
      %p90 = scmp.eq.s32.totalorder %s28, 0
      %p91 = por %p89, %p90
      %p92 = scmp.ne.s32.totalorder %s80, %s81
      %p93 = scmp.eq.s32.totalorder %s29, 3
      %p94 = por %p92, %p93
      %p96 = scmp.ne.s32.totalorder %s81, %s95
      %p97 = scmp.eq.s32.totalorder %s29, 0
      %p98 = por %p96, %p97
      %s100 = sadd.s32 %s99, 1
      %p103 = scmp.eq.s32.totalorder %s23, 3
      %p104 = scmp.ne.s32.totalorder %s99, %s101
      %p105 = scmp.eq.s32.totalorder %s23, 0
      %p106 = por %p104, %p105
      %p107 = scmp.ne.s32.totalorder %s99, %s101
      %p108 = scmp.eq.s32.totalorder %s28, 3
      %p109 = por %p107, %p108
      %p110 = scmp.ne.s32.totalorder %s101, %s102
      %p111 = scmp.eq.s32.totalorder %s28, 0
      %p112 = por %p110, %p111
      %p113 = scmp.ne.s32.totalorder %s101, %s102
      %p114 = scmp.eq.s32.totalorder %s29, 3
      %p115 = por %p113, %p114
      %p117 = scmp.ne.s32.totalorder %s102, %s116
      %p118 = scmp.eq.s32.totalorder %s29, 0
      %p119 = por %p117, %p118
      %s121 = sadd.s32 %s120, 1
      %p124 = scmp.eq.s32.totalorder %s23, 3
      %p125 = scmp.ne.s32.totalorder %s120, %s122
      %p126 = scmp.eq.s32.totalorder %s23, 0
      %p127 = por %p125, %p126
      %p128 = scmp.ne.s32.totalorder %s120, %s122
      %p129 = scmp.eq.s32.totalorder %s28, 3
      %p130 = por %p128, %p129
      %p131 = scmp.ne.s32.totalorder %s122, %s123
      %p132 = scmp.eq.s32.totalorder %s28, 0
      %p133 = por %p131, %p132
      %p134 = scmp.ne.s32.totalorder %s122, %s123
      %p135 = scmp.eq.s32.totalorder %s29, 3
      %p136 = por %p134, %p135
      %p138 = scmp.ne.s32.totalorder %s123, %s137
      %p139 = scmp.eq.s32.totalorder %s29, 0
      %p140 = por %p138, %p139
      %s142 = sadd.s32 %s141, 1
      %p145 = scmp.eq.s32.totalorder %s23, 3
      %p146 = scmp.ne.s32.totalorder %s141, %s143
      %p147 = scmp.eq.s32.totalorder %s23, 0
      %p148 = por %p146, %p147
      %p149 = scmp.ne.s32.totalorder %s141, %s143
      %p150 = scmp.eq.s32.totalorder %s28, 3
      %p151 = por %p149, %p150
      %p152 = scmp.ne.s32.totalorder %s143, %s144
      %p153 = scmp.eq.s32.totalorder %s28, 0
      %p154 = por %p152, %p153
      %p155 = scmp.ne.s32.totalorder %s143, %s144
      %p156 = scmp.eq.s32.totalorder %s29, 3
      %p157 = por %p155, %p156
      %p159 = scmp.ne.s32.totalorder %s144, %s158
      %p160 = scmp.eq.s32.totalorder %s29, 0
      %p161 = por %p159, %p160
      %s163 = sadd.s32 %s162, 1
      %p166 = scmp.eq.s32.totalorder %s23, 3
      %p167 = scmp.ne.s32.totalorder %s162, %s164
      %p168 = scmp.eq.s32.totalorder %s23, 0
      %p169 = por %p167, %p168
      %p170 = scmp.ne.s32.totalorder %s162, %s164
      %p171 = scmp.eq.s32.totalorder %s28, 3
      %p172 = por %p170, %p171
      %p173 = scmp.ne.s32.totalorder %s164, %s165
      %p174 = scmp.eq.s32.totalorder %s28, 0
      %p175 = por %p173, %p174
      %p176 = scmp.ne.s32.totalorder %s164, %s165
      %p177 = scmp.eq.s32.totalorder %s29, 3
      %p178 = por %p176, %p177
      %p180 = scmp.ne.s32.totalorder %s165, %s179
      %p181 = scmp.eq.s32.totalorder %s29, 0
      %p182 = por %p180, %p181
      %s184 = sadd.s32 %s183, 1
      %p187 = scmp.eq.s32.totalorder %s23, 3
      %p188 = scmp.ne.s32.totalorder %s183, %s185
      %p189 = scmp.eq.s32.totalorder %s23, 0
      %p190 = por %p188, %p189
      %p191 = scmp.ne.s32.totalorder %s183, %s185
      %p192 = scmp.eq.s32.totalorder %s28, 3
      %p193 = por %p191, %p192
      %p194 = scmp.ne.s32.totalorder %s185, %s186
      %p195 = scmp.eq.s32.totalorder %s28, 0
      %p196 = por %p194, %p195
      %p197 = scmp.ne.s32.totalorder %s185, %s186
      %p198 = scmp.eq.s32.totalorder %s29, 3
      %p199 = por %p197, %p198
      %p201 = scmp.ne.s32.totalorder %s186, %s200
      %p202 = scmp.eq.s32.totalorder %s29, 0
      %p203 = por %p201, %p202
      %s204 = ssub.s32 %s23, %s30
      %p205 = scmp.eq.s32.totalorder %s204, 0
      %s207 = sadd.s32 %s206, 1
      %s208 = scalar_select %p205, %s206, %s207
      %p211 = pneg %p205
      %p212 = scmp.eq.s32.totalorder %s23, 3
      %p213 = por %p211, %p212
      %p214 = scmp.ne.s32.totalorder %s206, %s209
      %p215 = scmp.eq.s32.totalorder %s23, 0
      %p216 = por %p214, %p215
      %p217 = scmp.ne.s32.totalorder %s206, %s209
      %p218 = scmp.eq.s32.totalorder %s28, 3
      %p219 = por %p217, %p218
      %p220 = scmp.ne.s32.totalorder %s209, %s210
      %p221 = scmp.eq.s32.totalorder %s28, 0
      %p222 = por %p220, %p221
      %p223 = scmp.ne.s32.totalorder %s209, %s210
      %p224 = scmp.eq.s32.totalorder %s29, 3
      %p225 = por %p223, %p224
      %p227 = scmp.ne.s32.totalorder %s210, %s226
      %p228 = scmp.eq.s32.totalorder %s29, 0
      %p229 = por %p227, %p228
      %p230 = scmp.le.s32.totalorder 1, %s23
      %p231 = scmp.lt.s32.totalorder %s23, 5
      %p232 = pnand %p230, %p231
      %p233 = pneg %p232
      // Predicated region
      $region9: #{tpu_custom_call.1} parent=5 // pred_check
        _
      $region10: #{tpu_custom_call.1} parent=5 // pred_check_branch
        %235 = sbr.rel (%p232) target = $region12
      $region11: #{tpu_custom_call.1} parent=5 // pred_region
        %s236 = ssub.s32 %s23, 1
        // Predicated region
        $region13: #{tpu_custom_call.1} parent=11 // pred_check
          %p237 = pneg %p70
        $region14: #{tpu_custom_call.1} parent=11 // pred_check_branch
          %239 = sbr.rel (%p237) target = $region16
        $region15: #{tpu_custom_call.1} parent=11 // pred_region
          %s241 = ssub.s32 10240, 10240
          %242 = vsyncadd [#allocation7], %s241
          %s243 = sshll.u32 [#allocation6], 4
          %s244 = int_to_ptr.vmem [resolvable:$true] %s243
          %249 = dma.hbm_to_vmem [thread:$0]  %s1, 10240, %s244, [#allocation7], 128, 128, 8
        $region16: #{tpu_custom_call.1} parent=11 // pred_fallthru
          _
        // Predicated region
        $region17: #{tpu_custom_call.1} parent=11 // pred_check
          %p250 = pneg %p91
        $region18: #{tpu_custom_call.1} parent=11 // pred_check_branch
          %252 = sbr.rel (%p250) target = $region20
        $region19: #{tpu_custom_call.1} parent=11 // pred_region
          %s254 = ssub.s32 80, 80
          %255 = vsyncadd [#allocation7], %s254
          %s256 = sshll.u32 [#allocation8], 4
          %s257 = int_to_ptr.vmem [resolvable:$true] %s256
          %262 = dma.hbm_to_vmem [thread:$0]  %s2, 80, %s257, [#allocation7], 16, 16, 1
        $region20: #{tpu_custom_call.1} parent=11 // pred_fallthru
          _
        // Predicated region
        $region21: #{tpu_custom_call.1} parent=11 // pred_check
          %p263 = pneg %p112
        $region22: #{tpu_custom_call.1} parent=11 // pred_check_branch
          %265 = sbr.rel (%p263) target = $region24
        $region23: #{tpu_custom_call.1} parent=11 // pred_region
          %s267 = ssub.s32 24576, 24576
          %268 = vsyncadd [#allocation10], %s267
          %s269 = sshll.u32 [#allocation9], 4
          %s270 = int_to_ptr.vmem [resolvable:$true] %s269
          %275 = dma.hbm_to_vmem [thread:$0]  %s3, 24576, %s270, [#allocation10], 128, 128, 8
        $region24: #{tpu_custom_call.1} parent=11 // pred_fallthru
          _
        // Predicated region
        $region25: #{tpu_custom_call.1} parent=11 // pred_check
          %p276 = pneg %p133
        $region26: #{tpu_custom_call.1} parent=11 // pred_check_branch
          %278 = sbr.rel (%p276) target = $region28
        $region27: #{tpu_custom_call.1} parent=11 // pred_region
          %s280 = ssub.s32 2048, 2048
          %281 = vsyncadd [#allocation10], %s280
          %s282 = sshll.u32 [#allocation11], 4
          %s283 = int_to_ptr.vmem [resolvable:$true] %s282
          %288 = dma.hbm_to_vmem [thread:$0]  %s4, 2048, %s283, [#allocation10], 128, 128, 8
        $region28: #{tpu_custom_call.1} parent=11 // pred_fallthru
          _
        // Predicated region
        $region29: #{tpu_custom_call.1} parent=11 // pred_check
          %p289 = pneg %p154
        $region30: #{tpu_custom_call.1} parent=11 // pred_check_branch
          %291 = sbr.rel (%p289) target = $region32
        $region31: #{tpu_custom_call.1} parent=11 // pred_region
          %s293 = ssub.s32 2048, 2048
          %294 = vsyncadd [#allocation13], %s293
          %s295 = sshll.u32 [#allocation12], 4
          %s296 = int_to_ptr.vmem [resolvable:$true] %s295
          %301 = dma.hbm_to_vmem [thread:$0]  %s5, 2048, %s296, [#allocation13], 128, 128, 8
        $region32: #{tpu_custom_call.1} parent=11 // pred_fallthru
          _
        // Predicated region
        $region33: #{tpu_custom_call.1} parent=11 // pred_check
          %p302 = pneg %p175
        $region34: #{tpu_custom_call.1} parent=11 // pred_check_branch
          %304 = sbr.rel (%p302) target = $region36
        $region35: #{tpu_custom_call.1} parent=11 // pred_region
          _
        $region36: #{tpu_custom_call.1} parent=11 // pred_fallthru
          _
        // Predicated region
        $region37: #{tpu_custom_call.1} parent=11 // pred_check
          %p305 = pneg %p196
        $region38: #{tpu_custom_call.1} parent=11 // pred_check_branch
          %307 = sbr.rel (%p305) target = $region40
        $region39: #{tpu_custom_call.1} parent=11 // pred_region
          %s309 = ssub.s32 2048, 2048
          %310 = vsyncadd [#allocation13], %s309
          %s311 = sshll.u32 [#allocation14], 4
          %s312 = int_to_ptr.vmem [resolvable:$true] %s311
          %317 = dma.hbm_to_vmem [thread:$0]  %s7, 2048, %s312, [#allocation13], 128, 128, 8
        $region40: #{tpu_custom_call.1} parent=11 // pred_fallthru
          _
      $region12: #{tpu_custom_call.1} parent=5 // pred_fallthru
        _
      %p318 = scmp.lt.s32.totalorder %s23, 4
      // Predicated region
      $region41: #{tpu_custom_call.1} parent=5 // pred_check
        %p319 = pneg %p318
      $region42: #{tpu_custom_call.1} parent=5 // pred_check_branch
        %321 = sbr.rel (%p319) target = $region44
      $region43: #{tpu_custom_call.1} parent=5 // pred_region
        // Predicated region
        $region45: #{tpu_custom_call.1} parent=43 // pred_check
          %p322 = pneg %p43
        $region46: #{tpu_custom_call.1} parent=43 // pred_check_branch
          %324 = sbr.rel (%p322) target = $region48
        $region47: #{tpu_custom_call.1} parent=43 // pred_region
          %s325 = sand.u32 %s33, 1
          %s326 = scalar_lea.sflag [#allocation4], %s325
          %s327 = sand.u32 %s33, 1
          %s328 = smul.addr %s327, 128
          %s329 = scalar_lea.vmem [#allocation3], %s328
          %s330 = smul.u32 8, %s23
          %s332 = ssub.s32 2048, 2048
          %333 = vsyncadd %s326, %s332
          %s334 = smul.addr %s330, 2
          %s335 = smul.addr %s334, 128
          %s336 = scalar_lea.hbm %s0, %s335
          %s337 = sshll.u32 %s329, 4
          %s338 = int_to_ptr.vmem [resolvable:$true] %s337
          %343 = dma.hbm_to_vmem [thread:$0]  %s336, 2048, %s338, %s326, 128, 128, 8
        $region48: #{tpu_custom_call.1} parent=43 // pred_fallthru
          _
      $region44: #{tpu_custom_call.1} parent=5 // pred_fallthru
        _
      %p344 = scmp.le.s32.totalorder 1, %s23
      %p345 = scmp.lt.s32.totalorder %s23, 5
      %p346 = pnand %p344, %p345
      %p347 = pneg %p346
      // Predicated region
      $region49: #{tpu_custom_call.1} parent=5 // pred_check
        _
      $region50: #{tpu_custom_call.1} parent=5 // pred_check_branch
        %349 = sbr.rel (%p346) target = $region52
      $region51: #{tpu_custom_call.1} parent=5 // pred_region
        %s350 = ssub.s32 %s23, 1
        %s351 = sand.u32 %s36, 1
        %s352 = scalar_lea.sflag [#allocation4], %s351
        %s353 = sand.u32 %s36, 1
        %s354 = smul.addr %s353, 128
        %s355 = scalar_lea.vmem [#allocation3], %s354
        // Predicated region
        $region53: #{tpu_custom_call.1} parent=51 // pred_check
          %p356 = pneg %p49
        $region54: #{tpu_custom_call.1} parent=51 // pred_check_branch
          %358 = sbr.rel (%p356) target = $region56
        $region55: #{tpu_custom_call.1} parent=51 // pred_region
          %359 = dma.done %s352, 2048
        $region56: #{tpu_custom_call.1} parent=51 // pred_fallthru
          _
        // Predicated region
        $region57: #{tpu_custom_call.1} parent=51 // pred_check
          %p360 = pneg %p70
        $region58: #{tpu_custom_call.1} parent=51 // pred_check_branch
          %362 = sbr.rel (%p360) target = $region60
        $region59: #{tpu_custom_call.1} parent=51 // pred_region
          %363 = dma.done [#allocation7], 10240
        $region60: #{tpu_custom_call.1} parent=51 // pred_fallthru
          _
        // Predicated region
        $region61: #{tpu_custom_call.1} parent=51 // pred_check
          %p364 = pneg %p91
        $region62: #{tpu_custom_call.1} parent=51 // pred_check_branch
          %366 = sbr.rel (%p364) target = $region64
        $region63: #{tpu_custom_call.1} parent=51 // pred_region
          %367 = dma.done [#allocation7], 80
        $region64: #{tpu_custom_call.1} parent=51 // pred_fallthru
          _
        // Predicated region
        $region65: #{tpu_custom_call.1} parent=51 // pred_check
          %p368 = pneg %p112
        $region66: #{tpu_custom_call.1} parent=51 // pred_check_branch
          %370 = sbr.rel (%p368) target = $region68
        $region67: #{tpu_custom_call.1} parent=51 // pred_region
          %371 = dma.done [#allocation10], 24576
        $region68: #{tpu_custom_call.1} parent=51 // pred_fallthru
          _
        // Predicated region
        $region69: #{tpu_custom_call.1} parent=51 // pred_check
          %p372 = pneg %p133
        $region70: #{tpu_custom_call.1} parent=51 // pred_check_branch
          %374 = sbr.rel (%p372) target = $region72
        $region71: #{tpu_custom_call.1} parent=51 // pred_region
          %375 = dma.done [#allocation10], 2048
        $region72: #{tpu_custom_call.1} parent=51 // pred_fallthru
          _
        // Predicated region
        $region73: #{tpu_custom_call.1} parent=51 // pred_check
          %p376 = pneg %p154
        $region74: #{tpu_custom_call.1} parent=51 // pred_check_branch
          %378 = sbr.rel (%p376) target = $region76
        $region75: #{tpu_custom_call.1} parent=51 // pred_region
          %379 = dma.done [#allocation13], 2048
        $region76: #{tpu_custom_call.1} parent=51 // pred_fallthru
          _
        // Predicated region
        $region77: #{tpu_custom_call.1} parent=51 // pred_check
          %p380 = pneg %p196
        $region78: #{tpu_custom_call.1} parent=51 // pred_check_branch
          %382 = sbr.rel (%p380) target = $region80
        $region79: #{tpu_custom_call.1} parent=51 // pred_region
          %383 = dma.done [#allocation13], 2048
        $region80: #{tpu_custom_call.1} parent=51 // pred_fallthru
          _
        %s384 = sand.u32 %s36, 1
        %s385 = scalar_lea.sflag [#allocation4], %s384
        %s386 = sand.u32 %s36, 1
        %s387 = smul.addr %s386, 128
        %s388 = scalar_lea.vmem [#allocation3], %s387
        %p389 = pneg %p49
        %p390 = pneg %p46
        %p391 = pneg %p70
        %p392 = pneg %p67
        %p393 = pneg %p91
        %p394 = pneg %p88
        %p395 = pneg %p112
        %p396 = pneg %p109
        %p397 = pneg %p133
        %p398 = pneg %p130
        %p399 = pneg %p154
        %p400 = pneg %p151
        %p401 = pneg %p175
        %p402 = pneg %p172
        %p403 = pneg %p196
        %p404 = pneg %p193
        %p405 = pneg %p222
        %p406 = pneg %p219
        %s407 = sand.u32 %s209, 1
        %s408 = scalar_lea.sflag [#allocation5], %s407
        %s409 = sand.u32 %s209, 1
        %s410 = smul.addr %s409, 128
        %s411 = scalar_lea.vmem [#allocation15], %s410
        %s412 = smul.u32 8, %s28
        %s413 = smul.u32 8, %s28
        %v414 = vld [vmem:[%s355] sm:$0xff]
        %v415 = vld [vmem:[%s355 + $0x8] sm:$0xff]
        %v416 = vld [vmem:[%s355 + $0x10] sm:$0xff]
        %v417 = vld [vmem:[%s355 + $0x18] sm:$0xff]
        %v418 = vld [vmem:[%s355 + $0x20] sm:$0xff]
        %v419 = vld [vmem:[%s355 + $0x28] sm:$0xff]
        %v420 = vld [vmem:[%s355 + $0x30] sm:$0xff]
        %v421 = vld [vmem:[%s355 + $0x38] sm:$0xff]
        %v422 = vld [vmem:[%s355 + $0x40] sm:$0xff]
        %v423 = vld [vmem:[%s355 + $0x48] sm:$0xff]
        %v424 = vld [vmem:[%s355 + $0x50] sm:$0xff]
        %v425 = vld [vmem:[%s355 + $0x58] sm:$0xff]
        %v426 = vld [vmem:[%s355 + $0x60] sm:$0xff]
        %v427 = vld [vmem:[%s355 + $0x68] sm:$0xff]
        %v428 = vld [vmem:[%s355 + $0x70] sm:$0xff]
        %v429 = vld [vmem:[%s355 + $0x78] sm:$0xff]
        %v430 = vld [vmem:[#allocation12] sm:$0xff]
        %v431 = vld [vmem:[#allocation12 + $0x8] sm:$0xff]
        %v432 = vld [vmem:[#allocation12 + $0x10] sm:$0xff]
        %v433 = vld [vmem:[#allocation12 + $0x18] sm:$0xff]
        %v434 = vld [vmem:[#allocation12 + $0x20] sm:$0xff]
        %v435 = vld [vmem:[#allocation12 + $0x28] sm:$0xff]
        %v436 = vld [vmem:[#allocation12 + $0x30] sm:$0xff]
        %v437 = vld [vmem:[#allocation12 + $0x38] sm:$0xff]
        %v438 = vld [vmem:[#allocation12 + $0x40] sm:$0xff]
        %v439 = vld [vmem:[#allocation12 + $0x48] sm:$0xff]
        %v440 = vld [vmem:[#allocation12 + $0x50] sm:$0xff]
        %v441 = vld [vmem:[#allocation12 + $0x58] sm:$0xff]
        %v442 = vld [vmem:[#allocation12 + $0x60] sm:$0xff]
        %v443 = vld [vmem:[#allocation12 + $0x68] sm:$0xff]
        %v444 = vld [vmem:[#allocation12 + $0x70] sm:$0xff]
        %v445 = vld [vmem:[#allocation12 + $0x78] sm:$0xff]
        %v446 = vld [vmem:[#allocation14] sm:$0xff]
        %v447 = vld [vmem:[#allocation14 + $0x8] sm:$0xff]
        %v448 = vld [vmem:[#allocation14 + $0x10] sm:$0xff]
        %v449 = vld [vmem:[#allocation14 + $0x18] sm:$0xff]
        %v450 = vld [vmem:[#allocation14 + $0x20] sm:$0xff]
        %v451 = vld [vmem:[#allocation14 + $0x28] sm:$0xff]
        %v452 = vld [vmem:[#allocation14 + $0x30] sm:$0xff]
        %v453 = vld [vmem:[#allocation14 + $0x38] sm:$0xff]
        %v454 = vld [vmem:[#allocation14 + $0x40] sm:$0xff]
        %v455 = vld [vmem:[#allocation14 + $0x48] sm:$0xff]
        %v456 = vld [vmem:[#allocation14 + $0x50] sm:$0xff]
        %v457 = vld [vmem:[#allocation14 + $0x58] sm:$0xff]
        %v458 = vld [vmem:[#allocation14 + $0x60] sm:$0xff]
        %v459 = vld [vmem:[#allocation14 + $0x68] sm:$0xff]
        %v460 = vld [vmem:[#allocation14 + $0x70] sm:$0xff]
        %v461 = vld [vmem:[#allocation14 + $0x78] sm:$0xff]
        %462 = vmatprep.subr.mxu0 0.0
        %463 = vmatpush1.msra.mxu0 %v461
        %464 = vmatprep.subr.mxu0 0.0
        %465 = vmatpush1.msra.mxu0 %v460
        %466 = vmatprep.subr.mxu0 0.0
        %467 = vmatpush1.msra.mxu0 %v459
        %468 = vmatprep.subr.mxu0 0.0
        %469 = vmatpush1.msra.mxu0 %v458
        %470 = vmatprep.subr.mxu0 0.0
        %471 = vmatpush1.msra.mxu0 %v457
        %472 = vmatprep.subr.mxu0 0.0
        %473 = vmatpush1.msra.mxu0 %v456
        %474 = vmatprep.subr.mxu0 0.0
        %475 = vmatpush1.msra.mxu0 %v455
        %476 = vmatprep.subr.mxu0 0.0
        %477 = vmatpush1.msra.mxu0 %v454
        %478 = vmatprep.subr.mxu0 0.0
        %479 = vmatpush1.msra.mxu0 %v453
        %480 = vmatprep.subr.mxu0 0.0
        %481 = vmatpush1.msra.mxu0 %v452
        %482 = vmatprep.subr.mxu0 0.0
        %483 = vmatpush1.msra.mxu0 %v451
        %484 = vmatprep.subr.mxu0 0.0
        %485 = vmatpush1.msra.mxu0 %v450
        %486 = vmatprep.subr.mxu0 0.0
        %487 = vmatpush1.msra.mxu0 %v449
        %488 = vmatprep.subr.mxu0 0.0
        %489 = vmatpush1.msra.mxu0 %v448
        %490 = vmatprep.subr.mxu0 0.0
        %491 = vmatpush1.msra.mxu0 %v447
        %492 = vmatprep.subr.mxu0 0.0
        %493 = vmatpush1.msra.mxu0 %v446
        %494 = vmatprep.subr.mxu0 0.0
        %495 = vmatpush2.msra.mxu0 0.0
        %496 = vmatprep.subr.mxu0 0.0
        %497 = vmatpush2.msra.mxu0 0.0
        %498 = vmatprep.subr.mxu0 0.0
        %499 = vmatpush2.msra.mxu0 0.0
        %500 = vmatprep.subr.mxu0 0.0
        %501 = vmatpush2.msra.mxu0 0.0
        %502 = vmatprep.subr.mxu0 0.0
        %503 = vmatpush2.msra.mxu0 0.0
        %504 = vmatprep.subr.mxu0 0.0
        %505 = vmatpush2.msra.mxu0 0.0
        %506 = vmatprep.subr.mxu0 0.0
        %507 = vmatpush2.msra.mxu0 0.0
        %508 = vmatprep.subr.mxu0 0.0
        %509 = vmatpush2.msra.mxu0 0.0
        %510 = vmatprep.subr.mxu0 0.0
        %511 = vmatpush2.msra.mxu0 0.0
        %512 = vmatprep.subr.mxu0 0.0
        %513 = vmatpush2.msra.mxu0 0.0
        %514 = vmatprep.subr.mxu0 0.0
        %515 = vmatpush2.msra.mxu0 0.0
        %516 = vmatprep.subr.mxu0 0.0
        %517 = vmatpush2.msra.mxu0 0.0
        %518 = vmatprep.subr.mxu0 0.0
        %519 = vmatpush2.msra.mxu0 0.0
        %520 = vmatprep.subr.mxu0 0.0
        %521 = vmatpush2.msra.mxu0 0.0
        %522 = vmatprep.subr.mxu0 0.0
        %523 = vmatpush2.msra.mxu0 0.0
        %524 = vmatprep.subr.mxu0 0.0
        %525 = vmatpush2.msra.mxu0 0.0
        %526 = vmatprep.mubr.f32.mxu0 0.0
        %527 = vmatmul.mubr.f32.gmra.mxu0 %v414
        %v528 = vpop.f32.mrf.mxu0
        %v529 = vadd.f32 0.0, %v528
        %v530 = vpop.f32.mrf.mxu0
        %531 = vmatprep.mubr.f32.mxu0 0.0
        %532 = vmatmul.mubr.f32.gmra.mxu0 %v415
        %v533 = vpop.f32.mrf.mxu0
        %v534 = vadd.f32 0.0, %v533
        %v535 = vpop.f32.mrf.mxu0
        %536 = vmatprep.mubr.f32.mxu0 0.0
        %537 = vmatmul.mubr.f32.gmra.mxu0 %v416
        %v538 = vpop.f32.mrf.mxu0
        %v539 = vadd.f32 0.0, %v538
        %v540 = vpop.f32.mrf.mxu0
        %541 = vmatprep.mubr.f32.mxu0 0.0
        %542 = vmatmul.mubr.f32.gmra.mxu0 %v417
        %v543 = vpop.f32.mrf.mxu0
        %v544 = vadd.f32 0.0, %v543
        %v545 = vpop.f32.mrf.mxu0
        %546 = vmatprep.mubr.f32.mxu0 0.0
        %547 = vmatmul.mubr.f32.gmra.mxu0 %v418
        %v548 = vpop.f32.mrf.mxu0
        %v549 = vadd.f32 0.0, %v548
        %v550 = vpop.f32.mrf.mxu0
        %551 = vmatprep.mubr.f32.mxu0 0.0
        %552 = vmatmul.mubr.f32.gmra.mxu0 %v419
        %v553 = vpop.f32.mrf.mxu0
        %v554 = vadd.f32 0.0, %v553
        %v555 = vpop.f32.mrf.mxu0
        %556 = vmatprep.mubr.f32.mxu0 0.0
        %557 = vmatmul.mubr.f32.gmra.mxu0 %v420
        %v558 = vpop.f32.mrf.mxu0
        %v559 = vadd.f32 0.0, %v558
        %v560 = vpop.f32.mrf.mxu0
        %561 = vmatprep.mubr.f32.mxu0 0.0
        %562 = vmatmul.mubr.f32.gmra.mxu0 %v421
        %v563 = vpop.f32.mrf.mxu0
        %v564 = vadd.f32 0.0, %v563
        %v565 = vpop.f32.mrf.mxu0
        %566 = vmatprep.mubr.f32.mxu0 0.0
        %567 = vmatmul.mubr.f32.gmra.mxu0 %v422
        %v568 = vpop.f32.mrf.mxu0
        %v569 = vadd.f32 0.0, %v568
        %v570 = vpop.f32.mrf.mxu0
        %571 = vmatprep.mubr.f32.mxu0 0.0
        %572 = vmatmul.mubr.f32.gmra.mxu0 %v423
        %v573 = vpop.f32.mrf.mxu0
        %v574 = vadd.f32 0.0, %v573
        %v575 = vpop.f32.mrf.mxu0
        %576 = vmatprep.mubr.f32.mxu0 0.0
        %577 = vmatmul.mubr.f32.gmra.mxu0 %v424
        %v578 = vpop.f32.mrf.mxu0
        %v579 = vadd.f32 0.0, %v578
        %v580 = vpop.f32.mrf.mxu0
        %581 = vmatprep.mubr.f32.mxu0 0.0
        %582 = vmatmul.mubr.f32.gmra.mxu0 %v425
        %v583 = vpop.f32.mrf.mxu0
        %v584 = vadd.f32 0.0, %v583
        %v585 = vpop.f32.mrf.mxu0
        %586 = vmatprep.mubr.f32.mxu0 0.0
        %587 = vmatmul.mubr.f32.gmra.mxu0 %v426
        %v588 = vpop.f32.mrf.mxu0
        %v589 = vadd.f32 0.0, %v588
        %v590 = vpop.f32.mrf.mxu0
        %591 = vmatprep.mubr.f32.mxu0 0.0
        %592 = vmatmul.mubr.f32.gmra.mxu0 %v427
        %v593 = vpop.f32.mrf.mxu0
        %v594 = vadd.f32 0.0, %v593
        %v595 = vpop.f32.mrf.mxu0
        %596 = vmatprep.mubr.f32.mxu0 0.0
        %597 = vmatmul.mubr.f32.gmra.mxu0 %v428
        %v598 = vpop.f32.mrf.mxu0
        %v599 = vadd.f32 0.0, %v598
        %v600 = vpop.f32.mrf.mxu0
        %601 = vmatprep.mubr.f32.mxu0 0.0
        %602 = vmatmul.mubr.f32.gmra.mxu0 %v429
        %v603 = vpop.f32.mrf.mxu0
        %v604 = vadd.f32 0.0, %v603
        %v605 = vpop.f32.mrf.mxu0
        %606 = vdwg.mxu0
        %607 = vmatprep.subr.mxu0 0.0
        %608 = vmatpush1.msra.mxu0 %v445
        %609 = vmatprep.subr.mxu0 0.0
        %610 = vmatpush1.msra.mxu0 %v444
        %611 = vmatprep.subr.mxu0 0.0
        %612 = vmatpush1.msra.mxu0 %v443
        %613 = vmatprep.subr.mxu0 0.0
        %614 = vmatpush1.msra.mxu0 %v442
        %615 = vmatprep.subr.mxu0 0.0
        %616 = vmatpush1.msra.mxu0 %v441
        %617 = vmatprep.subr.mxu0 0.0
        %618 = vmatpush1.msra.mxu0 %v440
        %619 = vmatprep.subr.mxu0 0.0
        %620 = vmatpush1.msra.mxu0 %v439
        %621 = vmatprep.subr.mxu0 0.0
        %622 = vmatpush1.msra.mxu0 %v438
        %623 = vmatprep.subr.mxu0 0.0
        %624 = vmatpush1.msra.mxu0 %v437
        %625 = vmatprep.subr.mxu0 0.0
        %626 = vmatpush1.msra.mxu0 %v436
        %627 = vmatprep.subr.mxu0 0.0
        %628 = vmatpush1.msra.mxu0 %v435
        %629 = vmatprep.subr.mxu0 0.0
        %630 = vmatpush1.msra.mxu0 %v434
        %631 = vmatprep.subr.mxu0 0.0
        %632 = vmatpush1.msra.mxu0 %v433
        %633 = vmatprep.subr.mxu0 0.0
        %634 = vmatpush1.msra.mxu0 %v432
        %635 = vmatprep.subr.mxu0 0.0
        %636 = vmatpush1.msra.mxu0 %v431
        %637 = vmatprep.subr.mxu0 0.0
        %638 = vmatpush1.msra.mxu0 %v430
        %639 = vmatprep.subr.mxu0 0.0
        %640 = vmatpush2.msra.mxu0 0.0
        %641 = vmatprep.subr.mxu0 0.0
        %642 = vmatpush2.msra.mxu0 0.0
        %643 = vmatprep.subr.mxu0 0.0
        %644 = vmatpush2.msra.mxu0 0.0
        %645 = vmatprep.subr.mxu0 0.0
        %646 = vmatpush2.msra.mxu0 0.0
        %647 = vmatprep.subr.mxu0 0.0
        %648 = vmatpush2.msra.mxu0 0.0
        %649 = vmatprep.subr.mxu0 0.0
        %650 = vmatpush2.msra.mxu0 0.0
        %651 = vmatprep.subr.mxu0 0.0
        %652 = vmatpush2.msra.mxu0 0.0
        %653 = vmatprep.subr.mxu0 0.0
        %654 = vmatpush2.msra.mxu0 0.0
        %655 = vmatprep.subr.mxu0 0.0
        %656 = vmatpush2.msra.mxu0 0.0
        %657 = vmatprep.subr.mxu0 0.0
        %658 = vmatpush2.msra.mxu0 0.0
        %659 = vmatprep.subr.mxu0 0.0
        %660 = vmatpush2.msra.mxu0 0.0
        %661 = vmatprep.subr.mxu0 0.0
        %662 = vmatpush2.msra.mxu0 0.0
        %663 = vmatprep.subr.mxu0 0.0
        %664 = vmatpush2.msra.mxu0 0.0
        %665 = vmatprep.subr.mxu0 0.0
        %666 = vmatpush2.msra.mxu0 0.0
        %667 = vmatprep.subr.mxu0 0.0
        %668 = vmatpush2.msra.mxu0 0.0
        %669 = vmatprep.subr.mxu0 0.0
        %670 = vmatpush2.msra.mxu0 0.0
        %671 = vmatprep.mubr.f32.mxu0 0.0
        %672 = vmatmul.mubr.f32.gmra.mxu0 %v414
        %v673 = vpop.f32.mrf.mxu0
        %v674 = vadd.f32 %v529, %v673
        %v675 = vpop.f32.mrf.mxu0
        %676 = vmatprep.mubr.f32.mxu0 0.0
        %677 = vmatmul.mubr.f32.gmra.mxu0 %v415
        %v678 = vpop.f32.mrf.mxu0
        %v679 = vadd.f32 %v534, %v678
        %v680 = vpop.f32.mrf.mxu0
        %681 = vmatprep.mubr.f32.mxu0 0.0
        %682 = vmatmul.mubr.f32.gmra.mxu0 %v416
        %v683 = vpop.f32.mrf.mxu0
        %v684 = vadd.f32 %v539, %v683
        %v685 = vpop.f32.mrf.mxu0
        %686 = vmatprep.mubr.f32.mxu0 0.0
        %687 = vmatmul.mubr.f32.gmra.mxu0 %v417
        %v688 = vpop.f32.mrf.mxu0
        %v689 = vadd.f32 %v544, %v688
        %v690 = vpop.f32.mrf.mxu0
        %691 = vmatprep.mubr.f32.mxu0 0.0
        %692 = vmatmul.mubr.f32.gmra.mxu0 %v418
        %v693 = vpop.f32.mrf.mxu0
        %v694 = vadd.f32 %v549, %v693
        %v695 = vpop.f32.mrf.mxu0
        %696 = vmatprep.mubr.f32.mxu0 0.0
        %697 = vmatmul.mubr.f32.gmra.mxu0 %v419
        %v698 = vpop.f32.mrf.mxu0
        %v699 = vadd.f32 %v554, %v698
        %v700 = vpop.f32.mrf.mxu0
        %701 = vmatprep.mubr.f32.mxu0 0.0
        %702 = vmatmul.mubr.f32.gmra.mxu0 %v420
        %v703 = vpop.f32.mrf.mxu0
        %v704 = vadd.f32 %v559, %v703
        %v705 = vpop.f32.mrf.mxu0
        %706 = vmatprep.mubr.f32.mxu0 0.0
        %707 = vmatmul.mubr.f32.gmra.mxu0 %v421
        %v708 = vpop.f32.mrf.mxu0
        %v709 = vadd.f32 %v564, %v708
        %v710 = vpop.f32.mrf.mxu0
        %711 = vmatprep.mubr.f32.mxu0 0.0
        %712 = vmatmul.mubr.f32.gmra.mxu0 %v422
        %v713 = vpop.f32.mrf.mxu0
        %v714 = vadd.f32 %v569, %v713
        %v715 = vpop.f32.mrf.mxu0
        %716 = vmatprep.mubr.f32.mxu0 0.0
        %717 = vmatmul.mubr.f32.gmra.mxu0 %v423
        %v718 = vpop.f32.mrf.mxu0
        %v719 = vadd.f32 %v574, %v718
        %v720 = vpop.f32.mrf.mxu0
        %721 = vmatprep.mubr.f32.mxu0 0.0
        %722 = vmatmul.mubr.f32.gmra.mxu0 %v424
        %v723 = vpop.f32.mrf.mxu0
        %v724 = vadd.f32 %v579, %v723
        %v725 = vpop.f32.mrf.mxu0
        %726 = vmatprep.mubr.f32.mxu0 0.0
        %727 = vmatmul.mubr.f32.gmra.mxu0 %v425
        %v728 = vpop.f32.mrf.mxu0
        %v729 = vadd.f32 %v584, %v728
        %v730 = vpop.f32.mrf.mxu0
        %731 = vmatprep.mubr.f32.mxu0 0.0
        %732 = vmatmul.mubr.f32.gmra.mxu0 %v426
        %v733 = vpop.f32.mrf.mxu0
        %v734 = vadd.f32 %v589, %v733
        %v735 = vpop.f32.mrf.mxu0
        %736 = vmatprep.mubr.f32.mxu0 0.0
        %737 = vmatmul.mubr.f32.gmra.mxu0 %v427
        %v738 = vpop.f32.mrf.mxu0
        %v739 = vadd.f32 %v594, %v738
        %v740 = vpop.f32.mrf.mxu0
        %741 = vmatprep.mubr.f32.mxu0 0.0
        %742 = vmatmul.mubr.f32.gmra.mxu0 %v428
        %v743 = vpop.f32.mrf.mxu0
        %v744 = vadd.f32 %v599, %v743
        %v745 = vpop.f32.mrf.mxu0
        %746 = vmatprep.mubr.f32.mxu0 0.0
        %747 = vmatmul.mubr.f32.gmra.mxu0 %v429
        %v748 = vpop.f32.mrf.mxu0
        %v749 = vadd.f32 %v604, %v748
        %v750 = vpop.f32.mrf.mxu0
        %751 = vdwg.mxu0
        %v752 = vld [vmem:[%s6] sm:$0x1]
        %v754 = vlaneseq
        %v755 = vshrl.u32 %v754, 7
        %v756 = vsub.s32 0, %v755
        %v757 = vrot.slane %v752, %v756
        %v759 = vadd.f32 %v674, %v757
        %v760 = vadd.f32 %v679, %v757
        %v761 = vadd.f32 %v684, %v757
        %v762 = vadd.f32 %v689, %v757
        %v763 = vadd.f32 %v694, %v757
        %v764 = vadd.f32 %v699, %v757
        %v765 = vadd.f32 %v704, %v757
        %v766 = vadd.f32 %v709, %v757
        %v767 = vadd.f32 %v714, %v757
        %v768 = vadd.f32 %v719, %v757
        %v769 = vadd.f32 %v724, %v757
        %v770 = vadd.f32 %v729, %v757
        %v771 = vadd.f32 %v734, %v757
        %v772 = vadd.f32 %v739, %v757
        %v773 = vadd.f32 %v744, %v757
        %v774 = vadd.f32 %v749, %v757
        %775 = vst [vmem:[#allocation2] sm:$0xf] 0.0
        %776 = vst [vmem:[#allocation2 + $0x18] sm:$0xf] 0.0
        %777 = vst [vmem:[#allocation2 + $0x30] sm:$0xf] 0.0
        %778 = vst [vmem:[#allocation2 + $0x48] sm:$0xf] 0.0
        %779 = vst [vmem:[#allocation2 + $0x60] sm:$0xf] 0.0
        %780 = vst [vmem:[#allocation2 + $0x78] sm:$0xf] 0.0
        %781 = vst [vmem:[#allocation2 + $0x90] sm:$0xf] 0.0
        %782 = vst [vmem:[#allocation2 + $0xa8] sm:$0xf] 0.0
        %783 = vst [vmem:[#allocation2 + $0x14] sm:$0xf] 0.0
        %784 = vst [vmem:[#allocation2 + $0x2c] sm:$0xf] 0.0
        %785 = vst [vmem:[#allocation2 + $0x44] sm:$0xf] 0.0
        %786 = vst [vmem:[#allocation2 + $0x5c] sm:$0xf] 0.0
        %787 = vst [vmem:[#allocation2 + $0x74] sm:$0xf] 0.0
        %788 = vst [vmem:[#allocation2 + $0x8c] sm:$0xf] 0.0
        %789 = vst [vmem:[#allocation2 + $0xa4] sm:$0xf] 0.0
        %790 = vst [vmem:[#allocation2 + $0xbc] sm:$0xf] 0.0
        %v791 = vld [vmem:[#allocation6] sm:$0xff]
        %v792 = vld [vmem:[#allocation6 + $0x8] sm:$0xff]
        %v793 = vld [vmem:[#allocation6 + $0x10] sm:$0xff]
        %v794 = vld [vmem:[#allocation6 + $0x18] sm:$0xff]
        %v795 = vld [vmem:[#allocation6 + $0x20] sm:$0xff]
        %v796 = vld [vmem:[#allocation6 + $0x28] sm:$0xff]
        %v797 = vld [vmem:[#allocation6 + $0x30] sm:$0xff]
        %v798 = vld [vmem:[#allocation6 + $0x38] sm:$0xff]
        %v799 = vld [vmem:[#allocation6 + $0x40] sm:$0xff]
        %v800 = vld [vmem:[#allocation6 + $0x48] sm:$0xff]
        %v801 = vld [vmem:[#allocation6 + $0x50] sm:$0xff]
        %v802 = vld [vmem:[#allocation6 + $0x58] sm:$0xff]
        %v803 = vld [vmem:[#allocation6 + $0x60] sm:$0xff]
        %v804 = vld [vmem:[#allocation6 + $0x68] sm:$0xff]
        %v805 = vld [vmem:[#allocation6 + $0x70] sm:$0xff]
        %v806 = vld [vmem:[#allocation6 + $0x78] sm:$0xff]
        %v807 = vld [vmem:[#allocation8] sm:$0x1]
        %v809 = vlaneseq
        %v810 = vshrl.u32 %v809, 7
        %v811 = vsub.s32 0, %v810
        %v812 = vrot.slane %v807, %v811
        %814 = vmatprep.subr.mxu0 0.0
        %815 = vmatpush1.msra.mxu0 %v806
        %816 = vmatprep.subr.mxu0 0.0
        %817 = vmatpush1.msra.mxu0 %v805
        %818 = vmatprep.subr.mxu0 0.0
        %819 = vmatpush1.msra.mxu0 %v804
        %820 = vmatprep.subr.mxu0 0.0
        %821 = vmatpush1.msra.mxu0 %v803
        %822 = vmatprep.subr.mxu0 0.0
        %823 = vmatpush1.msra.mxu0 %v802
        %824 = vmatprep.subr.mxu0 0.0
        %825 = vmatpush1.msra.mxu0 %v801
        %826 = vmatprep.subr.mxu0 0.0
        %827 = vmatpush1.msra.mxu0 %v800
        %828 = vmatprep.subr.mxu0 0.0
        %829 = vmatpush1.msra.mxu0 %v799
        %830 = vmatprep.subr.mxu0 0.0
        %831 = vmatpush1.msra.mxu0 %v798
        %832 = vmatprep.subr.mxu0 0.0
        %833 = vmatpush1.msra.mxu0 %v797
        %834 = vmatprep.subr.mxu0 0.0
        %835 = vmatpush1.msra.mxu0 %v796
        %836 = vmatprep.subr.mxu0 0.0
        %837 = vmatpush1.msra.mxu0 %v795
        %838 = vmatprep.subr.mxu0 0.0
        %839 = vmatpush1.msra.mxu0 %v794
        %840 = vmatprep.subr.mxu0 0.0
        %841 = vmatpush1.msra.mxu0 %v793
        %842 = vmatprep.subr.mxu0 0.0
        %843 = vmatpush1.msra.mxu0 %v792
        %844 = vmatprep.subr.mxu0 0.0
        %845 = vmatpush1.msra.mxu0 %v791
        %846 = vmatprep.subr.mxu0 0.0
        %847 = vmatpush2.msra.mxu0 0.0
        %848 = vmatprep.subr.mxu0 0.0
        %849 = vmatpush2.msra.mxu0 0.0
        %850 = vmatprep.subr.mxu0 0.0
        %851 = vmatpush2.msra.mxu0 0.0
        %852 = vmatprep.subr.mxu0 0.0
        %853 = vmatpush2.msra.mxu0 0.0
        %854 = vmatprep.subr.mxu0 0.0
        %855 = vmatpush2.msra.mxu0 0.0
        %856 = vmatprep.subr.mxu0 0.0
        %857 = vmatpush2.msra.mxu0 0.0
        %858 = vmatprep.subr.mxu0 0.0
        %859 = vmatpush2.msra.mxu0 0.0
        %860 = vmatprep.subr.mxu0 0.0
        %861 = vmatpush2.msra.mxu0 0.0
        %862 = vmatprep.subr.mxu0 0.0
        %863 = vmatpush2.msra.mxu0 0.0
        %864 = vmatprep.subr.mxu0 0.0
        %865 = vmatpush2.msra.mxu0 0.0
        %866 = vmatprep.subr.mxu0 0.0
        %867 = vmatpush2.msra.mxu0 0.0
        %868 = vmatprep.subr.mxu0 0.0
        %869 = vmatpush2.msra.mxu0 0.0
        %870 = vmatprep.subr.mxu0 0.0
        %871 = vmatpush2.msra.mxu0 0.0
        %872 = vmatprep.subr.mxu0 0.0
        %873 = vmatpush2.msra.mxu0 0.0
        %874 = vmatprep.subr.mxu0 0.0
        %875 = vmatpush2.msra.mxu0 0.0
        %876 = vmatprep.subr.mxu0 0.0
        %877 = vmatpush2.msra.mxu0 0.0
        %878 = vmatprep.mubr.f32.mxu0 0.0
        %879 = vmatmul.mubr.f32.gmra.mxu0 %v414
        %v880 = vpop.f32.mrf.mxu0
        %v881 = vadd.f32 %v812, %v880
        %v882 = vpop.f32.mrf.mxu0
        %883 = vmatprep.mubr.f32.mxu0 0.0
        %884 = vmatmul.mubr.f32.gmra.mxu0 %v415
        %v885 = vpop.f32.mrf.mxu0
        %v886 = vadd.f32 %v812, %v885
        %v887 = vpop.f32.mrf.mxu0
        %888 = vmatprep.mubr.f32.mxu0 0.0
        %889 = vmatmul.mubr.f32.gmra.mxu0 %v416
        %v890 = vpop.f32.mrf.mxu0
        %v891 = vadd.f32 %v812, %v890
        %v892 = vpop.f32.mrf.mxu0
        %893 = vmatprep.mubr.f32.mxu0 0.0
        %894 = vmatmul.mubr.f32.gmra.mxu0 %v417
        %v895 = vpop.f32.mrf.mxu0
        %v896 = vadd.f32 %v812, %v895
        %v897 = vpop.f32.mrf.mxu0
        %898 = vmatprep.mubr.f32.mxu0 0.0
        %899 = vmatmul.mubr.f32.gmra.mxu0 %v418
        %v900 = vpop.f32.mrf.mxu0
        %v901 = vadd.f32 %v812, %v900
        %v902 = vpop.f32.mrf.mxu0
        %903 = vmatprep.mubr.f32.mxu0 0.0
        %904 = vmatmul.mubr.f32.gmra.mxu0 %v419
        %v905 = vpop.f32.mrf.mxu0
        %v906 = vadd.f32 %v812, %v905
        %v907 = vpop.f32.mrf.mxu0
        %908 = vmatprep.mubr.f32.mxu0 0.0
        %909 = vmatmul.mubr.f32.gmra.mxu0 %v420
        %v910 = vpop.f32.mrf.mxu0
        %v911 = vadd.f32 %v812, %v910
        %v912 = vpop.f32.mrf.mxu0
        %913 = vmatprep.mubr.f32.mxu0 0.0
        %914 = vmatmul.mubr.f32.gmra.mxu0 %v421
        %v915 = vpop.f32.mrf.mxu0
        %v916 = vadd.f32 %v812, %v915
        %v917 = vpop.f32.mrf.mxu0
        %918 = vmatprep.mubr.f32.mxu0 0.0
        %919 = vmatmul.mubr.f32.gmra.mxu0 %v422
        %v920 = vpop.f32.mrf.mxu0
        %v921 = vadd.f32 %v812, %v920
        %v922 = vpop.f32.mrf.mxu0
        %923 = vmatprep.mubr.f32.mxu0 0.0
        %924 = vmatmul.mubr.f32.gmra.mxu0 %v423
        %v925 = vpop.f32.mrf.mxu0
        %v926 = vadd.f32 %v812, %v925
        %v927 = vpop.f32.mrf.mxu0
        %928 = vmatprep.mubr.f32.mxu0 0.0
        %929 = vmatmul.mubr.f32.gmra.mxu0 %v424
        %v930 = vpop.f32.mrf.mxu0
        %v931 = vadd.f32 %v812, %v930
        %v932 = vpop.f32.mrf.mxu0
        %933 = vmatprep.mubr.f32.mxu0 0.0
        %934 = vmatmul.mubr.f32.gmra.mxu0 %v425
        %v935 = vpop.f32.mrf.mxu0
        %v936 = vadd.f32 %v812, %v935
        %v937 = vpop.f32.mrf.mxu0
        %938 = vmatprep.mubr.f32.mxu0 0.0
        %939 = vmatmul.mubr.f32.gmra.mxu0 %v426
        %v940 = vpop.f32.mrf.mxu0
        %v941 = vadd.f32 %v812, %v940
        %v942 = vpop.f32.mrf.mxu0
        %943 = vmatprep.mubr.f32.mxu0 0.0
        %944 = vmatmul.mubr.f32.gmra.mxu0 %v427
        %v945 = vpop.f32.mrf.mxu0
        %v946 = vadd.f32 %v812, %v945
        %v947 = vpop.f32.mrf.mxu0
        %948 = vmatprep.mubr.f32.mxu0 0.0
        %949 = vmatmul.mubr.f32.gmra.mxu0 %v428
        %v950 = vpop.f32.mrf.mxu0
        %v951 = vadd.f32 %v812, %v950
        %v952 = vpop.f32.mrf.mxu0
        %953 = vmatprep.mubr.f32.mxu0 0.0
        %954 = vmatmul.mubr.f32.gmra.mxu0 %v429
        %v955 = vpop.f32.mrf.mxu0
        %v956 = vadd.f32 %v812, %v955
        %v957 = vpop.f32.mrf.mxu0
        %958 = vdwg.mxu0
        %v959 = vmax.f32 %v881, 0.0
        %v960 = vmax.f32 %v886, 0.0
        %v961 = vmax.f32 %v891, 0.0
        %v962 = vmax.f32 %v896, 0.0
        %v963 = vmax.f32 %v901, 0.0
        %v964 = vmax.f32 %v906, 0.0
        %v965 = vmax.f32 %v911, 0.0
        %v966 = vmax.f32 %v916, 0.0
        %v967 = vmax.f32 %v921, 0.0
        %v968 = vmax.f32 %v926, 0.0
        %v969 = vmax.f32 %v931, 0.0
        %v970 = vmax.f32 %v936, 0.0
        %v971 = vmax.f32 %v941, 0.0
        %v972 = vmax.f32 %v946, 0.0
        %v973 = vmax.f32 %v951, 0.0
        %v974 = vmax.f32 %v956, 0.0
        %975 = vst [vmem:[#allocation2 + $0x4] sm:$0xff] %v959
        %976 = vst [vmem:[#allocation2 + $0xc] sm:$0xff] %v960
        %977 = vst [vmem:[#allocation2 + $0x1c] sm:$0xff] %v961
        %978 = vst [vmem:[#allocation2 + $0x24] sm:$0xff] %v962
        %979 = vst [vmem:[#allocation2 + $0x34] sm:$0xff] %v963
        %980 = vst [vmem:[#allocation2 + $0x3c] sm:$0xff] %v964
        %981 = vst [vmem:[#allocation2 + $0x4c] sm:$0xff] %v965
        %982 = vst [vmem:[#allocation2 + $0x54] sm:$0xff] %v966
        %983 = vst [vmem:[#allocation2 + $0x64] sm:$0xff] %v967
        %984 = vst [vmem:[#allocation2 + $0x6c] sm:$0xff] %v968
        %985 = vst [vmem:[#allocation2 + $0x7c] sm:$0xff] %v969
        %986 = vst [vmem:[#allocation2 + $0x84] sm:$0xff] %v970
        %987 = vst [vmem:[#allocation2 + $0x94] sm:$0xff] %v971
        %988 = vst [vmem:[#allocation2 + $0x9c] sm:$0xff] %v972
        %989 = vst [vmem:[#allocation2 + $0xac] sm:$0xff] %v973
        %990 = vst [vmem:[#allocation2 + $0xb4] sm:$0xff] %v974
        %v991 = vld [vmem:[#allocation2 + $0x3] sm:$0xff]
        %v992 = vld [vmem:[#allocation2 + $0xb] sm:$0xff]
        %v993 = vld [vmem:[#allocation2 + $0x1b] sm:$0xff]
        %v994 = vld [vmem:[#allocation2 + $0x23] sm:$0xff]
        %v995 = vld [vmem:[#allocation2 + $0x33] sm:$0xff]
        %v996 = vld [vmem:[#allocation2 + $0x3b] sm:$0xff]
        %v997 = vld [vmem:[#allocation2 + $0x4b] sm:$0xff]
        %v998 = vld [vmem:[#allocation2 + $0x53] sm:$0xff]
        %v999 = vld [vmem:[#allocation2 + $0x63] sm:$0xff]
        %v1000 = vld [vmem:[#allocation2 + $0x6b] sm:$0xff]
        %v1001 = vld [vmem:[#allocation2 + $0x7b] sm:$0xff]
        %v1002 = vld [vmem:[#allocation2 + $0x83] sm:$0xff]
        %v1003 = vld [vmem:[#allocation2 + $0x93] sm:$0xff]
        %v1004 = vld [vmem:[#allocation2 + $0x9b] sm:$0xff]
        %v1005 = vld [vmem:[#allocation2 + $0xab] sm:$0xff]
        %v1006 = vld [vmem:[#allocation2 + $0xb3] sm:$0xff]
        %v1007 = vld [vmem:[#allocation9] sm:$0xff]
        %v1008 = vld [vmem:[#allocation9 + $0x8] sm:$0xff]
        %v1009 = vld [vmem:[#allocation9 + $0x10] sm:$0xff]
        %v1010 = vld [vmem:[#allocation9 + $0x18] sm:$0xff]
        %v1011 = vld [vmem:[#allocation9 + $0x20] sm:$0xff]
        %v1012 = vld [vmem:[#allocation9 + $0x28] sm:$0xff]
        %v1013 = vld [vmem:[#allocation9 + $0x30] sm:$0xff]
        %v1014 = vld [vmem:[#allocation9 + $0x38] sm:$0xff]
        %v1015 = vld [vmem:[#allocation9 + $0x40] sm:$0xff]
        %v1016 = vld [vmem:[#allocation9 + $0x48] sm:$0xff]
        %v1017 = vld [vmem:[#allocation9 + $0x50] sm:$0xff]
        %v1018 = vld [vmem:[#allocation9 + $0x58] sm:$0xff]
        %v1019 = vld [vmem:[#allocation9 + $0x60] sm:$0xff]
        %v1020 = vld [vmem:[#allocation9 + $0x68] sm:$0xff]
        %v1021 = vld [vmem:[#allocation9 + $0x70] sm:$0xff]
        %v1022 = vld [vmem:[#allocation9 + $0x78] sm:$0xff]
        %v1023 = vld [vmem:[#allocation2 + $0x4] sm:$0xff]
        %v1024 = vld [vmem:[#allocation2 + $0xc] sm:$0xff]
        %v1025 = vld [vmem:[#allocation2 + $0x1c] sm:$0xff]
        %v1026 = vld [vmem:[#allocation2 + $0x24] sm:$0xff]
        %v1027 = vld [vmem:[#allocation2 + $0x34] sm:$0xff]
        %v1028 = vld [vmem:[#allocation2 + $0x3c] sm:$0xff]
        %v1029 = vld [vmem:[#allocation2 + $0x4c] sm:$0xff]
        %v1030 = vld [vmem:[#allocation2 + $0x54] sm:$0xff]
        %v1031 = vld [vmem:[#allocation2 + $0x64] sm:$0xff]
        %v1032 = vld [vmem:[#allocation2 + $0x6c] sm:$0xff]
        %v1033 = vld [vmem:[#allocation2 + $0x7c] sm:$0xff]
        %v1034 = vld [vmem:[#allocation2 + $0x84] sm:$0xff]
        %v1035 = vld [vmem:[#allocation2 + $0x94] sm:$0xff]
        %v1036 = vld [vmem:[#allocation2 + $0x9c] sm:$0xff]
        %v1037 = vld [vmem:[#allocation2 + $0xac] sm:$0xff]
        %v1038 = vld [vmem:[#allocation2 + $0xb4] sm:$0xff]
        %s1039 = scalar_lea.vmem [#allocation9], 128
        %v1040 = vld [vmem:[%s1039] sm:$0xff]
        %v1041 = vld [vmem:[%s1039 + $0x8] sm:$0xff]
        %v1042 = vld [vmem:[%s1039 + $0x10] sm:$0xff]
        %v1043 = vld [vmem:[%s1039 + $0x18] sm:$0xff]
        %v1044 = vld [vmem:[%s1039 + $0x20] sm:$0xff]
        %v1045 = vld [vmem:[%s1039 + $0x28] sm:$0xff]
        %v1046 = vld [vmem:[%s1039 + $0x30] sm:$0xff]
        %v1047 = vld [vmem:[%s1039 + $0x38] sm:$0xff]
        %v1048 = vld [vmem:[%s1039 + $0x40] sm:$0xff]
        %v1049 = vld [vmem:[%s1039 + $0x48] sm:$0xff]
        %v1050 = vld [vmem:[%s1039 + $0x50] sm:$0xff]
        %v1051 = vld [vmem:[%s1039 + $0x58] sm:$0xff]
        %v1052 = vld [vmem:[%s1039 + $0x60] sm:$0xff]
        %v1053 = vld [vmem:[%s1039 + $0x68] sm:$0xff]
        %v1054 = vld [vmem:[%s1039 + $0x70] sm:$0xff]
        %v1055 = vld [vmem:[%s1039 + $0x78] sm:$0xff]
        %1056 = vmatprep.subr.mxu0 0.0
        %1057 = vmatpush1.msra.mxu0 %v1055
        %1058 = vmatprep.subr.mxu0 0.0
        %1059 = vmatpush1.msra.mxu0 %v1054
        %1060 = vmatprep.subr.mxu0 0.0
        %1061 = vmatpush1.msra.mxu0 %v1053
        %1062 = vmatprep.subr.mxu0 0.0
        %1063 = vmatpush1.msra.mxu0 %v1052
        %1064 = vmatprep.subr.mxu0 0.0
        %1065 = vmatpush1.msra.mxu0 %v1051
        %1066 = vmatprep.subr.mxu0 0.0
        %1067 = vmatpush1.msra.mxu0 %v1050
        %1068 = vmatprep.subr.mxu0 0.0
        %1069 = vmatpush1.msra.mxu0 %v1049
        %1070 = vmatprep.subr.mxu0 0.0
        %1071 = vmatpush1.msra.mxu0 %v1048
        %1072 = vmatprep.subr.mxu0 0.0
        %1073 = vmatpush1.msra.mxu0 %v1047
        %1074 = vmatprep.subr.mxu0 0.0
        %1075 = vmatpush1.msra.mxu0 %v1046
        %1076 = vmatprep.subr.mxu0 0.0
        %1077 = vmatpush1.msra.mxu0 %v1045
        %1078 = vmatprep.subr.mxu0 0.0
        %1079 = vmatpush1.msra.mxu0 %v1044
        %1080 = vmatprep.subr.mxu0 0.0
        %1081 = vmatpush1.msra.mxu0 %v1043
        %1082 = vmatprep.subr.mxu0 0.0
        %1083 = vmatpush1.msra.mxu0 %v1042
        %1084 = vmatprep.subr.mxu0 0.0
        %1085 = vmatpush1.msra.mxu0 %v1041
        %1086 = vmatprep.subr.mxu0 0.0
        %1087 = vmatpush1.msra.mxu0 %v1040
        %1088 = vmatprep.subr.mxu0 0.0
        %1089 = vmatpush2.msra.mxu0 0.0
        %1090 = vmatprep.subr.mxu0 0.0
        %1091 = vmatpush2.msra.mxu0 0.0
        %1092 = vmatprep.subr.mxu0 0.0
        %1093 = vmatpush2.msra.mxu0 0.0
        %1094 = vmatprep.subr.mxu0 0.0
        %1095 = vmatpush2.msra.mxu0 0.0
        %1096 = vmatprep.subr.mxu0 0.0
        %1097 = vmatpush2.msra.mxu0 0.0
        %1098 = vmatprep.subr.mxu0 0.0
        %1099 = vmatpush2.msra.mxu0 0.0
        %1100 = vmatprep.subr.mxu0 0.0
        %1101 = vmatpush2.msra.mxu0 0.0
        %1102 = vmatprep.subr.mxu0 0.0
        %1103 = vmatpush2.msra.mxu0 0.0
        %1104 = vmatprep.subr.mxu0 0.0
        %1105 = vmatpush2.msra.mxu0 0.0
        %1106 = vmatprep.subr.mxu0 0.0
        %1107 = vmatpush2.msra.mxu0 0.0
        %1108 = vmatprep.subr.mxu0 0.0
        %1109 = vmatpush2.msra.mxu0 0.0
        %1110 = vmatprep.subr.mxu0 0.0
        %1111 = vmatpush2.msra.mxu0 0.0
        %1112 = vmatprep.subr.mxu0 0.0
        %1113 = vmatpush2.msra.mxu0 0.0
        %1114 = vmatprep.subr.mxu0 0.0
        %1115 = vmatpush2.msra.mxu0 0.0
        %1116 = vmatprep.subr.mxu0 0.0
        %1117 = vmatpush2.msra.mxu0 0.0
        %1118 = vmatprep.subr.mxu0 0.0
        %1119 = vmatpush2.msra.mxu0 0.0
        %1120 = vmatprep.mubr.f32.mxu0 0.0
        %1121 = vmatmul.mubr.f32.gmra.mxu0 %v1023
        %v1122 = vpop.f32.mrf.mxu0
        %v1123 = vadd.f32 0.0, %v1122
        %v1124 = vpop.f32.mrf.mxu0
        %1125 = vmatprep.mubr.f32.mxu0 0.0
        %1126 = vmatmul.mubr.f32.gmra.mxu0 %v1024
        %v1127 = vpop.f32.mrf.mxu0
        %v1128 = vadd.f32 0.0, %v1127
        %v1129 = vpop.f32.mrf.mxu0
        %1130 = vmatprep.mubr.f32.mxu0 0.0
        %1131 = vmatmul.mubr.f32.gmra.mxu0 %v1025
        %v1132 = vpop.f32.mrf.mxu0
        %v1133 = vadd.f32 0.0, %v1132
        %v1134 = vpop.f32.mrf.mxu0
        %1135 = vmatprep.mubr.f32.mxu0 0.0
        %1136 = vmatmul.mubr.f32.gmra.mxu0 %v1026
        %v1137 = vpop.f32.mrf.mxu0
        %v1138 = vadd.f32 0.0, %v1137
        %v1139 = vpop.f32.mrf.mxu0
        %1140 = vmatprep.mubr.f32.mxu0 0.0
        %1141 = vmatmul.mubr.f32.gmra.mxu0 %v1027
        %v1142 = vpop.f32.mrf.mxu0
        %v1143 = vadd.f32 0.0, %v1142
        %v1144 = vpop.f32.mrf.mxu0
        %1145 = vmatprep.mubr.f32.mxu0 0.0
        %1146 = vmatmul.mubr.f32.gmra.mxu0 %v1028
        %v1147 = vpop.f32.mrf.mxu0
        %v1148 = vadd.f32 0.0, %v1147
        %v1149 = vpop.f32.mrf.mxu0
        %1150 = vmatprep.mubr.f32.mxu0 0.0
        %1151 = vmatmul.mubr.f32.gmra.mxu0 %v1029
        %v1152 = vpop.f32.mrf.mxu0
        %v1153 = vadd.f32 0.0, %v1152
        %v1154 = vpop.f32.mrf.mxu0
        %1155 = vmatprep.mubr.f32.mxu0 0.0
        %1156 = vmatmul.mubr.f32.gmra.mxu0 %v1030
        %v1157 = vpop.f32.mrf.mxu0
        %v1158 = vadd.f32 0.0, %v1157
        %v1159 = vpop.f32.mrf.mxu0
        %1160 = vmatprep.mubr.f32.mxu0 0.0
        %1161 = vmatmul.mubr.f32.gmra.mxu0 %v1031
        %v1162 = vpop.f32.mrf.mxu0
        %v1163 = vadd.f32 0.0, %v1162
        %v1164 = vpop.f32.mrf.mxu0
        %1165 = vmatprep.mubr.f32.mxu0 0.0
        %1166 = vmatmul.mubr.f32.gmra.mxu0 %v1032
        %v1167 = vpop.f32.mrf.mxu0
        %v1168 = vadd.f32 0.0, %v1167
        %v1169 = vpop.f32.mrf.mxu0
        %1170 = vmatprep.mubr.f32.mxu0 0.0
        %1171 = vmatmul.mubr.f32.gmra.mxu0 %v1033
        %v1172 = vpop.f32.mrf.mxu0
        %v1173 = vadd.f32 0.0, %v1172
        %v1174 = vpop.f32.mrf.mxu0
        %1175 = vmatprep.mubr.f32.mxu0 0.0
        %1176 = vmatmul.mubr.f32.gmra.mxu0 %v1034
        %v1177 = vpop.f32.mrf.mxu0
        %v1178 = vadd.f32 0.0, %v1177
        %v1179 = vpop.f32.mrf.mxu0
        %1180 = vmatprep.mubr.f32.mxu0 0.0
        %1181 = vmatmul.mubr.f32.gmra.mxu0 %v1035
        %v1182 = vpop.f32.mrf.mxu0
        %v1183 = vadd.f32 0.0, %v1182
        %v1184 = vpop.f32.mrf.mxu0
        %1185 = vmatprep.mubr.f32.mxu0 0.0
        %1186 = vmatmul.mubr.f32.gmra.mxu0 %v1036
        %v1187 = vpop.f32.mrf.mxu0
        %v1188 = vadd.f32 0.0, %v1187
        %v1189 = vpop.f32.mrf.mxu0
        %1190 = vmatprep.mubr.f32.mxu0 0.0
        %1191 = vmatmul.mubr.f32.gmra.mxu0 %v1037
        %v1192 = vpop.f32.mrf.mxu0
        %v1193 = vadd.f32 0.0, %v1192
        %v1194 = vpop.f32.mrf.mxu0
        %1195 = vmatprep.mubr.f32.mxu0 0.0
        %1196 = vmatmul.mubr.f32.gmra.mxu0 %v1038
        %v1197 = vpop.f32.mrf.mxu0
        %v1198 = vadd.f32 0.0, %v1197
        %v1199 = vpop.f32.mrf.mxu0
        %1200 = vdwg.mxu0
        %1201 = vmatprep.subr.mxu0 0.0
        %1202 = vmatpush1.msra.mxu0 %v1022
        %1203 = vmatprep.subr.mxu0 0.0
        %1204 = vmatpush1.msra.mxu0 %v1021
        %1205 = vmatprep.subr.mxu0 0.0
        %1206 = vmatpush1.msra.mxu0 %v1020
        %1207 = vmatprep.subr.mxu0 0.0
        %1208 = vmatpush1.msra.mxu0 %v1019
        %1209 = vmatprep.subr.mxu0 0.0
        %1210 = vmatpush1.msra.mxu0 %v1018
        %1211 = vmatprep.subr.mxu0 0.0
        %1212 = vmatpush1.msra.mxu0 %v1017
        %1213 = vmatprep.subr.mxu0 0.0
        %1214 = vmatpush1.msra.mxu0 %v1016
        %1215 = vmatprep.subr.mxu0 0.0
        %1216 = vmatpush1.msra.mxu0 %v1015
        %1217 = vmatprep.subr.mxu0 0.0
        %1218 = vmatpush1.msra.mxu0 %v1014
        %1219 = vmatprep.subr.mxu0 0.0
        %1220 = vmatpush1.msra.mxu0 %v1013
        %1221 = vmatprep.subr.mxu0 0.0
        %1222 = vmatpush1.msra.mxu0 %v1012
        %1223 = vmatprep.subr.mxu0 0.0
        %1224 = vmatpush1.msra.mxu0 %v1011
        %1225 = vmatprep.subr.mxu0 0.0
        %1226 = vmatpush1.msra.mxu0 %v1010
        %1227 = vmatprep.subr.mxu0 0.0
        %1228 = vmatpush1.msra.mxu0 %v1009
        %1229 = vmatprep.subr.mxu0 0.0
        %1230 = vmatpush1.msra.mxu0 %v1008
        %1231 = vmatprep.subr.mxu0 0.0
        %1232 = vmatpush1.msra.mxu0 %v1007
        %1233 = vmatprep.subr.mxu0 0.0
        %1234 = vmatpush2.msra.mxu0 0.0
        %1235 = vmatprep.subr.mxu0 0.0
        %1236 = vmatpush2.msra.mxu0 0.0
        %1237 = vmatprep.subr.mxu0 0.0
        %1238 = vmatpush2.msra.mxu0 0.0
        %1239 = vmatprep.subr.mxu0 0.0
        %1240 = vmatpush2.msra.mxu0 0.0
        %1241 = vmatprep.subr.mxu0 0.0
        %1242 = vmatpush2.msra.mxu0 0.0
        %1243 = vmatprep.subr.mxu0 0.0
        %1244 = vmatpush2.msra.mxu0 0.0
        %1245 = vmatprep.subr.mxu0 0.0
        %1246 = vmatpush2.msra.mxu0 0.0
        %1247 = vmatprep.subr.mxu0 0.0
        %1248 = vmatpush2.msra.mxu0 0.0
        %1249 = vmatprep.subr.mxu0 0.0
        %1250 = vmatpush2.msra.mxu0 0.0
        %1251 = vmatprep.subr.mxu0 0.0
        %1252 = vmatpush2.msra.mxu0 0.0
        %1253 = vmatprep.subr.mxu0 0.0
        %1254 = vmatpush2.msra.mxu0 0.0
        %1255 = vmatprep.subr.mxu0 0.0
        %1256 = vmatpush2.msra.mxu0 0.0
        %1257 = vmatprep.subr.mxu0 0.0
        %1258 = vmatpush2.msra.mxu0 0.0
        %1259 = vmatprep.subr.mxu0 0.0
        %1260 = vmatpush2.msra.mxu0 0.0
        %1261 = vmatprep.subr.mxu0 0.0
        %1262 = vmatpush2.msra.mxu0 0.0
        %1263 = vmatprep.subr.mxu0 0.0
        %1264 = vmatpush2.msra.mxu0 0.0
        %1265 = vmatprep.mubr.f32.mxu0 0.0
        %1266 = vmatmul.mubr.f32.gmra.mxu0 %v991
        %v1267 = vpop.f32.mrf.mxu0
        %v1268 = vadd.f32 %v1123, %v1267
        %v1269 = vpop.f32.mrf.mxu0
        %1270 = vmatprep.mubr.f32.mxu0 0.0
        %1271 = vmatmul.mubr.f32.gmra.mxu0 %v992
        %v1272 = vpop.f32.mrf.mxu0
        %v1273 = vadd.f32 %v1128, %v1272
        %v1274 = vpop.f32.mrf.mxu0
        %1275 = vmatprep.mubr.f32.mxu0 0.0
        %1276 = vmatmul.mubr.f32.gmra.mxu0 %v993
        %v1277 = vpop.f32.mrf.mxu0
        %v1278 = vadd.f32 %v1133, %v1277
        %v1279 = vpop.f32.mrf.mxu0
        %1280 = vmatprep.mubr.f32.mxu0 0.0
        %1281 = vmatmul.mubr.f32.gmra.mxu0 %v994
        %v1282 = vpop.f32.mrf.mxu0
        %v1283 = vadd.f32 %v1138, %v1282
        %v1284 = vpop.f32.mrf.mxu0
        %1285 = vmatprep.mubr.f32.mxu0 0.0
        %1286 = vmatmul.mubr.f32.gmra.mxu0 %v995
        %v1287 = vpop.f32.mrf.mxu0
        %v1288 = vadd.f32 %v1143, %v1287
        %v1289 = vpop.f32.mrf.mxu0
        %1290 = vmatprep.mubr.f32.mxu0 0.0
        %1291 = vmatmul.mubr.f32.gmra.mxu0 %v996
        %v1292 = vpop.f32.mrf.mxu0
        %v1293 = vadd.f32 %v1148, %v1292
        %v1294 = vpop.f32.mrf.mxu0
        %1295 = vmatprep.mubr.f32.mxu0 0.0
        %1296 = vmatmul.mubr.f32.gmra.mxu0 %v997
        %v1297 = vpop.f32.mrf.mxu0
        %v1298 = vadd.f32 %v1153, %v1297
        %v1299 = vpop.f32.mrf.mxu0
        %1300 = vmatprep.mubr.f32.mxu0 0.0
        %1301 = vmatmul.mubr.f32.gmra.mxu0 %v998
        %v1302 = vpop.f32.mrf.mxu0
        %v1303 = vadd.f32 %v1158, %v1302
        %v1304 = vpop.f32.mrf.mxu0
        %1305 = vmatprep.mubr.f32.mxu0 0.0
        %1306 = vmatmul.mubr.f32.gmra.mxu0 %v999
        %v1307 = vpop.f32.mrf.mxu0
        %v1308 = vadd.f32 %v1163, %v1307
        %v1309 = vpop.f32.mrf.mxu0
        %1310 = vmatprep.mubr.f32.mxu0 0.0
        %1311 = vmatmul.mubr.f32.gmra.mxu0 %v1000
        %v1312 = vpop.f32.mrf.mxu0
        %v1313 = vadd.f32 %v1168, %v1312
        %v1314 = vpop.f32.mrf.mxu0
        %1315 = vmatprep.mubr.f32.mxu0 0.0
        %1316 = vmatmul.mubr.f32.gmra.mxu0 %v1001
        %v1317 = vpop.f32.mrf.mxu0
        %v1318 = vadd.f32 %v1173, %v1317
        %v1319 = vpop.f32.mrf.mxu0
        %1320 = vmatprep.mubr.f32.mxu0 0.0
        %1321 = vmatmul.mubr.f32.gmra.mxu0 %v1002
        %v1322 = vpop.f32.mrf.mxu0
        %v1323 = vadd.f32 %v1178, %v1322
        %v1324 = vpop.f32.mrf.mxu0
        %1325 = vmatprep.mubr.f32.mxu0 0.0
        %1326 = vmatmul.mubr.f32.gmra.mxu0 %v1003
        %v1327 = vpop.f32.mrf.mxu0
        %v1328 = vadd.f32 %v1183, %v1327
        %v1329 = vpop.f32.mrf.mxu0
        %1330 = vmatprep.mubr.f32.mxu0 0.0
        %1331 = vmatmul.mubr.f32.gmra.mxu0 %v1004
        %v1332 = vpop.f32.mrf.mxu0
        %v1333 = vadd.f32 %v1188, %v1332
        %v1334 = vpop.f32.mrf.mxu0
        %1335 = vmatprep.mubr.f32.mxu0 0.0
        %1336 = vmatmul.mubr.f32.gmra.mxu0 %v1005
        %v1337 = vpop.f32.mrf.mxu0
        %v1338 = vadd.f32 %v1193, %v1337
        %v1339 = vpop.f32.mrf.mxu0
        %1340 = vmatprep.mubr.f32.mxu0 0.0
        %1341 = vmatmul.mubr.f32.gmra.mxu0 %v1006
        %v1342 = vpop.f32.mrf.mxu0
        %v1343 = vadd.f32 %v1198, %v1342
        %v1344 = vpop.f32.mrf.mxu0
        %1345 = vdwg.mxu0
        %v1346 = vld [vmem:[#allocation2 + $0x5] sm:$0xff]
        %v1347 = vld [vmem:[#allocation2 + $0xd] sm:$0xff]
        %v1348 = vld [vmem:[#allocation2 + $0x1d] sm:$0xff]
        %v1349 = vld [vmem:[#allocation2 + $0x25] sm:$0xff]
        %v1350 = vld [vmem:[#allocation2 + $0x35] sm:$0xff]
        %v1351 = vld [vmem:[#allocation2 + $0x3d] sm:$0xff]
        %v1352 = vld [vmem:[#allocation2 + $0x4d] sm:$0xff]
        %v1353 = vld [vmem:[#allocation2 + $0x55] sm:$0xff]
        %v1354 = vld [vmem:[#allocation2 + $0x65] sm:$0xff]
        %v1355 = vld [vmem:[#allocation2 + $0x6d] sm:$0xff]
        %v1356 = vld [vmem:[#allocation2 + $0x7d] sm:$0xff]
        %v1357 = vld [vmem:[#allocation2 + $0x85] sm:$0xff]
        %v1358 = vld [vmem:[#allocation2 + $0x95] sm:$0xff]
        %v1359 = vld [vmem:[#allocation2 + $0x9d] sm:$0xff]
        %v1360 = vld [vmem:[#allocation2 + $0xad] sm:$0xff]
        %v1361 = vld [vmem:[#allocation2 + $0xb5] sm:$0xff]
        %s1362 = scalar_lea.vmem [#allocation9], 256
        %v1363 = vld [vmem:[%s1362] sm:$0xff]
        %v1364 = vld [vmem:[%s1362 + $0x8] sm:$0xff]
        %v1365 = vld [vmem:[%s1362 + $0x10] sm:$0xff]
        %v1366 = vld [vmem:[%s1362 + $0x18] sm:$0xff]
        %v1367 = vld [vmem:[%s1362 + $0x20] sm:$0xff]
        %v1368 = vld [vmem:[%s1362 + $0x28] sm:$0xff]
        %v1369 = vld [vmem:[%s1362 + $0x30] sm:$0xff]
        %v1370 = vld [vmem:[%s1362 + $0x38] sm:$0xff]
        %v1371 = vld [vmem:[%s1362 + $0x40] sm:$0xff]
        %v1372 = vld [vmem:[%s1362 + $0x48] sm:$0xff]
        %v1373 = vld [vmem:[%s1362 + $0x50] sm:$0xff]
        %v1374 = vld [vmem:[%s1362 + $0x58] sm:$0xff]
        %v1375 = vld [vmem:[%s1362 + $0x60] sm:$0xff]
        %v1376 = vld [vmem:[%s1362 + $0x68] sm:$0xff]
        %v1377 = vld [vmem:[%s1362 + $0x70] sm:$0xff]
        %v1378 = vld [vmem:[%s1362 + $0x78] sm:$0xff]
        %1379 = vmatprep.subr.mxu0 0.0
        %1380 = vmatpush1.msra.mxu0 %v1378
        %1381 = vmatprep.subr.mxu0 0.0
        %1382 = vmatpush1.msra.mxu0 %v1377
        %1383 = vmatprep.subr.mxu0 0.0
        %1384 = vmatpush1.msra.mxu0 %v1376
        %1385 = vmatprep.subr.mxu0 0.0
        %1386 = vmatpush1.msra.mxu0 %v1375
        %1387 = vmatprep.subr.mxu0 0.0
        %1388 = vmatpush1.msra.mxu0 %v1374
        %1389 = vmatprep.subr.mxu0 0.0
        %1390 = vmatpush1.msra.mxu0 %v1373
        %1391 = vmatprep.subr.mxu0 0.0
        %1392 = vmatpush1.msra.mxu0 %v1372
        %1393 = vmatprep.subr.mxu0 0.0
        %1394 = vmatpush1.msra.mxu0 %v1371
        %1395 = vmatprep.subr.mxu0 0.0
        %1396 = vmatpush1.msra.mxu0 %v1370
        %1397 = vmatprep.subr.mxu0 0.0
        %1398 = vmatpush1.msra.mxu0 %v1369
        %1399 = vmatprep.subr.mxu0 0.0
        %1400 = vmatpush1.msra.mxu0 %v1368
        %1401 = vmatprep.subr.mxu0 0.0
        %1402 = vmatpush1.msra.mxu0 %v1367
        %1403 = vmatprep.subr.mxu0 0.0
        %1404 = vmatpush1.msra.mxu0 %v1366
        %1405 = vmatprep.subr.mxu0 0.0
        %1406 = vmatpush1.msra.mxu0 %v1365
        %1407 = vmatprep.subr.mxu0 0.0
        %1408 = vmatpush1.msra.mxu0 %v1364
        %1409 = vmatprep.subr.mxu0 0.0
        %1410 = vmatpush1.msra.mxu0 %v1363
        %1411 = vmatprep.subr.mxu0 0.0
        %1412 = vmatpush2.msra.mxu0 0.0
        %1413 = vmatprep.subr.mxu0 0.0
        %1414 = vmatpush2.msra.mxu0 0.0
        %1415 = vmatprep.subr.mxu0 0.0
        %1416 = vmatpush2.msra.mxu0 0.0
        %1417 = vmatprep.subr.mxu0 0.0
        %1418 = vmatpush2.msra.mxu0 0.0
        %1419 = vmatprep.subr.mxu0 0.0
        %1420 = vmatpush2.msra.mxu0 0.0
        %1421 = vmatprep.subr.mxu0 0.0
        %1422 = vmatpush2.msra.mxu0 0.0
        %1423 = vmatprep.subr.mxu0 0.0
        %1424 = vmatpush2.msra.mxu0 0.0
        %1425 = vmatprep.subr.mxu0 0.0
        %1426 = vmatpush2.msra.mxu0 0.0
        %1427 = vmatprep.subr.mxu0 0.0
        %1428 = vmatpush2.msra.mxu0 0.0
        %1429 = vmatprep.subr.mxu0 0.0
        %1430 = vmatpush2.msra.mxu0 0.0
        %1431 = vmatprep.subr.mxu0 0.0
        %1432 = vmatpush2.msra.mxu0 0.0
        %1433 = vmatprep.subr.mxu0 0.0
        %1434 = vmatpush2.msra.mxu0 0.0
        %1435 = vmatprep.subr.mxu0 0.0
        %1436 = vmatpush2.msra.mxu0 0.0
        %1437 = vmatprep.subr.mxu0 0.0
        %1438 = vmatpush2.msra.mxu0 0.0
        %1439 = vmatprep.subr.mxu0 0.0
        %1440 = vmatpush2.msra.mxu0 0.0
        %1441 = vmatprep.subr.mxu0 0.0
        %1442 = vmatpush2.msra.mxu0 0.0
        %1443 = vmatprep.mubr.f32.mxu0 0.0
        %1444 = vmatmul.mubr.f32.gmra.mxu0 %v1346
        %v1445 = vpop.f32.mrf.mxu0
        %v1446 = vadd.f32 0.0, %v1445
        %v1447 = vpop.f32.mrf.mxu0
        %1448 = vmatprep.mubr.f32.mxu0 0.0
        %1449 = vmatmul.mubr.f32.gmra.mxu0 %v1347
        %v1450 = vpop.f32.mrf.mxu0
        %v1451 = vadd.f32 0.0, %v1450
        %v1452 = vpop.f32.mrf.mxu0
        %1453 = vmatprep.mubr.f32.mxu0 0.0
        %1454 = vmatmul.mubr.f32.gmra.mxu0 %v1348
        %v1455 = vpop.f32.mrf.mxu0
        %v1456 = vadd.f32 0.0, %v1455
        %v1457 = vpop.f32.mrf.mxu0
        %1458 = vmatprep.mubr.f32.mxu0 0.0
        %1459 = vmatmul.mubr.f32.gmra.mxu0 %v1349
        %v1460 = vpop.f32.mrf.mxu0
        %v1461 = vadd.f32 0.0, %v1460
        %v1462 = vpop.f32.mrf.mxu0
        %1463 = vmatprep.mubr.f32.mxu0 0.0
        %1464 = vmatmul.mubr.f32.gmra.mxu0 %v1350
        %v1465 = vpop.f32.mrf.mxu0
        %v1466 = vadd.f32 0.0, %v1465
        %v1467 = vpop.f32.mrf.mxu0
        %1468 = vmatprep.mubr.f32.mxu0 0.0
        %1469 = vmatmul.mubr.f32.gmra.mxu0 %v1351
        %v1470 = vpop.f32.mrf.mxu0
        %v1471 = vadd.f32 0.0, %v1470
        %v1472 = vpop.f32.mrf.mxu0
        %1473 = vmatprep.mubr.f32.mxu0 0.0
        %1474 = vmatmul.mubr.f32.gmra.mxu0 %v1352
        %v1475 = vpop.f32.mrf.mxu0
        %v1476 = vadd.f32 0.0, %v1475
        %v1477 = vpop.f32.mrf.mxu0
        %1478 = vmatprep.mubr.f32.mxu0 0.0
        %1479 = vmatmul.mubr.f32.gmra.mxu0 %v1353
        %v1480 = vpop.f32.mrf.mxu0
        %v1481 = vadd.f32 0.0, %v1480
        %v1482 = vpop.f32.mrf.mxu0
        %1483 = vmatprep.mubr.f32.mxu0 0.0
        %1484 = vmatmul.mubr.f32.gmra.mxu0 %v1354
        %v1485 = vpop.f32.mrf.mxu0
        %v1486 = vadd.f32 0.0, %v1485
        %v1487 = vpop.f32.mrf.mxu0
        %1488 = vmatprep.mubr.f32.mxu0 0.0
        %1489 = vmatmul.mubr.f32.gmra.mxu0 %v1355
        %v1490 = vpop.f32.mrf.mxu0
        %v1491 = vadd.f32 0.0, %v1490
        %v1492 = vpop.f32.mrf.mxu0
        %1493 = vmatprep.mubr.f32.mxu0 0.0
        %1494 = vmatmul.mubr.f32.gmra.mxu0 %v1356
        %v1495 = vpop.f32.mrf.mxu0
        %v1496 = vadd.f32 0.0, %v1495
        %v1497 = vpop.f32.mrf.mxu0
        %1498 = vmatprep.mubr.f32.mxu0 0.0
        %1499 = vmatmul.mubr.f32.gmra.mxu0 %v1357
        %v1500 = vpop.f32.mrf.mxu0
        %v1501 = vadd.f32 0.0, %v1500
        %v1502 = vpop.f32.mrf.mxu0
        %1503 = vmatprep.mubr.f32.mxu0 0.0
        %1504 = vmatmul.mubr.f32.gmra.mxu0 %v1358
        %v1505 = vpop.f32.mrf.mxu0
        %v1506 = vadd.f32 0.0, %v1505
        %v1507 = vpop.f32.mrf.mxu0
        %1508 = vmatprep.mubr.f32.mxu0 0.0
        %1509 = vmatmul.mubr.f32.gmra.mxu0 %v1359
        %v1510 = vpop.f32.mrf.mxu0
        %v1511 = vadd.f32 0.0, %v1510
        %v1512 = vpop.f32.mrf.mxu0
        %1513 = vmatprep.mubr.f32.mxu0 0.0
        %1514 = vmatmul.mubr.f32.gmra.mxu0 %v1360
        %v1515 = vpop.f32.mrf.mxu0
        %v1516 = vadd.f32 0.0, %v1515
        %v1517 = vpop.f32.mrf.mxu0
        %1518 = vmatprep.mubr.f32.mxu0 0.0
        %1519 = vmatmul.mubr.f32.gmra.mxu0 %v1361
        %v1520 = vpop.f32.mrf.mxu0
        %v1521 = vadd.f32 0.0, %v1520
        %v1522 = vpop.f32.mrf.mxu0
        %1523 = vdwg.mxu0
        %v1524 = vadd.f32 %v1268, %v1446
        %v1525 = vadd.f32 %v1273, %v1451
        %v1526 = vadd.f32 %v1278, %v1456
        %v1527 = vadd.f32 %v1283, %v1461
        %v1528 = vadd.f32 %v1288, %v1466
        %v1529 = vadd.f32 %v1293, %v1471
        %v1530 = vadd.f32 %v1298, %v1476
        %v1531 = vadd.f32 %v1303, %v1481
        %v1532 = vadd.f32 %v1308, %v1486
        %v1533 = vadd.f32 %v1313, %v1491
        %v1534 = vadd.f32 %v1318, %v1496
        %v1535 = vadd.f32 %v1323, %v1501
        %v1536 = vadd.f32 %v1328, %v1506
        %v1537 = vadd.f32 %v1333, %v1511
        %v1538 = vadd.f32 %v1338, %v1516
        %v1539 = vadd.f32 %v1343, %v1521
        %v1540 = vadd.f32 %v759, %v1524
        %v1541 = vadd.f32 %v760, %v1525
        %v1542 = vadd.f32 %v761, %v1526
        %v1543 = vadd.f32 %v762, %v1527
        %v1544 = vadd.f32 %v763, %v1528
        %v1545 = vadd.f32 %v764, %v1529
        %v1546 = vadd.f32 %v765, %v1530
        %v1547 = vadd.f32 %v766, %v1531
        %v1548 = vadd.f32 %v767, %v1532
        %v1549 = vadd.f32 %v768, %v1533
        %v1550 = vadd.f32 %v769, %v1534
        %v1551 = vadd.f32 %v770, %v1535
        %v1552 = vadd.f32 %v771, %v1536
        %v1553 = vadd.f32 %v772, %v1537
        %v1554 = vadd.f32 %v773, %v1538
        %v1555 = vadd.f32 %v774, %v1539
        %s1556 = scalar_lea.vmem [#allocation6], 128
        %v1557 = vld [vmem:[%s1556] sm:$0xff]
        %v1558 = vld [vmem:[%s1556 + $0x8] sm:$0xff]
        %v1559 = vld [vmem:[%s1556 + $0x10] sm:$0xff]
        %v1560 = vld [vmem:[%s1556 + $0x18] sm:$0xff]
        %v1561 = vld [vmem:[%s1556 + $0x20] sm:$0xff]
        %v1562 = vld [vmem:[%s1556 + $0x28] sm:$0xff]
        %v1563 = vld [vmem:[%s1556 + $0x30] sm:$0xff]
        %v1564 = vld [vmem:[%s1556 + $0x38] sm:$0xff]
        %v1565 = vld [vmem:[%s1556 + $0x40] sm:$0xff]
        %v1566 = vld [vmem:[%s1556 + $0x48] sm:$0xff]
        %v1567 = vld [vmem:[%s1556 + $0x50] sm:$0xff]
        %v1568 = vld [vmem:[%s1556 + $0x58] sm:$0xff]
        %v1569 = vld [vmem:[%s1556 + $0x60] sm:$0xff]
        %v1570 = vld [vmem:[%s1556 + $0x68] sm:$0xff]
        %v1571 = vld [vmem:[%s1556 + $0x70] sm:$0xff]
        %v1572 = vld [vmem:[%s1556 + $0x78] sm:$0xff]
        %s1573 = scalar_lea.vmem [#allocation8], 1
        %v1574 = vld [vmem:[%s1573] sm:$0x1]
        %v1576 = vlaneseq
        %v1577 = vshrl.u32 %v1576, 7
        %v1578 = vsub.s32 0, %v1577
        %v1579 = vrot.slane %v1574, %v1578
        %1581 = vmatprep.subr.mxu0 0.0
        %1582 = vmatpush1.msra.mxu0 %v1572
        %1583 = vmatprep.subr.mxu0 0.0
        %1584 = vmatpush1.msra.mxu0 %v1571
        %1585 = vmatprep.subr.mxu0 0.0
        %1586 = vmatpush1.msra.mxu0 %v1570
        %1587 = vmatprep.subr.mxu0 0.0
        %1588 = vmatpush1.msra.mxu0 %v1569
        %1589 = vmatprep.subr.mxu0 0.0
        %1590 = vmatpush1.msra.mxu0 %v1568
        %1591 = vmatprep.subr.mxu0 0.0
        %1592 = vmatpush1.msra.mxu0 %v1567
        %1593 = vmatprep.subr.mxu0 0.0
        %1594 = vmatpush1.msra.mxu0 %v1566
        %1595 = vmatprep.subr.mxu0 0.0
        %1596 = vmatpush1.msra.mxu0 %v1565
        %1597 = vmatprep.subr.mxu0 0.0
        %1598 = vmatpush1.msra.mxu0 %v1564
        %1599 = vmatprep.subr.mxu0 0.0
        %1600 = vmatpush1.msra.mxu0 %v1563
        %1601 = vmatprep.subr.mxu0 0.0
        %1602 = vmatpush1.msra.mxu0 %v1562
        %1603 = vmatprep.subr.mxu0 0.0
        %1604 = vmatpush1.msra.mxu0 %v1561
        %1605 = vmatprep.subr.mxu0 0.0
        %1606 = vmatpush1.msra.mxu0 %v1560
        %1607 = vmatprep.subr.mxu0 0.0
        %1608 = vmatpush1.msra.mxu0 %v1559
        %1609 = vmatprep.subr.mxu0 0.0
        %1610 = vmatpush1.msra.mxu0 %v1558
        %1611 = vmatprep.subr.mxu0 0.0
        %1612 = vmatpush1.msra.mxu0 %v1557
        %1613 = vmatprep.subr.mxu0 0.0
        %1614 = vmatpush2.msra.mxu0 0.0
        %1615 = vmatprep.subr.mxu0 0.0
        %1616 = vmatpush2.msra.mxu0 0.0
        %1617 = vmatprep.subr.mxu0 0.0
        %1618 = vmatpush2.msra.mxu0 0.0
        %1619 = vmatprep.subr.mxu0 0.0
        %1620 = vmatpush2.msra.mxu0 0.0
        %1621 = vmatprep.subr.mxu0 0.0
        %1622 = vmatpush2.msra.mxu0 0.0
        %1623 = vmatprep.subr.mxu0 0.0
        %1624 = vmatpush2.msra.mxu0 0.0
        %1625 = vmatprep.subr.mxu0 0.0
        %1626 = vmatpush2.msra.mxu0 0.0
        %1627 = vmatprep.subr.mxu0 0.0
        %1628 = vmatpush2.msra.mxu0 0.0
        %1629 = vmatprep.subr.mxu0 0.0
        %1630 = vmatpush2.msra.mxu0 0.0
        %1631 = vmatprep.subr.mxu0 0.0
        %1632 = vmatpush2.msra.mxu0 0.0
        %1633 = vmatprep.subr.mxu0 0.0
        %1634 = vmatpush2.msra.mxu0 0.0
        %1635 = vmatprep.subr.mxu0 0.0
        %1636 = vmatpush2.msra.mxu0 0.0
        %1637 = vmatprep.subr.mxu0 0.0
        %1638 = vmatpush2.msra.mxu0 0.0
        %1639 = vmatprep.subr.mxu0 0.0
        %1640 = vmatpush2.msra.mxu0 0.0
        %1641 = vmatprep.subr.mxu0 0.0
        %1642 = vmatpush2.msra.mxu0 0.0
        %1643 = vmatprep.subr.mxu0 0.0
        %1644 = vmatpush2.msra.mxu0 0.0
        %1645 = vmatprep.mubr.f32.mxu0 0.0
        %1646 = vmatmul.mubr.f32.gmra.mxu0 %v414
        %v1647 = vpop.f32.mrf.mxu0
        %v1648 = vadd.f32 %v1579, %v1647
        %v1649 = vpop.f32.mrf.mxu0
        %1650 = vmatprep.mubr.f32.mxu0 0.0
        %1651 = vmatmul.mubr.f32.gmra.mxu0 %v415
        %v1652 = vpop.f32.mrf.mxu0
        %v1653 = vadd.f32 %v1579, %v1652
        %v1654 = vpop.f32.mrf.mxu0
        %1655 = vmatprep.mubr.f32.mxu0 0.0
        %1656 = vmatmul.mubr.f32.gmra.mxu0 %v416
        %v1657 = vpop.f32.mrf.mxu0
        %v1658 = vadd.f32 %v1579, %v1657
        %v1659 = vpop.f32.mrf.mxu0
        %1660 = vmatprep.mubr.f32.mxu0 0.0
        %1661 = vmatmul.mubr.f32.gmra.mxu0 %v417
        %v1662 = vpop.f32.mrf.mxu0
        %v1663 = vadd.f32 %v1579, %v1662
        %v1664 = vpop.f32.mrf.mxu0
        %1665 = vmatprep.mubr.f32.mxu0 0.0
        %1666 = vmatmul.mubr.f32.gmra.mxu0 %v418
        %v1667 = vpop.f32.mrf.mxu0
        %v1668 = vadd.f32 %v1579, %v1667
        %v1669 = vpop.f32.mrf.mxu0
        %1670 = vmatprep.mubr.f32.mxu0 0.0
        %1671 = vmatmul.mubr.f32.gmra.mxu0 %v419
        %v1672 = vpop.f32.mrf.mxu0
        %v1673 = vadd.f32 %v1579, %v1672
        %v1674 = vpop.f32.mrf.mxu0
        %1675 = vmatprep.mubr.f32.mxu0 0.0
        %1676 = vmatmul.mubr.f32.gmra.mxu0 %v420
        %v1677 = vpop.f32.mrf.mxu0
        %v1678 = vadd.f32 %v1579, %v1677
        %v1679 = vpop.f32.mrf.mxu0
        %1680 = vmatprep.mubr.f32.mxu0 0.0
        %1681 = vmatmul.mubr.f32.gmra.mxu0 %v421
        %v1682 = vpop.f32.mrf.mxu0
        %v1683 = vadd.f32 %v1579, %v1682
        %v1684 = vpop.f32.mrf.mxu0
        %1685 = vmatprep.mubr.f32.mxu0 0.0
        %1686 = vmatmul.mubr.f32.gmra.mxu0 %v422
        %v1687 = vpop.f32.mrf.mxu0
        %v1688 = vadd.f32 %v1579, %v1687
        %v1689 = vpop.f32.mrf.mxu0
        %1690 = vmatprep.mubr.f32.mxu0 0.0
        %1691 = vmatmul.mubr.f32.gmra.mxu0 %v423
        %v1692 = vpop.f32.mrf.mxu0
        %v1693 = vadd.f32 %v1579, %v1692
        %v1694 = vpop.f32.mrf.mxu0
        %1695 = vmatprep.mubr.f32.mxu0 0.0
        %1696 = vmatmul.mubr.f32.gmra.mxu0 %v424
        %v1697 = vpop.f32.mrf.mxu0
        %v1698 = vadd.f32 %v1579, %v1697
        %v1699 = vpop.f32.mrf.mxu0
        %1700 = vmatprep.mubr.f32.mxu0 0.0
        %1701 = vmatmul.mubr.f32.gmra.mxu0 %v425
        %v1702 = vpop.f32.mrf.mxu0
        %v1703 = vadd.f32 %v1579, %v1702
        %v1704 = vpop.f32.mrf.mxu0
        %1705 = vmatprep.mubr.f32.mxu0 0.0
        %1706 = vmatmul.mubr.f32.gmra.mxu0 %v426
        %v1707 = vpop.f32.mrf.mxu0
        %v1708 = vadd.f32 %v1579, %v1707
        %v1709 = vpop.f32.mrf.mxu0
        %1710 = vmatprep.mubr.f32.mxu0 0.0
        %1711 = vmatmul.mubr.f32.gmra.mxu0 %v427
        %v1712 = vpop.f32.mrf.mxu0
        %v1713 = vadd.f32 %v1579, %v1712
        %v1714 = vpop.f32.mrf.mxu0
        %1715 = vmatprep.mubr.f32.mxu0 0.0
        %1716 = vmatmul.mubr.f32.gmra.mxu0 %v428
        %v1717 = vpop.f32.mrf.mxu0
        %v1718 = vadd.f32 %v1579, %v1717
        %v1719 = vpop.f32.mrf.mxu0
        %1720 = vmatprep.mubr.f32.mxu0 0.0
        %1721 = vmatmul.mubr.f32.gmra.mxu0 %v429
        %v1722 = vpop.f32.mrf.mxu0
        %v1723 = vadd.f32 %v1579, %v1722
        %v1724 = vpop.f32.mrf.mxu0
        %1725 = vdwg.mxu0
        %v1726 = vmax.f32 %v1648, 0.0
        %v1727 = vmax.f32 %v1653, 0.0
        %v1728 = vmax.f32 %v1658, 0.0
        %v1729 = vmax.f32 %v1663, 0.0
        %v1730 = vmax.f32 %v1668, 0.0
        %v1731 = vmax.f32 %v1673, 0.0
        %v1732 = vmax.f32 %v1678, 0.0
        %v1733 = vmax.f32 %v1683, 0.0
        %v1734 = vmax.f32 %v1688, 0.0
        %v1735 = vmax.f32 %v1693, 0.0
        %v1736 = vmax.f32 %v1698, 0.0
        %v1737 = vmax.f32 %v1703, 0.0
        %v1738 = vmax.f32 %v1708, 0.0
        %v1739 = vmax.f32 %v1713, 0.0
        %v1740 = vmax.f32 %v1718, 0.0
        %v1741 = vmax.f32 %v1723, 0.0
        %1742 = vst [vmem:[#allocation2 + $0x4] sm:$0xff] %v1726
        %1743 = vst [vmem:[#allocation2 + $0xc] sm:$0xff] %v1727
        %1744 = vst [vmem:[#allocation2 + $0x1c] sm:$0xff] %v1728
        %1745 = vst [vmem:[#allocation2 + $0x24] sm:$0xff] %v1729
        %1746 = vst [vmem:[#allocation2 + $0x34] sm:$0xff] %v1730
        %1747 = vst [vmem:[#allocation2 + $0x3c] sm:$0xff] %v1731
        %1748 = vst [vmem:[#allocation2 + $0x4c] sm:$0xff] %v1732
        %1749 = vst [vmem:[#allocation2 + $0x54] sm:$0xff] %v1733
        %1750 = vst [vmem:[#allocation2 + $0x64] sm:$0xff] %v1734
        %1751 = vst [vmem:[#allocation2 + $0x6c] sm:$0xff] %v1735
        %1752 = vst [vmem:[#allocation2 + $0x7c] sm:$0xff] %v1736
        %1753 = vst [vmem:[#allocation2 + $0x84] sm:$0xff] %v1737
        %1754 = vst [vmem:[#allocation2 + $0x94] sm:$0xff] %v1738
        %1755 = vst [vmem:[#allocation2 + $0x9c] sm:$0xff] %v1739
        %1756 = vst [vmem:[#allocation2 + $0xac] sm:$0xff] %v1740
        %1757 = vst [vmem:[#allocation2 + $0xb4] sm:$0xff] %v1741
        %v1758 = vld [vmem:[#allocation2 + $0x2] sm:$0xff]
        %v1759 = vld [vmem:[#allocation2 + $0xa] sm:$0xff]
        %v1760 = vld [vmem:[#allocation2 + $0x1a] sm:$0xff]
        %v1761 = vld [vmem:[#allocation2 + $0x22] sm:$0xff]
        %v1762 = vld [vmem:[#allocation2 + $0x32] sm:$0xff]
        %v1763 = vld [vmem:[#allocation2 + $0x3a] sm:$0xff]
        %v1764 = vld [vmem:[#allocation2 + $0x4a] sm:$0xff]
        %v1765 = vld [vmem:[#allocation2 + $0x52] sm:$0xff]
        %v1766 = vld [vmem:[#allocation2 + $0x62] sm:$0xff]
        %v1767 = vld [vmem:[#allocation2 + $0x6a] sm:$0xff]
        %v1768 = vld [vmem:[#allocation2 + $0x7a] sm:$0xff]
        %v1769 = vld [vmem:[#allocation2 + $0x82] sm:$0xff]
        %v1770 = vld [vmem:[#allocation2 + $0x92] sm:$0xff]
        %v1771 = vld [vmem:[#allocation2 + $0x9a] sm:$0xff]
        %v1772 = vld [vmem:[#allocation2 + $0xaa] sm:$0xff]
        %v1773 = vld [vmem:[#allocation2 + $0xb2] sm:$0xff]
        %s1774 = scalar_lea.vmem [#allocation9], 384
        %v1775 = vld [vmem:[%s1774] sm:$0xff]
        %v1776 = vld [vmem:[%s1774 + $0x8] sm:$0xff]
        %v1777 = vld [vmem:[%s1774 + $0x10] sm:$0xff]
        %v1778 = vld [vmem:[%s1774 + $0x18] sm:$0xff]
        %v1779 = vld [vmem:[%s1774 + $0x20] sm:$0xff]
        %v1780 = vld [vmem:[%s1774 + $0x28] sm:$0xff]
        %v1781 = vld [vmem:[%s1774 + $0x30] sm:$0xff]
        %v1782 = vld [vmem:[%s1774 + $0x38] sm:$0xff]
        %v1783 = vld [vmem:[%s1774 + $0x40] sm:$0xff]
        %v1784 = vld [vmem:[%s1774 + $0x48] sm:$0xff]
        %v1785 = vld [vmem:[%s1774 + $0x50] sm:$0xff]
        %v1786 = vld [vmem:[%s1774 + $0x58] sm:$0xff]
        %v1787 = vld [vmem:[%s1774 + $0x60] sm:$0xff]
        %v1788 = vld [vmem:[%s1774 + $0x68] sm:$0xff]
        %v1789 = vld [vmem:[%s1774 + $0x70] sm:$0xff]
        %v1790 = vld [vmem:[%s1774 + $0x78] sm:$0xff]
        %v1791 = vld [vmem:[#allocation2 + $0x4] sm:$0xff]
        %v1792 = vld [vmem:[#allocation2 + $0xc] sm:$0xff]
        %v1793 = vld [vmem:[#allocation2 + $0x1c] sm:$0xff]
        %v1794 = vld [vmem:[#allocation2 + $0x24] sm:$0xff]
        %v1795 = vld [vmem:[#allocation2 + $0x34] sm:$0xff]
        %v1796 = vld [vmem:[#allocation2 + $0x3c] sm:$0xff]
        %v1797 = vld [vmem:[#allocation2 + $0x4c] sm:$0xff]
        %v1798 = vld [vmem:[#allocation2 + $0x54] sm:$0xff]
        %v1799 = vld [vmem:[#allocation2 + $0x64] sm:$0xff]
        %v1800 = vld [vmem:[#allocation2 + $0x6c] sm:$0xff]
        %v1801 = vld [vmem:[#allocation2 + $0x7c] sm:$0xff]
        %v1802 = vld [vmem:[#allocation2 + $0x84] sm:$0xff]
        %v1803 = vld [vmem:[#allocation2 + $0x94] sm:$0xff]
        %v1804 = vld [vmem:[#allocation2 + $0x9c] sm:$0xff]
        %v1805 = vld [vmem:[#allocation2 + $0xac] sm:$0xff]
        %v1806 = vld [vmem:[#allocation2 + $0xb4] sm:$0xff]
        %s1807 = scalar_lea.vmem [#allocation9], 512
        %v1808 = vld [vmem:[%s1807] sm:$0xff]
        %v1809 = vld [vmem:[%s1807 + $0x8] sm:$0xff]
        %v1810 = vld [vmem:[%s1807 + $0x10] sm:$0xff]
        %v1811 = vld [vmem:[%s1807 + $0x18] sm:$0xff]
        %v1812 = vld [vmem:[%s1807 + $0x20] sm:$0xff]
        %v1813 = vld [vmem:[%s1807 + $0x28] sm:$0xff]
        %v1814 = vld [vmem:[%s1807 + $0x30] sm:$0xff]
        %v1815 = vld [vmem:[%s1807 + $0x38] sm:$0xff]
        %v1816 = vld [vmem:[%s1807 + $0x40] sm:$0xff]
        %v1817 = vld [vmem:[%s1807 + $0x48] sm:$0xff]
        %v1818 = vld [vmem:[%s1807 + $0x50] sm:$0xff]
        %v1819 = vld [vmem:[%s1807 + $0x58] sm:$0xff]
        %v1820 = vld [vmem:[%s1807 + $0x60] sm:$0xff]
        %v1821 = vld [vmem:[%s1807 + $0x68] sm:$0xff]
        %v1822 = vld [vmem:[%s1807 + $0x70] sm:$0xff]
        %v1823 = vld [vmem:[%s1807 + $0x78] sm:$0xff]
        %1824 = vmatprep.subr.mxu0 0.0
        %1825 = vmatpush1.msra.mxu0 %v1823
        %1826 = vmatprep.subr.mxu0 0.0
        %1827 = vmatpush1.msra.mxu0 %v1822
        %1828 = vmatprep.subr.mxu0 0.0
        %1829 = vmatpush1.msra.mxu0 %v1821
        %1830 = vmatprep.subr.mxu0 0.0
        %1831 = vmatpush1.msra.mxu0 %v1820
        %1832 = vmatprep.subr.mxu0 0.0
        %1833 = vmatpush1.msra.mxu0 %v1819
        %1834 = vmatprep.subr.mxu0 0.0
        %1835 = vmatpush1.msra.mxu0 %v1818
        %1836 = vmatprep.subr.mxu0 0.0
        %1837 = vmatpush1.msra.mxu0 %v1817
        %1838 = vmatprep.subr.mxu0 0.0
        %1839 = vmatpush1.msra.mxu0 %v1816
        %1840 = vmatprep.subr.mxu0 0.0
        %1841 = vmatpush1.msra.mxu0 %v1815
        %1842 = vmatprep.subr.mxu0 0.0
        %1843 = vmatpush1.msra.mxu0 %v1814
        %1844 = vmatprep.subr.mxu0 0.0
        %1845 = vmatpush1.msra.mxu0 %v1813
        %1846 = vmatprep.subr.mxu0 0.0
        %1847 = vmatpush1.msra.mxu0 %v1812
        %1848 = vmatprep.subr.mxu0 0.0
        %1849 = vmatpush1.msra.mxu0 %v1811
        %1850 = vmatprep.subr.mxu0 0.0
        %1851 = vmatpush1.msra.mxu0 %v1810
        %1852 = vmatprep.subr.mxu0 0.0
        %1853 = vmatpush1.msra.mxu0 %v1809
        %1854 = vmatprep.subr.mxu0 0.0
        %1855 = vmatpush1.msra.mxu0 %v1808
        %1856 = vmatprep.subr.mxu0 0.0
        %1857 = vmatpush2.msra.mxu0 0.0
        %1858 = vmatprep.subr.mxu0 0.0
        %1859 = vmatpush2.msra.mxu0 0.0
        %1860 = vmatprep.subr.mxu0 0.0
        %1861 = vmatpush2.msra.mxu0 0.0
        %1862 = vmatprep.subr.mxu0 0.0
        %1863 = vmatpush2.msra.mxu0 0.0
        %1864 = vmatprep.subr.mxu0 0.0
        %1865 = vmatpush2.msra.mxu0 0.0
        %1866 = vmatprep.subr.mxu0 0.0
        %1867 = vmatpush2.msra.mxu0 0.0
        %1868 = vmatprep.subr.mxu0 0.0
        %1869 = vmatpush2.msra.mxu0 0.0
        %1870 = vmatprep.subr.mxu0 0.0
        %1871 = vmatpush2.msra.mxu0 0.0
        %1872 = vmatprep.subr.mxu0 0.0
        %1873 = vmatpush2.msra.mxu0 0.0
        %1874 = vmatprep.subr.mxu0 0.0
        %1875 = vmatpush2.msra.mxu0 0.0
        %1876 = vmatprep.subr.mxu0 0.0
        %1877 = vmatpush2.msra.mxu0 0.0
        %1878 = vmatprep.subr.mxu0 0.0
        %1879 = vmatpush2.msra.mxu0 0.0
        %1880 = vmatprep.subr.mxu0 0.0
        %1881 = vmatpush2.msra.mxu0 0.0
        %1882 = vmatprep.subr.mxu0 0.0
        %1883 = vmatpush2.msra.mxu0 0.0
        %1884 = vmatprep.subr.mxu0 0.0
        %1885 = vmatpush2.msra.mxu0 0.0
        %1886 = vmatprep.subr.mxu0 0.0
        %1887 = vmatpush2.msra.mxu0 0.0
        %1888 = vmatprep.mubr.f32.mxu0 0.0
        %1889 = vmatmul.mubr.f32.gmra.mxu0 %v1791
        %v1890 = vpop.f32.mrf.mxu0
        %v1891 = vadd.f32 0.0, %v1890
        %v1892 = vpop.f32.mrf.mxu0
        %1893 = vmatprep.mubr.f32.mxu0 0.0
        %1894 = vmatmul.mubr.f32.gmra.mxu0 %v1792
        %v1895 = vpop.f32.mrf.mxu0
        %v1896 = vadd.f32 0.0, %v1895
        %v1897 = vpop.f32.mrf.mxu0
        %1898 = vmatprep.mubr.f32.mxu0 0.0
        %1899 = vmatmul.mubr.f32.gmra.mxu0 %v1793
        %v1900 = vpop.f32.mrf.mxu0
        %v1901 = vadd.f32 0.0, %v1900
        %v1902 = vpop.f32.mrf.mxu0
        %1903 = vmatprep.mubr.f32.mxu0 0.0
        %1904 = vmatmul.mubr.f32.gmra.mxu0 %v1794
        %v1905 = vpop.f32.mrf.mxu0
        %v1906 = vadd.f32 0.0, %v1905
        %v1907 = vpop.f32.mrf.mxu0
        %1908 = vmatprep.mubr.f32.mxu0 0.0
        %1909 = vmatmul.mubr.f32.gmra.mxu0 %v1795
        %v1910 = vpop.f32.mrf.mxu0
        %v1911 = vadd.f32 0.0, %v1910
        %v1912 = vpop.f32.mrf.mxu0
        %1913 = vmatprep.mubr.f32.mxu0 0.0
        %1914 = vmatmul.mubr.f32.gmra.mxu0 %v1796
        %v1915 = vpop.f32.mrf.mxu0
        %v1916 = vadd.f32 0.0, %v1915
        %v1917 = vpop.f32.mrf.mxu0
        %1918 = vmatprep.mubr.f32.mxu0 0.0
        %1919 = vmatmul.mubr.f32.gmra.mxu0 %v1797
        %v1920 = vpop.f32.mrf.mxu0
        %v1921 = vadd.f32 0.0, %v1920
        %v1922 = vpop.f32.mrf.mxu0
        %1923 = vmatprep.mubr.f32.mxu0 0.0
        %1924 = vmatmul.mubr.f32.gmra.mxu0 %v1798
        %v1925 = vpop.f32.mrf.mxu0
        %v1926 = vadd.f32 0.0, %v1925
        %v1927 = vpop.f32.mrf.mxu0
        %1928 = vmatprep.mubr.f32.mxu0 0.0
        %1929 = vmatmul.mubr.f32.gmra.mxu0 %v1799
        %v1930 = vpop.f32.mrf.mxu0
        %v1931 = vadd.f32 0.0, %v1930
        %v1932 = vpop.f32.mrf.mxu0
        %1933 = vmatprep.mubr.f32.mxu0 0.0
        %1934 = vmatmul.mubr.f32.gmra.mxu0 %v1800
        %v1935 = vpop.f32.mrf.mxu0
        %v1936 = vadd.f32 0.0, %v1935
        %v1937 = vpop.f32.mrf.mxu0
        %1938 = vmatprep.mubr.f32.mxu0 0.0
        %1939 = vmatmul.mubr.f32.gmra.mxu0 %v1801
        %v1940 = vpop.f32.mrf.mxu0
        %v1941 = vadd.f32 0.0, %v1940
        %v1942 = vpop.f32.mrf.mxu0
        %1943 = vmatprep.mubr.f32.mxu0 0.0
        %1944 = vmatmul.mubr.f32.gmra.mxu0 %v1802
        %v1945 = vpop.f32.mrf.mxu0
        %v1946 = vadd.f32 0.0, %v1945
        %v1947 = vpop.f32.mrf.mxu0
        %1948 = vmatprep.mubr.f32.mxu0 0.0
        %1949 = vmatmul.mubr.f32.gmra.mxu0 %v1803
        %v1950 = vpop.f32.mrf.mxu0
        %v1951 = vadd.f32 0.0, %v1950
        %v1952 = vpop.f32.mrf.mxu0
        %1953 = vmatprep.mubr.f32.mxu0 0.0
        %1954 = vmatmul.mubr.f32.gmra.mxu0 %v1804
        %v1955 = vpop.f32.mrf.mxu0
        %v1956 = vadd.f32 0.0, %v1955
        %v1957 = vpop.f32.mrf.mxu0
        %1958 = vmatprep.mubr.f32.mxu0 0.0
        %1959 = vmatmul.mubr.f32.gmra.mxu0 %v1805
        %v1960 = vpop.f32.mrf.mxu0
        %v1961 = vadd.f32 0.0, %v1960
        %v1962 = vpop.f32.mrf.mxu0
        %1963 = vmatprep.mubr.f32.mxu0 0.0
        %1964 = vmatmul.mubr.f32.gmra.mxu0 %v1806
        %v1965 = vpop.f32.mrf.mxu0
        %v1966 = vadd.f32 0.0, %v1965
        %v1967 = vpop.f32.mrf.mxu0
        %1968 = vdwg.mxu0
        %1969 = vmatprep.subr.mxu0 0.0
        %1970 = vmatpush1.msra.mxu0 %v1790
        %1971 = vmatprep.subr.mxu0 0.0
        %1972 = vmatpush1.msra.mxu0 %v1789
        %1973 = vmatprep.subr.mxu0 0.0
        %1974 = vmatpush1.msra.mxu0 %v1788
        %1975 = vmatprep.subr.mxu0 0.0
        %1976 = vmatpush1.msra.mxu0 %v1787
        %1977 = vmatprep.subr.mxu0 0.0
        %1978 = vmatpush1.msra.mxu0 %v1786
        %1979 = vmatprep.subr.mxu0 0.0
        %1980 = vmatpush1.msra.mxu0 %v1785
        %1981 = vmatprep.subr.mxu0 0.0
        %1982 = vmatpush1.msra.mxu0 %v1784
        %1983 = vmatprep.subr.mxu0 0.0
        %1984 = vmatpush1.msra.mxu0 %v1783
        %1985 = vmatprep.subr.mxu0 0.0
        %1986 = vmatpush1.msra.mxu0 %v1782
        %1987 = vmatprep.subr.mxu0 0.0
        %1988 = vmatpush1.msra.mxu0 %v1781
        %1989 = vmatprep.subr.mxu0 0.0
        %1990 = vmatpush1.msra.mxu0 %v1780
        %1991 = vmatprep.subr.mxu0 0.0
        %1992 = vmatpush1.msra.mxu0 %v1779
        %1993 = vmatprep.subr.mxu0 0.0
        %1994 = vmatpush1.msra.mxu0 %v1778
        %1995 = vmatprep.subr.mxu0 0.0
        %1996 = vmatpush1.msra.mxu0 %v1777
        %1997 = vmatprep.subr.mxu0 0.0
        %1998 = vmatpush1.msra.mxu0 %v1776
        %1999 = vmatprep.subr.mxu0 0.0
        %2000 = vmatpush1.msra.mxu0 %v1775
        %2001 = vmatprep.subr.mxu0 0.0
        %2002 = vmatpush2.msra.mxu0 0.0
        %2003 = vmatprep.subr.mxu0 0.0
        %2004 = vmatpush2.msra.mxu0 0.0
        %2005 = vmatprep.subr.mxu0 0.0
        %2006 = vmatpush2.msra.mxu0 0.0
        %2007 = vmatprep.subr.mxu0 0.0
        %2008 = vmatpush2.msra.mxu0 0.0
        %2009 = vmatprep.subr.mxu0 0.0
        %2010 = vmatpush2.msra.mxu0 0.0
        %2011 = vmatprep.subr.mxu0 0.0
        %2012 = vmatpush2.msra.mxu0 0.0
        %2013 = vmatprep.subr.mxu0 0.0
        %2014 = vmatpush2.msra.mxu0 0.0
        %2015 = vmatprep.subr.mxu0 0.0
        %2016 = vmatpush2.msra.mxu0 0.0
        %2017 = vmatprep.subr.mxu0 0.0
        %2018 = vmatpush2.msra.mxu0 0.0
        %2019 = vmatprep.subr.mxu0 0.0
        %2020 = vmatpush2.msra.mxu0 0.0
        %2021 = vmatprep.subr.mxu0 0.0
        %2022 = vmatpush2.msra.mxu0 0.0
        %2023 = vmatprep.subr.mxu0 0.0
        %2024 = vmatpush2.msra.mxu0 0.0
        %2025 = vmatprep.subr.mxu0 0.0
        %2026 = vmatpush2.msra.mxu0 0.0
        %2027 = vmatprep.subr.mxu0 0.0
        %2028 = vmatpush2.msra.mxu0 0.0
        %2029 = vmatprep.subr.mxu0 0.0
        %2030 = vmatpush2.msra.mxu0 0.0
        %2031 = vmatprep.subr.mxu0 0.0
        %2032 = vmatpush2.msra.mxu0 0.0
        %2033 = vmatprep.mubr.f32.mxu0 0.0
        %2034 = vmatmul.mubr.f32.gmra.mxu0 %v1758
        %v2035 = vpop.f32.mrf.mxu0
        %v2036 = vadd.f32 %v1891, %v2035
        %v2037 = vpop.f32.mrf.mxu0
        %2038 = vmatprep.mubr.f32.mxu0 0.0
        %2039 = vmatmul.mubr.f32.gmra.mxu0 %v1759
        %v2040 = vpop.f32.mrf.mxu0
        %v2041 = vadd.f32 %v1896, %v2040
        %v2042 = vpop.f32.mrf.mxu0
        %2043 = vmatprep.mubr.f32.mxu0 0.0
        %2044 = vmatmul.mubr.f32.gmra.mxu0 %v1760
        %v2045 = vpop.f32.mrf.mxu0
        %v2046 = vadd.f32 %v1901, %v2045
        %v2047 = vpop.f32.mrf.mxu0
        %2048 = vmatprep.mubr.f32.mxu0 0.0
        %2049 = vmatmul.mubr.f32.gmra.mxu0 %v1761
        %v2050 = vpop.f32.mrf.mxu0
        %v2051 = vadd.f32 %v1906, %v2050
        %v2052 = vpop.f32.mrf.mxu0
        %2053 = vmatprep.mubr.f32.mxu0 0.0
        %2054 = vmatmul.mubr.f32.gmra.mxu0 %v1762
        %v2055 = vpop.f32.mrf.mxu0
        %v2056 = vadd.f32 %v1911, %v2055
        %v2057 = vpop.f32.mrf.mxu0
        %2058 = vmatprep.mubr.f32.mxu0 0.0
        %2059 = vmatmul.mubr.f32.gmra.mxu0 %v1763
        %v2060 = vpop.f32.mrf.mxu0
        %v2061 = vadd.f32 %v1916, %v2060
        %v2062 = vpop.f32.mrf.mxu0
        %2063 = vmatprep.mubr.f32.mxu0 0.0
        %2064 = vmatmul.mubr.f32.gmra.mxu0 %v1764
        %v2065 = vpop.f32.mrf.mxu0
        %v2066 = vadd.f32 %v1921, %v2065
        %v2067 = vpop.f32.mrf.mxu0
        %2068 = vmatprep.mubr.f32.mxu0 0.0
        %2069 = vmatmul.mubr.f32.gmra.mxu0 %v1765
        %v2070 = vpop.f32.mrf.mxu0
        %v2071 = vadd.f32 %v1926, %v2070
        %v2072 = vpop.f32.mrf.mxu0
        %2073 = vmatprep.mubr.f32.mxu0 0.0
        %2074 = vmatmul.mubr.f32.gmra.mxu0 %v1766
        %v2075 = vpop.f32.mrf.mxu0
        %v2076 = vadd.f32 %v1931, %v2075
        %v2077 = vpop.f32.mrf.mxu0
        %2078 = vmatprep.mubr.f32.mxu0 0.0
        %2079 = vmatmul.mubr.f32.gmra.mxu0 %v1767
        %v2080 = vpop.f32.mrf.mxu0
        %v2081 = vadd.f32 %v1936, %v2080
        %v2082 = vpop.f32.mrf.mxu0
        %2083 = vmatprep.mubr.f32.mxu0 0.0
        %2084 = vmatmul.mubr.f32.gmra.mxu0 %v1768
        %v2085 = vpop.f32.mrf.mxu0
        %v2086 = vadd.f32 %v1941, %v2085
        %v2087 = vpop.f32.mrf.mxu0
        %2088 = vmatprep.mubr.f32.mxu0 0.0
        %2089 = vmatmul.mubr.f32.gmra.mxu0 %v1769
        %v2090 = vpop.f32.mrf.mxu0
        %v2091 = vadd.f32 %v1946, %v2090
        %v2092 = vpop.f32.mrf.mxu0
        %2093 = vmatprep.mubr.f32.mxu0 0.0
        %2094 = vmatmul.mubr.f32.gmra.mxu0 %v1770
        %v2095 = vpop.f32.mrf.mxu0
        %v2096 = vadd.f32 %v1951, %v2095
        %v2097 = vpop.f32.mrf.mxu0
        %2098 = vmatprep.mubr.f32.mxu0 0.0
        %2099 = vmatmul.mubr.f32.gmra.mxu0 %v1771
        %v2100 = vpop.f32.mrf.mxu0
        %v2101 = vadd.f32 %v1956, %v2100
        %v2102 = vpop.f32.mrf.mxu0
        %2103 = vmatprep.mubr.f32.mxu0 0.0
        %2104 = vmatmul.mubr.f32.gmra.mxu0 %v1772
        %v2105 = vpop.f32.mrf.mxu0
        %v2106 = vadd.f32 %v1961, %v2105
        %v2107 = vpop.f32.mrf.mxu0
        %2108 = vmatprep.mubr.f32.mxu0 0.0
        %2109 = vmatmul.mubr.f32.gmra.mxu0 %v1773
        %v2110 = vpop.f32.mrf.mxu0
        %v2111 = vadd.f32 %v1966, %v2110
        %v2112 = vpop.f32.mrf.mxu0
        %2113 = vdwg.mxu0
        %v2114 = vld [vmem:[#allocation2 + $0x6] sm:$0xff]
        %v2115 = vld [vmem:[#allocation2 + $0xe] sm:$0xff]
        %v2116 = vld [vmem:[#allocation2 + $0x1e] sm:$0xff]
        %v2117 = vld [vmem:[#allocation2 + $0x26] sm:$0xff]
        %v2118 = vld [vmem:[#allocation2 + $0x36] sm:$0xff]
        %v2119 = vld [vmem:[#allocation2 + $0x3e] sm:$0xff]
        %v2120 = vld [vmem:[#allocation2 + $0x4e] sm:$0xff]
        %v2121 = vld [vmem:[#allocation2 + $0x56] sm:$0xff]
        %v2122 = vld [vmem:[#allocation2 + $0x66] sm:$0xff]
        %v2123 = vld [vmem:[#allocation2 + $0x6e] sm:$0xff]
        %v2124 = vld [vmem:[#allocation2 + $0x7e] sm:$0xff]
        %v2125 = vld [vmem:[#allocation2 + $0x86] sm:$0xff]
        %v2126 = vld [vmem:[#allocation2 + $0x96] sm:$0xff]
        %v2127 = vld [vmem:[#allocation2 + $0x9e] sm:$0xff]
        %v2128 = vld [vmem:[#allocation2 + $0xae] sm:$0xff]
        %v2129 = vld [vmem:[#allocation2 + $0xb6] sm:$0xff]
        %s2130 = scalar_lea.vmem [#allocation9], 640
        %v2131 = vld [vmem:[%s2130] sm:$0xff]
        %v2132 = vld [vmem:[%s2130 + $0x8] sm:$0xff]
        %v2133 = vld [vmem:[%s2130 + $0x10] sm:$0xff]
        %v2134 = vld [vmem:[%s2130 + $0x18] sm:$0xff]
        %v2135 = vld [vmem:[%s2130 + $0x20] sm:$0xff]
        %v2136 = vld [vmem:[%s2130 + $0x28] sm:$0xff]
        %v2137 = vld [vmem:[%s2130 + $0x30] sm:$0xff]
        %v2138 = vld [vmem:[%s2130 + $0x38] sm:$0xff]
        %v2139 = vld [vmem:[%s2130 + $0x40] sm:$0xff]
        %v2140 = vld [vmem:[%s2130 + $0x48] sm:$0xff]
        %v2141 = vld [vmem:[%s2130 + $0x50] sm:$0xff]
        %v2142 = vld [vmem:[%s2130 + $0x58] sm:$0xff]
        %v2143 = vld [vmem:[%s2130 + $0x60] sm:$0xff]
        %v2144 = vld [vmem:[%s2130 + $0x68] sm:$0xff]
        %v2145 = vld [vmem:[%s2130 + $0x70] sm:$0xff]
        %v2146 = vld [vmem:[%s2130 + $0x78] sm:$0xff]
        %2147 = vmatprep.subr.mxu0 0.0
        %2148 = vmatpush1.msra.mxu0 %v2146
        %2149 = vmatprep.subr.mxu0 0.0
        %2150 = vmatpush1.msra.mxu0 %v2145
        %2151 = vmatprep.subr.mxu0 0.0
        %2152 = vmatpush1.msra.mxu0 %v2144
        %2153 = vmatprep.subr.mxu0 0.0
        %2154 = vmatpush1.msra.mxu0 %v2143
        %2155 = vmatprep.subr.mxu0 0.0
        %2156 = vmatpush1.msra.mxu0 %v2142
        %2157 = vmatprep.subr.mxu0 0.0
        %2158 = vmatpush1.msra.mxu0 %v2141
        %2159 = vmatprep.subr.mxu0 0.0
        %2160 = vmatpush1.msra.mxu0 %v2140
        %2161 = vmatprep.subr.mxu0 0.0
        %2162 = vmatpush1.msra.mxu0 %v2139
        %2163 = vmatprep.subr.mxu0 0.0
        %2164 = vmatpush1.msra.mxu0 %v2138
        %2165 = vmatprep.subr.mxu0 0.0
        %2166 = vmatpush1.msra.mxu0 %v2137
        %2167 = vmatprep.subr.mxu0 0.0
        %2168 = vmatpush1.msra.mxu0 %v2136
        %2169 = vmatprep.subr.mxu0 0.0
        %2170 = vmatpush1.msra.mxu0 %v2135
        %2171 = vmatprep.subr.mxu0 0.0
        %2172 = vmatpush1.msra.mxu0 %v2134
        %2173 = vmatprep.subr.mxu0 0.0
        %2174 = vmatpush1.msra.mxu0 %v2133
        %2175 = vmatprep.subr.mxu0 0.0
        %2176 = vmatpush1.msra.mxu0 %v2132
        %2177 = vmatprep.subr.mxu0 0.0
        %2178 = vmatpush1.msra.mxu0 %v2131
        %2179 = vmatprep.subr.mxu0 0.0
        %2180 = vmatpush2.msra.mxu0 0.0
        %2181 = vmatprep.subr.mxu0 0.0
        %2182 = vmatpush2.msra.mxu0 0.0
        %2183 = vmatprep.subr.mxu0 0.0
        %2184 = vmatpush2.msra.mxu0 0.0
        %2185 = vmatprep.subr.mxu0 0.0
        %2186 = vmatpush2.msra.mxu0 0.0
        %2187 = vmatprep.subr.mxu0 0.0
        %2188 = vmatpush2.msra.mxu0 0.0
        %2189 = vmatprep.subr.mxu0 0.0
        %2190 = vmatpush2.msra.mxu0 0.0
        %2191 = vmatprep.subr.mxu0 0.0
        %2192 = vmatpush2.msra.mxu0 0.0
        %2193 = vmatprep.subr.mxu0 0.0
        %2194 = vmatpush2.msra.mxu0 0.0
        %2195 = vmatprep.subr.mxu0 0.0
        %2196 = vmatpush2.msra.mxu0 0.0
        %2197 = vmatprep.subr.mxu0 0.0
        %2198 = vmatpush2.msra.mxu0 0.0
        %2199 = vmatprep.subr.mxu0 0.0
        %2200 = vmatpush2.msra.mxu0 0.0
        %2201 = vmatprep.subr.mxu0 0.0
        %2202 = vmatpush2.msra.mxu0 0.0
        %2203 = vmatprep.subr.mxu0 0.0
        %2204 = vmatpush2.msra.mxu0 0.0
        %2205 = vmatprep.subr.mxu0 0.0
        %2206 = vmatpush2.msra.mxu0 0.0
        %2207 = vmatprep.subr.mxu0 0.0
        %2208 = vmatpush2.msra.mxu0 0.0
        %2209 = vmatprep.subr.mxu0 0.0
        %2210 = vmatpush2.msra.mxu0 0.0
        %2211 = vmatprep.mubr.f32.mxu0 0.0
        %2212 = vmatmul.mubr.f32.gmra.mxu0 %v2114
        %v2213 = vpop.f32.mrf.mxu0
        %v2214 = vadd.f32 0.0, %v2213
        %v2215 = vpop.f32.mrf.mxu0
        %2216 = vmatprep.mubr.f32.mxu0 0.0
        %2217 = vmatmul.mubr.f32.gmra.mxu0 %v2115
        %v2218 = vpop.f32.mrf.mxu0
        %v2219 = vadd.f32 0.0, %v2218
        %v2220 = vpop.f32.mrf.mxu0
        %2221 = vmatprep.mubr.f32.mxu0 0.0
        %2222 = vmatmul.mubr.f32.gmra.mxu0 %v2116
        %v2223 = vpop.f32.mrf.mxu0
        %v2224 = vadd.f32 0.0, %v2223
        %v2225 = vpop.f32.mrf.mxu0
        %2226 = vmatprep.mubr.f32.mxu0 0.0
        %2227 = vmatmul.mubr.f32.gmra.mxu0 %v2117
        %v2228 = vpop.f32.mrf.mxu0
        %v2229 = vadd.f32 0.0, %v2228
        %v2230 = vpop.f32.mrf.mxu0
        %2231 = vmatprep.mubr.f32.mxu0 0.0
        %2232 = vmatmul.mubr.f32.gmra.mxu0 %v2118
        %v2233 = vpop.f32.mrf.mxu0
        %v2234 = vadd.f32 0.0, %v2233
        %v2235 = vpop.f32.mrf.mxu0
        %2236 = vmatprep.mubr.f32.mxu0 0.0
        %2237 = vmatmul.mubr.f32.gmra.mxu0 %v2119
        %v2238 = vpop.f32.mrf.mxu0
        %v2239 = vadd.f32 0.0, %v2238
        %v2240 = vpop.f32.mrf.mxu0
        %2241 = vmatprep.mubr.f32.mxu0 0.0
        %2242 = vmatmul.mubr.f32.gmra.mxu0 %v2120
        %v2243 = vpop.f32.mrf.mxu0
        %v2244 = vadd.f32 0.0, %v2243
        %v2245 = vpop.f32.mrf.mxu0
        %2246 = vmatprep.mubr.f32.mxu0 0.0
        %2247 = vmatmul.mubr.f32.gmra.mxu0 %v2121
        %v2248 = vpop.f32.mrf.mxu0
        %v2249 = vadd.f32 0.0, %v2248
        %v2250 = vpop.f32.mrf.mxu0
        %2251 = vmatprep.mubr.f32.mxu0 0.0
        %2252 = vmatmul.mubr.f32.gmra.mxu0 %v2122
        %v2253 = vpop.f32.mrf.mxu0
        %v2254 = vadd.f32 0.0, %v2253
        %v2255 = vpop.f32.mrf.mxu0
        %2256 = vmatprep.mubr.f32.mxu0 0.0
        %2257 = vmatmul.mubr.f32.gmra.mxu0 %v2123
        %v2258 = vpop.f32.mrf.mxu0
        %v2259 = vadd.f32 0.0, %v2258
        %v2260 = vpop.f32.mrf.mxu0
        %2261 = vmatprep.mubr.f32.mxu0 0.0
        %2262 = vmatmul.mubr.f32.gmra.mxu0 %v2124
        %v2263 = vpop.f32.mrf.mxu0
        %v2264 = vadd.f32 0.0, %v2263
        %v2265 = vpop.f32.mrf.mxu0
        %2266 = vmatprep.mubr.f32.mxu0 0.0
        %2267 = vmatmul.mubr.f32.gmra.mxu0 %v2125
        %v2268 = vpop.f32.mrf.mxu0
        %v2269 = vadd.f32 0.0, %v2268
        %v2270 = vpop.f32.mrf.mxu0
        %2271 = vmatprep.mubr.f32.mxu0 0.0
        %2272 = vmatmul.mubr.f32.gmra.mxu0 %v2126
        %v2273 = vpop.f32.mrf.mxu0
        %v2274 = vadd.f32 0.0, %v2273
        %v2275 = vpop.f32.mrf.mxu0
        %2276 = vmatprep.mubr.f32.mxu0 0.0
        %2277 = vmatmul.mubr.f32.gmra.mxu0 %v2127
        %v2278 = vpop.f32.mrf.mxu0
        %v2279 = vadd.f32 0.0, %v2278
        %v2280 = vpop.f32.mrf.mxu0
        %2281 = vmatprep.mubr.f32.mxu0 0.0
        %2282 = vmatmul.mubr.f32.gmra.mxu0 %v2128
        %v2283 = vpop.f32.mrf.mxu0
        %v2284 = vadd.f32 0.0, %v2283
        %v2285 = vpop.f32.mrf.mxu0
        %2286 = vmatprep.mubr.f32.mxu0 0.0
        %2287 = vmatmul.mubr.f32.gmra.mxu0 %v2129
        %v2288 = vpop.f32.mrf.mxu0
        %v2289 = vadd.f32 0.0, %v2288
        %v2290 = vpop.f32.mrf.mxu0
        %2291 = vdwg.mxu0
        %v2292 = vadd.f32 %v2036, %v2214
        %v2293 = vadd.f32 %v2041, %v2219
        %v2294 = vadd.f32 %v2046, %v2224
        %v2295 = vadd.f32 %v2051, %v2229
        %v2296 = vadd.f32 %v2056, %v2234
        %v2297 = vadd.f32 %v2061, %v2239
        %v2298 = vadd.f32 %v2066, %v2244
        %v2299 = vadd.f32 %v2071, %v2249
        %v2300 = vadd.f32 %v2076, %v2254
        %v2301 = vadd.f32 %v2081, %v2259
        %v2302 = vadd.f32 %v2086, %v2264
        %v2303 = vadd.f32 %v2091, %v2269
        %v2304 = vadd.f32 %v2096, %v2274
        %v2305 = vadd.f32 %v2101, %v2279
        %v2306 = vadd.f32 %v2106, %v2284
        %v2307 = vadd.f32 %v2111, %v2289
        %v2308 = vadd.f32 %v1540, %v2292
        %v2309 = vadd.f32 %v1541, %v2293
        %v2310 = vadd.f32 %v1542, %v2294
        %v2311 = vadd.f32 %v1543, %v2295
        %v2312 = vadd.f32 %v1544, %v2296
        %v2313 = vadd.f32 %v1545, %v2297
        %v2314 = vadd.f32 %v1546, %v2298
        %v2315 = vadd.f32 %v1547, %v2299
        %v2316 = vadd.f32 %v1548, %v2300
        %v2317 = vadd.f32 %v1549, %v2301
        %v2318 = vadd.f32 %v1550, %v2302
        %v2319 = vadd.f32 %v1551, %v2303
        %v2320 = vadd.f32 %v1552, %v2304
        %v2321 = vadd.f32 %v1553, %v2305
        %v2322 = vadd.f32 %v1554, %v2306
        %v2323 = vadd.f32 %v1555, %v2307
        %s2324 = scalar_lea.vmem [#allocation6], 256
        %v2325 = vld [vmem:[%s2324] sm:$0xff]
        %v2326 = vld [vmem:[%s2324 + $0x8] sm:$0xff]
        %v2327 = vld [vmem:[%s2324 + $0x10] sm:$0xff]
        %v2328 = vld [vmem:[%s2324 + $0x18] sm:$0xff]
        %v2329 = vld [vmem:[%s2324 + $0x20] sm:$0xff]
        %v2330 = vld [vmem:[%s2324 + $0x28] sm:$0xff]
        %v2331 = vld [vmem:[%s2324 + $0x30] sm:$0xff]
        %v2332 = vld [vmem:[%s2324 + $0x38] sm:$0xff]
        %v2333 = vld [vmem:[%s2324 + $0x40] sm:$0xff]
        %v2334 = vld [vmem:[%s2324 + $0x48] sm:$0xff]
        %v2335 = vld [vmem:[%s2324 + $0x50] sm:$0xff]
        %v2336 = vld [vmem:[%s2324 + $0x58] sm:$0xff]
        %v2337 = vld [vmem:[%s2324 + $0x60] sm:$0xff]
        %v2338 = vld [vmem:[%s2324 + $0x68] sm:$0xff]
        %v2339 = vld [vmem:[%s2324 + $0x70] sm:$0xff]
        %v2340 = vld [vmem:[%s2324 + $0x78] sm:$0xff]
        %s2341 = scalar_lea.vmem [#allocation8], 2
        %v2342 = vld [vmem:[%s2341] sm:$0x1]
        %v2344 = vlaneseq
        %v2345 = vshrl.u32 %v2344, 7
        %v2346 = vsub.s32 0, %v2345
        %v2347 = vrot.slane %v2342, %v2346
        %2349 = vmatprep.subr.mxu0 0.0
        %2350 = vmatpush1.msra.mxu0 %v2340
        %2351 = vmatprep.subr.mxu0 0.0
        %2352 = vmatpush1.msra.mxu0 %v2339
        %2353 = vmatprep.subr.mxu0 0.0
        %2354 = vmatpush1.msra.mxu0 %v2338
        %2355 = vmatprep.subr.mxu0 0.0
        %2356 = vmatpush1.msra.mxu0 %v2337
        %2357 = vmatprep.subr.mxu0 0.0
        %2358 = vmatpush1.msra.mxu0 %v2336
        %2359 = vmatprep.subr.mxu0 0.0
        %2360 = vmatpush1.msra.mxu0 %v2335
        %2361 = vmatprep.subr.mxu0 0.0
        %2362 = vmatpush1.msra.mxu0 %v2334
        %2363 = vmatprep.subr.mxu0 0.0
        %2364 = vmatpush1.msra.mxu0 %v2333
        %2365 = vmatprep.subr.mxu0 0.0
        %2366 = vmatpush1.msra.mxu0 %v2332
        %2367 = vmatprep.subr.mxu0 0.0
        %2368 = vmatpush1.msra.mxu0 %v2331
        %2369 = vmatprep.subr.mxu0 0.0
        %2370 = vmatpush1.msra.mxu0 %v2330
        %2371 = vmatprep.subr.mxu0 0.0
        %2372 = vmatpush1.msra.mxu0 %v2329
        %2373 = vmatprep.subr.mxu0 0.0
        %2374 = vmatpush1.msra.mxu0 %v2328
        %2375 = vmatprep.subr.mxu0 0.0
        %2376 = vmatpush1.msra.mxu0 %v2327
        %2377 = vmatprep.subr.mxu0 0.0
        %2378 = vmatpush1.msra.mxu0 %v2326
        %2379 = vmatprep.subr.mxu0 0.0
        %2380 = vmatpush1.msra.mxu0 %v2325
        %2381 = vmatprep.subr.mxu0 0.0
        %2382 = vmatpush2.msra.mxu0 0.0
        %2383 = vmatprep.subr.mxu0 0.0
        %2384 = vmatpush2.msra.mxu0 0.0
        %2385 = vmatprep.subr.mxu0 0.0
        %2386 = vmatpush2.msra.mxu0 0.0
        %2387 = vmatprep.subr.mxu0 0.0
        %2388 = vmatpush2.msra.mxu0 0.0
        %2389 = vmatprep.subr.mxu0 0.0
        %2390 = vmatpush2.msra.mxu0 0.0
        %2391 = vmatprep.subr.mxu0 0.0
        %2392 = vmatpush2.msra.mxu0 0.0
        %2393 = vmatprep.subr.mxu0 0.0
        %2394 = vmatpush2.msra.mxu0 0.0
        %2395 = vmatprep.subr.mxu0 0.0
        %2396 = vmatpush2.msra.mxu0 0.0
        %2397 = vmatprep.subr.mxu0 0.0
        %2398 = vmatpush2.msra.mxu0 0.0
        %2399 = vmatprep.subr.mxu0 0.0
        %2400 = vmatpush2.msra.mxu0 0.0
        %2401 = vmatprep.subr.mxu0 0.0
        %2402 = vmatpush2.msra.mxu0 0.0
        %2403 = vmatprep.subr.mxu0 0.0
        %2404 = vmatpush2.msra.mxu0 0.0
        %2405 = vmatprep.subr.mxu0 0.0
        %2406 = vmatpush2.msra.mxu0 0.0
        %2407 = vmatprep.subr.mxu0 0.0
        %2408 = vmatpush2.msra.mxu0 0.0
        %2409 = vmatprep.subr.mxu0 0.0
        %2410 = vmatpush2.msra.mxu0 0.0
        %2411 = vmatprep.subr.mxu0 0.0
        %2412 = vmatpush2.msra.mxu0 0.0
        %2413 = vmatprep.mubr.f32.mxu0 0.0
        %2414 = vmatmul.mubr.f32.gmra.mxu0 %v414
        %v2415 = vpop.f32.mrf.mxu0
        %v2416 = vadd.f32 %v2347, %v2415
        %v2417 = vpop.f32.mrf.mxu0
        %2418 = vmatprep.mubr.f32.mxu0 0.0
        %2419 = vmatmul.mubr.f32.gmra.mxu0 %v415
        %v2420 = vpop.f32.mrf.mxu0
        %v2421 = vadd.f32 %v2347, %v2420
        %v2422 = vpop.f32.mrf.mxu0
        %2423 = vmatprep.mubr.f32.mxu0 0.0
        %2424 = vmatmul.mubr.f32.gmra.mxu0 %v416
        %v2425 = vpop.f32.mrf.mxu0
        %v2426 = vadd.f32 %v2347, %v2425
        %v2427 = vpop.f32.mrf.mxu0
        %2428 = vmatprep.mubr.f32.mxu0 0.0
        %2429 = vmatmul.mubr.f32.gmra.mxu0 %v417
        %v2430 = vpop.f32.mrf.mxu0
        %v2431 = vadd.f32 %v2347, %v2430
        %v2432 = vpop.f32.mrf.mxu0
        %2433 = vmatprep.mubr.f32.mxu0 0.0
        %2434 = vmatmul.mubr.f32.gmra.mxu0 %v418
        %v2435 = vpop.f32.mrf.mxu0
        %v2436 = vadd.f32 %v2347, %v2435
        %v2437 = vpop.f32.mrf.mxu0
        %2438 = vmatprep.mubr.f32.mxu0 0.0
        %2439 = vmatmul.mubr.f32.gmra.mxu0 %v419
        %v2440 = vpop.f32.mrf.mxu0
        %v2441 = vadd.f32 %v2347, %v2440
        %v2442 = vpop.f32.mrf.mxu0
        %2443 = vmatprep.mubr.f32.mxu0 0.0
        %2444 = vmatmul.mubr.f32.gmra.mxu0 %v420
        %v2445 = vpop.f32.mrf.mxu0
        %v2446 = vadd.f32 %v2347, %v2445
        %v2447 = vpop.f32.mrf.mxu0
        %2448 = vmatprep.mubr.f32.mxu0 0.0
        %2449 = vmatmul.mubr.f32.gmra.mxu0 %v421
        %v2450 = vpop.f32.mrf.mxu0
        %v2451 = vadd.f32 %v2347, %v2450
        %v2452 = vpop.f32.mrf.mxu0
        %2453 = vmatprep.mubr.f32.mxu0 0.0
        %2454 = vmatmul.mubr.f32.gmra.mxu0 %v422
        %v2455 = vpop.f32.mrf.mxu0
        %v2456 = vadd.f32 %v2347, %v2455
        %v2457 = vpop.f32.mrf.mxu0
        %2458 = vmatprep.mubr.f32.mxu0 0.0
        %2459 = vmatmul.mubr.f32.gmra.mxu0 %v423
        %v2460 = vpop.f32.mrf.mxu0
        %v2461 = vadd.f32 %v2347, %v2460
        %v2462 = vpop.f32.mrf.mxu0
        %2463 = vmatprep.mubr.f32.mxu0 0.0
        %2464 = vmatmul.mubr.f32.gmra.mxu0 %v424
        %v2465 = vpop.f32.mrf.mxu0
        %v2466 = vadd.f32 %v2347, %v2465
        %v2467 = vpop.f32.mrf.mxu0
        %2468 = vmatprep.mubr.f32.mxu0 0.0
        %2469 = vmatmul.mubr.f32.gmra.mxu0 %v425
        %v2470 = vpop.f32.mrf.mxu0
        %v2471 = vadd.f32 %v2347, %v2470
        %v2472 = vpop.f32.mrf.mxu0
        %2473 = vmatprep.mubr.f32.mxu0 0.0
        %2474 = vmatmul.mubr.f32.gmra.mxu0 %v426
        %v2475 = vpop.f32.mrf.mxu0
        %v2476 = vadd.f32 %v2347, %v2475
        %v2477 = vpop.f32.mrf.mxu0
        %2478 = vmatprep.mubr.f32.mxu0 0.0
        %2479 = vmatmul.mubr.f32.gmra.mxu0 %v427
        %v2480 = vpop.f32.mrf.mxu0
        %v2481 = vadd.f32 %v2347, %v2480
        %v2482 = vpop.f32.mrf.mxu0
        %2483 = vmatprep.mubr.f32.mxu0 0.0
        %2484 = vmatmul.mubr.f32.gmra.mxu0 %v428
        %v2485 = vpop.f32.mrf.mxu0
        %v2486 = vadd.f32 %v2347, %v2485
        %v2487 = vpop.f32.mrf.mxu0
        %2488 = vmatprep.mubr.f32.mxu0 0.0
        %2489 = vmatmul.mubr.f32.gmra.mxu0 %v429
        %v2490 = vpop.f32.mrf.mxu0
        %v2491 = vadd.f32 %v2347, %v2490
        %v2492 = vpop.f32.mrf.mxu0
        %2493 = vdwg.mxu0
        %v2494 = vmax.f32 %v2416, 0.0
        %v2495 = vmax.f32 %v2421, 0.0
        %v2496 = vmax.f32 %v2426, 0.0
        %v2497 = vmax.f32 %v2431, 0.0
        %v2498 = vmax.f32 %v2436, 0.0
        %v2499 = vmax.f32 %v2441, 0.0
        %v2500 = vmax.f32 %v2446, 0.0
        %v2501 = vmax.f32 %v2451, 0.0
        %v2502 = vmax.f32 %v2456, 0.0
        %v2503 = vmax.f32 %v2461, 0.0
        %v2504 = vmax.f32 %v2466, 0.0
        %v2505 = vmax.f32 %v2471, 0.0
        %v2506 = vmax.f32 %v2476, 0.0
        %v2507 = vmax.f32 %v2481, 0.0
        %v2508 = vmax.f32 %v2486, 0.0
        %v2509 = vmax.f32 %v2491, 0.0
        %2510 = vst [vmem:[#allocation2 + $0x4] sm:$0xff] %v2494
        %2511 = vst [vmem:[#allocation2 + $0xc] sm:$0xff] %v2495
        %2512 = vst [vmem:[#allocation2 + $0x1c] sm:$0xff] %v2496
        %2513 = vst [vmem:[#allocation2 + $0x24] sm:$0xff] %v2497
        %2514 = vst [vmem:[#allocation2 + $0x34] sm:$0xff] %v2498
        %2515 = vst [vmem:[#allocation2 + $0x3c] sm:$0xff] %v2499
        %2516 = vst [vmem:[#allocation2 + $0x4c] sm:$0xff] %v2500
        %2517 = vst [vmem:[#allocation2 + $0x54] sm:$0xff] %v2501
        %2518 = vst [vmem:[#allocation2 + $0x64] sm:$0xff] %v2502
        %2519 = vst [vmem:[#allocation2 + $0x6c] sm:$0xff] %v2503
        %2520 = vst [vmem:[#allocation2 + $0x7c] sm:$0xff] %v2504
        %2521 = vst [vmem:[#allocation2 + $0x84] sm:$0xff] %v2505
        %2522 = vst [vmem:[#allocation2 + $0x94] sm:$0xff] %v2506
        %2523 = vst [vmem:[#allocation2 + $0x9c] sm:$0xff] %v2507
        %2524 = vst [vmem:[#allocation2 + $0xac] sm:$0xff] %v2508
        %2525 = vst [vmem:[#allocation2 + $0xb4] sm:$0xff] %v2509
        %v2526 = vld [vmem:[#allocation2 + $0x1] sm:$0xff]
        %v2527 = vld [vmem:[#allocation2 + $0x9] sm:$0xff]
        %v2528 = vld [vmem:[#allocation2 + $0x19] sm:$0xff]
        %v2529 = vld [vmem:[#allocation2 + $0x21] sm:$0xff]
        %v2530 = vld [vmem:[#allocation2 + $0x31] sm:$0xff]
        %v2531 = vld [vmem:[#allocation2 + $0x39] sm:$0xff]
        %v2532 = vld [vmem:[#allocation2 + $0x49] sm:$0xff]
        %v2533 = vld [vmem:[#allocation2 + $0x51] sm:$0xff]
        %v2534 = vld [vmem:[#allocation2 + $0x61] sm:$0xff]
        %v2535 = vld [vmem:[#allocation2 + $0x69] sm:$0xff]
        %v2536 = vld [vmem:[#allocation2 + $0x79] sm:$0xff]
        %v2537 = vld [vmem:[#allocation2 + $0x81] sm:$0xff]
        %v2538 = vld [vmem:[#allocation2 + $0x91] sm:$0xff]
        %v2539 = vld [vmem:[#allocation2 + $0x99] sm:$0xff]
        %v2540 = vld [vmem:[#allocation2 + $0xa9] sm:$0xff]
        %v2541 = vld [vmem:[#allocation2 + $0xb1] sm:$0xff]
        %s2542 = scalar_lea.vmem [#allocation9], 768
        %v2543 = vld [vmem:[%s2542] sm:$0xff]
        %v2544 = vld [vmem:[%s2542 + $0x8] sm:$0xff]
        %v2545 = vld [vmem:[%s2542 + $0x10] sm:$0xff]
        %v2546 = vld [vmem:[%s2542 + $0x18] sm:$0xff]
        %v2547 = vld [vmem:[%s2542 + $0x20] sm:$0xff]
        %v2548 = vld [vmem:[%s2542 + $0x28] sm:$0xff]
        %v2549 = vld [vmem:[%s2542 + $0x30] sm:$0xff]
        %v2550 = vld [vmem:[%s2542 + $0x38] sm:$0xff]
        %v2551 = vld [vmem:[%s2542 + $0x40] sm:$0xff]
        %v2552 = vld [vmem:[%s2542 + $0x48] sm:$0xff]
        %v2553 = vld [vmem:[%s2542 + $0x50] sm:$0xff]
        %v2554 = vld [vmem:[%s2542 + $0x58] sm:$0xff]
        %v2555 = vld [vmem:[%s2542 + $0x60] sm:$0xff]
        %v2556 = vld [vmem:[%s2542 + $0x68] sm:$0xff]
        %v2557 = vld [vmem:[%s2542 + $0x70] sm:$0xff]
        %v2558 = vld [vmem:[%s2542 + $0x78] sm:$0xff]
        %v2559 = vld [vmem:[#allocation2 + $0x4] sm:$0xff]
        %v2560 = vld [vmem:[#allocation2 + $0xc] sm:$0xff]
        %v2561 = vld [vmem:[#allocation2 + $0x1c] sm:$0xff]
        %v2562 = vld [vmem:[#allocation2 + $0x24] sm:$0xff]
        %v2563 = vld [vmem:[#allocation2 + $0x34] sm:$0xff]
        %v2564 = vld [vmem:[#allocation2 + $0x3c] sm:$0xff]
        %v2565 = vld [vmem:[#allocation2 + $0x4c] sm:$0xff]
        %v2566 = vld [vmem:[#allocation2 + $0x54] sm:$0xff]
        %v2567 = vld [vmem:[#allocation2 + $0x64] sm:$0xff]
        %v2568 = vld [vmem:[#allocation2 + $0x6c] sm:$0xff]
        %v2569 = vld [vmem:[#allocation2 + $0x7c] sm:$0xff]
        %v2570 = vld [vmem:[#allocation2 + $0x84] sm:$0xff]
        %v2571 = vld [vmem:[#allocation2 + $0x94] sm:$0xff]
        %v2572 = vld [vmem:[#allocation2 + $0x9c] sm:$0xff]
        %v2573 = vld [vmem:[#allocation2 + $0xac] sm:$0xff]
        %v2574 = vld [vmem:[#allocation2 + $0xb4] sm:$0xff]
        %s2575 = scalar_lea.vmem [#allocation9], 896
        %v2576 = vld [vmem:[%s2575] sm:$0xff]
        %v2577 = vld [vmem:[%s2575 + $0x8] sm:$0xff]
        %v2578 = vld [vmem:[%s2575 + $0x10] sm:$0xff]
        %v2579 = vld [vmem:[%s2575 + $0x18] sm:$0xff]
        %v2580 = vld [vmem:[%s2575 + $0x20] sm:$0xff]
        %v2581 = vld [vmem:[%s2575 + $0x28] sm:$0xff]
        %v2582 = vld [vmem:[%s2575 + $0x30] sm:$0xff]
        %v2583 = vld [vmem:[%s2575 + $0x38] sm:$0xff]
        %v2584 = vld [vmem:[%s2575 + $0x40] sm:$0xff]
        %v2585 = vld [vmem:[%s2575 + $0x48] sm:$0xff]
        %v2586 = vld [vmem:[%s2575 + $0x50] sm:$0xff]
        %v2587 = vld [vmem:[%s2575 + $0x58] sm:$0xff]
        %v2588 = vld [vmem:[%s2575 + $0x60] sm:$0xff]
        %v2589 = vld [vmem:[%s2575 + $0x68] sm:$0xff]
        %v2590 = vld [vmem:[%s2575 + $0x70] sm:$0xff]
        %v2591 = vld [vmem:[%s2575 + $0x78] sm:$0xff]
        %2592 = vmatprep.subr.mxu0 0.0
        %2593 = vmatpush1.msra.mxu0 %v2591
        %2594 = vmatprep.subr.mxu0 0.0
        %2595 = vmatpush1.msra.mxu0 %v2590
        %2596 = vmatprep.subr.mxu0 0.0
        %2597 = vmatpush1.msra.mxu0 %v2589
        %2598 = vmatprep.subr.mxu0 0.0
        %2599 = vmatpush1.msra.mxu0 %v2588
        %2600 = vmatprep.subr.mxu0 0.0
        %2601 = vmatpush1.msra.mxu0 %v2587
        %2602 = vmatprep.subr.mxu0 0.0
        %2603 = vmatpush1.msra.mxu0 %v2586
        %2604 = vmatprep.subr.mxu0 0.0
        %2605 = vmatpush1.msra.mxu0 %v2585
        %2606 = vmatprep.subr.mxu0 0.0
        %2607 = vmatpush1.msra.mxu0 %v2584
        %2608 = vmatprep.subr.mxu0 0.0
        %2609 = vmatpush1.msra.mxu0 %v2583
        %2610 = vmatprep.subr.mxu0 0.0
        %2611 = vmatpush1.msra.mxu0 %v2582
        %2612 = vmatprep.subr.mxu0 0.0
        %2613 = vmatpush1.msra.mxu0 %v2581
        %2614 = vmatprep.subr.mxu0 0.0
        %2615 = vmatpush1.msra.mxu0 %v2580
        %2616 = vmatprep.subr.mxu0 0.0
        %2617 = vmatpush1.msra.mxu0 %v2579
        %2618 = vmatprep.subr.mxu0 0.0
        %2619 = vmatpush1.msra.mxu0 %v2578
        %2620 = vmatprep.subr.mxu0 0.0
        %2621 = vmatpush1.msra.mxu0 %v2577
        %2622 = vmatprep.subr.mxu0 0.0
        %2623 = vmatpush1.msra.mxu0 %v2576
        %2624 = vmatprep.subr.mxu0 0.0
        %2625 = vmatpush2.msra.mxu0 0.0
        %2626 = vmatprep.subr.mxu0 0.0
        %2627 = vmatpush2.msra.mxu0 0.0
        %2628 = vmatprep.subr.mxu0 0.0
        %2629 = vmatpush2.msra.mxu0 0.0
        %2630 = vmatprep.subr.mxu0 0.0
        %2631 = vmatpush2.msra.mxu0 0.0
        %2632 = vmatprep.subr.mxu0 0.0
        %2633 = vmatpush2.msra.mxu0 0.0
        %2634 = vmatprep.subr.mxu0 0.0
        %2635 = vmatpush2.msra.mxu0 0.0
        %2636 = vmatprep.subr.mxu0 0.0
        %2637 = vmatpush2.msra.mxu0 0.0
        %2638 = vmatprep.subr.mxu0 0.0
        %2639 = vmatpush2.msra.mxu0 0.0
        %2640 = vmatprep.subr.mxu0 0.0
        %2641 = vmatpush2.msra.mxu0 0.0
        %2642 = vmatprep.subr.mxu0 0.0
        %2643 = vmatpush2.msra.mxu0 0.0
        %2644 = vmatprep.subr.mxu0 0.0
        %2645 = vmatpush2.msra.mxu0 0.0
        %2646 = vmatprep.subr.mxu0 0.0
        %2647 = vmatpush2.msra.mxu0 0.0
        %2648 = vmatprep.subr.mxu0 0.0
        %2649 = vmatpush2.msra.mxu0 0.0
        %2650 = vmatprep.subr.mxu0 0.0
        %2651 = vmatpush2.msra.mxu0 0.0
        %2652 = vmatprep.subr.mxu0 0.0
        %2653 = vmatpush2.msra.mxu0 0.0
        %2654 = vmatprep.subr.mxu0 0.0
        %2655 = vmatpush2.msra.mxu0 0.0
        %2656 = vmatprep.mubr.f32.mxu0 0.0
        %2657 = vmatmul.mubr.f32.gmra.mxu0 %v2559
        %v2658 = vpop.f32.mrf.mxu0
        %v2659 = vadd.f32 0.0, %v2658
        %v2660 = vpop.f32.mrf.mxu0
        %2661 = vmatprep.mubr.f32.mxu0 0.0
        %2662 = vmatmul.mubr.f32.gmra.mxu0 %v2560
        %v2663 = vpop.f32.mrf.mxu0
        %v2664 = vadd.f32 0.0, %v2663
        %v2665 = vpop.f32.mrf.mxu0
        %2666 = vmatprep.mubr.f32.mxu0 0.0
        %2667 = vmatmul.mubr.f32.gmra.mxu0 %v2561
        %v2668 = vpop.f32.mrf.mxu0
        %v2669 = vadd.f32 0.0, %v2668
        %v2670 = vpop.f32.mrf.mxu0
        %2671 = vmatprep.mubr.f32.mxu0 0.0
        %2672 = vmatmul.mubr.f32.gmra.mxu0 %v2562
        %v2673 = vpop.f32.mrf.mxu0
        %v2674 = vadd.f32 0.0, %v2673
        %v2675 = vpop.f32.mrf.mxu0
        %2676 = vmatprep.mubr.f32.mxu0 0.0
        %2677 = vmatmul.mubr.f32.gmra.mxu0 %v2563
        %v2678 = vpop.f32.mrf.mxu0
        %v2679 = vadd.f32 0.0, %v2678
        %v2680 = vpop.f32.mrf.mxu0
        %2681 = vmatprep.mubr.f32.mxu0 0.0
        %2682 = vmatmul.mubr.f32.gmra.mxu0 %v2564
        %v2683 = vpop.f32.mrf.mxu0
        %v2684 = vadd.f32 0.0, %v2683
        %v2685 = vpop.f32.mrf.mxu0
        %2686 = vmatprep.mubr.f32.mxu0 0.0
        %2687 = vmatmul.mubr.f32.gmra.mxu0 %v2565
        %v2688 = vpop.f32.mrf.mxu0
        %v2689 = vadd.f32 0.0, %v2688
        %v2690 = vpop.f32.mrf.mxu0
        %2691 = vmatprep.mubr.f32.mxu0 0.0
        %2692 = vmatmul.mubr.f32.gmra.mxu0 %v2566
        %v2693 = vpop.f32.mrf.mxu0
        %v2694 = vadd.f32 0.0, %v2693
        %v2695 = vpop.f32.mrf.mxu0
        %2696 = vmatprep.mubr.f32.mxu0 0.0
        %2697 = vmatmul.mubr.f32.gmra.mxu0 %v2567
        %v2698 = vpop.f32.mrf.mxu0
        %v2699 = vadd.f32 0.0, %v2698
        %v2700 = vpop.f32.mrf.mxu0
        %2701 = vmatprep.mubr.f32.mxu0 0.0
        %2702 = vmatmul.mubr.f32.gmra.mxu0 %v2568
        %v2703 = vpop.f32.mrf.mxu0
        %v2704 = vadd.f32 0.0, %v2703
        %v2705 = vpop.f32.mrf.mxu0
        %2706 = vmatprep.mubr.f32.mxu0 0.0
        %2707 = vmatmul.mubr.f32.gmra.mxu0 %v2569
        %v2708 = vpop.f32.mrf.mxu0
        %v2709 = vadd.f32 0.0, %v2708
        %v2710 = vpop.f32.mrf.mxu0
        %2711 = vmatprep.mubr.f32.mxu0 0.0
        %2712 = vmatmul.mubr.f32.gmra.mxu0 %v2570
        %v2713 = vpop.f32.mrf.mxu0
        %v2714 = vadd.f32 0.0, %v2713
        %v2715 = vpop.f32.mrf.mxu0
        %2716 = vmatprep.mubr.f32.mxu0 0.0
        %2717 = vmatmul.mubr.f32.gmra.mxu0 %v2571
        %v2718 = vpop.f32.mrf.mxu0
        %v2719 = vadd.f32 0.0, %v2718
        %v2720 = vpop.f32.mrf.mxu0
        %2721 = vmatprep.mubr.f32.mxu0 0.0
        %2722 = vmatmul.mubr.f32.gmra.mxu0 %v2572
        %v2723 = vpop.f32.mrf.mxu0
        %v2724 = vadd.f32 0.0, %v2723
        %v2725 = vpop.f32.mrf.mxu0
        %2726 = vmatprep.mubr.f32.mxu0 0.0
        %2727 = vmatmul.mubr.f32.gmra.mxu0 %v2573
        %v2728 = vpop.f32.mrf.mxu0
        %v2729 = vadd.f32 0.0, %v2728
        %v2730 = vpop.f32.mrf.mxu0
        %2731 = vmatprep.mubr.f32.mxu0 0.0
        %2732 = vmatmul.mubr.f32.gmra.mxu0 %v2574
        %v2733 = vpop.f32.mrf.mxu0
        %v2734 = vadd.f32 0.0, %v2733
        %v2735 = vpop.f32.mrf.mxu0
        %2736 = vdwg.mxu0
        %2737 = vmatprep.subr.mxu0 0.0
        %2738 = vmatpush1.msra.mxu0 %v2558
        %2739 = vmatprep.subr.mxu0 0.0
        %2740 = vmatpush1.msra.mxu0 %v2557
        %2741 = vmatprep.subr.mxu0 0.0
        %2742 = vmatpush1.msra.mxu0 %v2556
        %2743 = vmatprep.subr.mxu0 0.0
        %2744 = vmatpush1.msra.mxu0 %v2555
        %2745 = vmatprep.subr.mxu0 0.0
        %2746 = vmatpush1.msra.mxu0 %v2554
        %2747 = vmatprep.subr.mxu0 0.0
        %2748 = vmatpush1.msra.mxu0 %v2553
        %2749 = vmatprep.subr.mxu0 0.0
        %2750 = vmatpush1.msra.mxu0 %v2552
        %2751 = vmatprep.subr.mxu0 0.0
        %2752 = vmatpush1.msra.mxu0 %v2551
        %2753 = vmatprep.subr.mxu0 0.0
        %2754 = vmatpush1.msra.mxu0 %v2550
        %2755 = vmatprep.subr.mxu0 0.0
        %2756 = vmatpush1.msra.mxu0 %v2549
        %2757 = vmatprep.subr.mxu0 0.0
        %2758 = vmatpush1.msra.mxu0 %v2548
        %2759 = vmatprep.subr.mxu0 0.0
        %2760 = vmatpush1.msra.mxu0 %v2547
        %2761 = vmatprep.subr.mxu0 0.0
        %2762 = vmatpush1.msra.mxu0 %v2546
        %2763 = vmatprep.subr.mxu0 0.0
        %2764 = vmatpush1.msra.mxu0 %v2545
        %2765 = vmatprep.subr.mxu0 0.0
        %2766 = vmatpush1.msra.mxu0 %v2544
        %2767 = vmatprep.subr.mxu0 0.0
        %2768 = vmatpush1.msra.mxu0 %v2543
        %2769 = vmatprep.subr.mxu0 0.0
        %2770 = vmatpush2.msra.mxu0 0.0
        %2771 = vmatprep.subr.mxu0 0.0
        %2772 = vmatpush2.msra.mxu0 0.0
        %2773 = vmatprep.subr.mxu0 0.0
        %2774 = vmatpush2.msra.mxu0 0.0
        %2775 = vmatprep.subr.mxu0 0.0
        %2776 = vmatpush2.msra.mxu0 0.0
        %2777 = vmatprep.subr.mxu0 0.0
        %2778 = vmatpush2.msra.mxu0 0.0
        %2779 = vmatprep.subr.mxu0 0.0
        %2780 = vmatpush2.msra.mxu0 0.0
        %2781 = vmatprep.subr.mxu0 0.0
        %2782 = vmatpush2.msra.mxu0 0.0
        %2783 = vmatprep.subr.mxu0 0.0
        %2784 = vmatpush2.msra.mxu0 0.0
        %2785 = vmatprep.subr.mxu0 0.0
        %2786 = vmatpush2.msra.mxu0 0.0
        %2787 = vmatprep.subr.mxu0 0.0
        %2788 = vmatpush2.msra.mxu0 0.0
        %2789 = vmatprep.subr.mxu0 0.0
        %2790 = vmatpush2.msra.mxu0 0.0
        %2791 = vmatprep.subr.mxu0 0.0
        %2792 = vmatpush2.msra.mxu0 0.0
        %2793 = vmatprep.subr.mxu0 0.0
        %2794 = vmatpush2.msra.mxu0 0.0
        %2795 = vmatprep.subr.mxu0 0.0
        %2796 = vmatpush2.msra.mxu0 0.0
        %2797 = vmatprep.subr.mxu0 0.0
        %2798 = vmatpush2.msra.mxu0 0.0
        %2799 = vmatprep.subr.mxu0 0.0
        %2800 = vmatpush2.msra.mxu0 0.0
        %2801 = vmatprep.mubr.f32.mxu0 0.0
        %2802 = vmatmul.mubr.f32.gmra.mxu0 %v2526
        %v2803 = vpop.f32.mrf.mxu0
        %v2804 = vadd.f32 %v2659, %v2803
        %v2805 = vpop.f32.mrf.mxu0
        %2806 = vmatprep.mubr.f32.mxu0 0.0
        %2807 = vmatmul.mubr.f32.gmra.mxu0 %v2527
        %v2808 = vpop.f32.mrf.mxu0
        %v2809 = vadd.f32 %v2664, %v2808
        %v2810 = vpop.f32.mrf.mxu0
        %2811 = vmatprep.mubr.f32.mxu0 0.0
        %2812 = vmatmul.mubr.f32.gmra.mxu0 %v2528
        %v2813 = vpop.f32.mrf.mxu0
        %v2814 = vadd.f32 %v2669, %v2813
        %v2815 = vpop.f32.mrf.mxu0
        %2816 = vmatprep.mubr.f32.mxu0 0.0
        %2817 = vmatmul.mubr.f32.gmra.mxu0 %v2529
        %v2818 = vpop.f32.mrf.mxu0
        %v2819 = vadd.f32 %v2674, %v2818
        %v2820 = vpop.f32.mrf.mxu0
        %2821 = vmatprep.mubr.f32.mxu0 0.0
        %2822 = vmatmul.mubr.f32.gmra.mxu0 %v2530
        %v2823 = vpop.f32.mrf.mxu0
        %v2824 = vadd.f32 %v2679, %v2823
        %v2825 = vpop.f32.mrf.mxu0
        %2826 = vmatprep.mubr.f32.mxu0 0.0
        %2827 = vmatmul.mubr.f32.gmra.mxu0 %v2531
        %v2828 = vpop.f32.mrf.mxu0
        %v2829 = vadd.f32 %v2684, %v2828
        %v2830 = vpop.f32.mrf.mxu0
        %2831 = vmatprep.mubr.f32.mxu0 0.0
        %2832 = vmatmul.mubr.f32.gmra.mxu0 %v2532
        %v2833 = vpop.f32.mrf.mxu0
        %v2834 = vadd.f32 %v2689, %v2833
        %v2835 = vpop.f32.mrf.mxu0
        %2836 = vmatprep.mubr.f32.mxu0 0.0
        %2837 = vmatmul.mubr.f32.gmra.mxu0 %v2533
        %v2838 = vpop.f32.mrf.mxu0
        %v2839 = vadd.f32 %v2694, %v2838
        %v2840 = vpop.f32.mrf.mxu0
        %2841 = vmatprep.mubr.f32.mxu0 0.0
        %2842 = vmatmul.mubr.f32.gmra.mxu0 %v2534
        %v2843 = vpop.f32.mrf.mxu0
        %v2844 = vadd.f32 %v2699, %v2843
        %v2845 = vpop.f32.mrf.mxu0
        %2846 = vmatprep.mubr.f32.mxu0 0.0
        %2847 = vmatmul.mubr.f32.gmra.mxu0 %v2535
        %v2848 = vpop.f32.mrf.mxu0
        %v2849 = vadd.f32 %v2704, %v2848
        %v2850 = vpop.f32.mrf.mxu0
        %2851 = vmatprep.mubr.f32.mxu0 0.0
        %2852 = vmatmul.mubr.f32.gmra.mxu0 %v2536
        %v2853 = vpop.f32.mrf.mxu0
        %v2854 = vadd.f32 %v2709, %v2853
        %v2855 = vpop.f32.mrf.mxu0
        %2856 = vmatprep.mubr.f32.mxu0 0.0
        %2857 = vmatmul.mubr.f32.gmra.mxu0 %v2537
        %v2858 = vpop.f32.mrf.mxu0
        %v2859 = vadd.f32 %v2714, %v2858
        %v2860 = vpop.f32.mrf.mxu0
        %2861 = vmatprep.mubr.f32.mxu0 0.0
        %2862 = vmatmul.mubr.f32.gmra.mxu0 %v2538
        %v2863 = vpop.f32.mrf.mxu0
        %v2864 = vadd.f32 %v2719, %v2863
        %v2865 = vpop.f32.mrf.mxu0
        %2866 = vmatprep.mubr.f32.mxu0 0.0
        %2867 = vmatmul.mubr.f32.gmra.mxu0 %v2539
        %v2868 = vpop.f32.mrf.mxu0
        %v2869 = vadd.f32 %v2724, %v2868
        %v2870 = vpop.f32.mrf.mxu0
        %2871 = vmatprep.mubr.f32.mxu0 0.0
        %2872 = vmatmul.mubr.f32.gmra.mxu0 %v2540
        %v2873 = vpop.f32.mrf.mxu0
        %v2874 = vadd.f32 %v2729, %v2873
        %v2875 = vpop.f32.mrf.mxu0
        %2876 = vmatprep.mubr.f32.mxu0 0.0
        %2877 = vmatmul.mubr.f32.gmra.mxu0 %v2541
        %v2878 = vpop.f32.mrf.mxu0
        %v2879 = vadd.f32 %v2734, %v2878
        %v2880 = vpop.f32.mrf.mxu0
        %2881 = vdwg.mxu0
        %v2882 = vld [vmem:[#allocation2 + $0x7] sm:$0xff]
        %v2883 = vld [vmem:[#allocation2 + $0xf] sm:$0xff]
        %v2884 = vld [vmem:[#allocation2 + $0x1f] sm:$0xff]
        %v2885 = vld [vmem:[#allocation2 + $0x27] sm:$0xff]
        %v2886 = vld [vmem:[#allocation2 + $0x37] sm:$0xff]
        %v2887 = vld [vmem:[#allocation2 + $0x3f] sm:$0xff]
        %v2888 = vld [vmem:[#allocation2 + $0x4f] sm:$0xff]
        %v2889 = vld [vmem:[#allocation2 + $0x57] sm:$0xff]
        %v2890 = vld [vmem:[#allocation2 + $0x67] sm:$0xff]
        %v2891 = vld [vmem:[#allocation2 + $0x6f] sm:$0xff]
        %v2892 = vld [vmem:[#allocation2 + $0x7f] sm:$0xff]
        %v2893 = vld [vmem:[#allocation2 + $0x87] sm:$0xff]
        %v2894 = vld [vmem:[#allocation2 + $0x97] sm:$0xff]
        %v2895 = vld [vmem:[#allocation2 + $0x9f] sm:$0xff]
        %v2896 = vld [vmem:[#allocation2 + $0xaf] sm:$0xff]
        %v2897 = vld [vmem:[#allocation2 + $0xb7] sm:$0xff]
        %s2898 = scalar_lea.vmem [#allocation9], 1024
        %v2899 = vld [vmem:[%s2898] sm:$0xff]
        %v2900 = vld [vmem:[%s2898 + $0x8] sm:$0xff]
        %v2901 = vld [vmem:[%s2898 + $0x10] sm:$0xff]
        %v2902 = vld [vmem:[%s2898 + $0x18] sm:$0xff]
        %v2903 = vld [vmem:[%s2898 + $0x20] sm:$0xff]
        %v2904 = vld [vmem:[%s2898 + $0x28] sm:$0xff]
        %v2905 = vld [vmem:[%s2898 + $0x30] sm:$0xff]
        %v2906 = vld [vmem:[%s2898 + $0x38] sm:$0xff]
        %v2907 = vld [vmem:[%s2898 + $0x40] sm:$0xff]
        %v2908 = vld [vmem:[%s2898 + $0x48] sm:$0xff]
        %v2909 = vld [vmem:[%s2898 + $0x50] sm:$0xff]
        %v2910 = vld [vmem:[%s2898 + $0x58] sm:$0xff]
        %v2911 = vld [vmem:[%s2898 + $0x60] sm:$0xff]
        %v2912 = vld [vmem:[%s2898 + $0x68] sm:$0xff]
        %v2913 = vld [vmem:[%s2898 + $0x70] sm:$0xff]
        %v2914 = vld [vmem:[%s2898 + $0x78] sm:$0xff]
        %2915 = vmatprep.subr.mxu0 0.0
        %2916 = vmatpush1.msra.mxu0 %v2914
        %2917 = vmatprep.subr.mxu0 0.0
        %2918 = vmatpush1.msra.mxu0 %v2913
        %2919 = vmatprep.subr.mxu0 0.0
        %2920 = vmatpush1.msra.mxu0 %v2912
        %2921 = vmatprep.subr.mxu0 0.0
        %2922 = vmatpush1.msra.mxu0 %v2911
        %2923 = vmatprep.subr.mxu0 0.0
        %2924 = vmatpush1.msra.mxu0 %v2910
        %2925 = vmatprep.subr.mxu0 0.0
        %2926 = vmatpush1.msra.mxu0 %v2909
        %2927 = vmatprep.subr.mxu0 0.0
        %2928 = vmatpush1.msra.mxu0 %v2908
        %2929 = vmatprep.subr.mxu0 0.0
        %2930 = vmatpush1.msra.mxu0 %v2907
        %2931 = vmatprep.subr.mxu0 0.0
        %2932 = vmatpush1.msra.mxu0 %v2906
        %2933 = vmatprep.subr.mxu0 0.0
        %2934 = vmatpush1.msra.mxu0 %v2905
        %2935 = vmatprep.subr.mxu0 0.0
        %2936 = vmatpush1.msra.mxu0 %v2904
        %2937 = vmatprep.subr.mxu0 0.0
        %2938 = vmatpush1.msra.mxu0 %v2903
        %2939 = vmatprep.subr.mxu0 0.0
        %2940 = vmatpush1.msra.mxu0 %v2902
        %2941 = vmatprep.subr.mxu0 0.0
        %2942 = vmatpush1.msra.mxu0 %v2901
        %2943 = vmatprep.subr.mxu0 0.0
        %2944 = vmatpush1.msra.mxu0 %v2900
        %2945 = vmatprep.subr.mxu0 0.0
        %2946 = vmatpush1.msra.mxu0 %v2899
        %2947 = vmatprep.subr.mxu0 0.0
        %2948 = vmatpush2.msra.mxu0 0.0
        %2949 = vmatprep.subr.mxu0 0.0
        %2950 = vmatpush2.msra.mxu0 0.0
        %2951 = vmatprep.subr.mxu0 0.0
        %2952 = vmatpush2.msra.mxu0 0.0
        %2953 = vmatprep.subr.mxu0 0.0
        %2954 = vmatpush2.msra.mxu0 0.0
        %2955 = vmatprep.subr.mxu0 0.0
        %2956 = vmatpush2.msra.mxu0 0.0
        %2957 = vmatprep.subr.mxu0 0.0
        %2958 = vmatpush2.msra.mxu0 0.0
        %2959 = vmatprep.subr.mxu0 0.0
        %2960 = vmatpush2.msra.mxu0 0.0
        %2961 = vmatprep.subr.mxu0 0.0
        %2962 = vmatpush2.msra.mxu0 0.0
        %2963 = vmatprep.subr.mxu0 0.0
        %2964 = vmatpush2.msra.mxu0 0.0
        %2965 = vmatprep.subr.mxu0 0.0
        %2966 = vmatpush2.msra.mxu0 0.0
        %2967 = vmatprep.subr.mxu0 0.0
        %2968 = vmatpush2.msra.mxu0 0.0
        %2969 = vmatprep.subr.mxu0 0.0
        %2970 = vmatpush2.msra.mxu0 0.0
        %2971 = vmatprep.subr.mxu0 0.0
        %2972 = vmatpush2.msra.mxu0 0.0
        %2973 = vmatprep.subr.mxu0 0.0
        %2974 = vmatpush2.msra.mxu0 0.0
        %2975 = vmatprep.subr.mxu0 0.0
        %2976 = vmatpush2.msra.mxu0 0.0
        %2977 = vmatprep.subr.mxu0 0.0
        %2978 = vmatpush2.msra.mxu0 0.0
        %2979 = vmatprep.mubr.f32.mxu0 0.0
        %2980 = vmatmul.mubr.f32.gmra.mxu0 %v2882
        %v2981 = vpop.f32.mrf.mxu0
        %v2982 = vadd.f32 0.0, %v2981
        %v2983 = vpop.f32.mrf.mxu0
        %2984 = vmatprep.mubr.f32.mxu0 0.0
        %2985 = vmatmul.mubr.f32.gmra.mxu0 %v2883
        %v2986 = vpop.f32.mrf.mxu0
        %v2987 = vadd.f32 0.0, %v2986
        %v2988 = vpop.f32.mrf.mxu0
        %2989 = vmatprep.mubr.f32.mxu0 0.0
        %2990 = vmatmul.mubr.f32.gmra.mxu0 %v2884
        %v2991 = vpop.f32.mrf.mxu0
        %v2992 = vadd.f32 0.0, %v2991
        %v2993 = vpop.f32.mrf.mxu0
        %2994 = vmatprep.mubr.f32.mxu0 0.0
        %2995 = vmatmul.mubr.f32.gmra.mxu0 %v2885
        %v2996 = vpop.f32.mrf.mxu0
        %v2997 = vadd.f32 0.0, %v2996
        %v2998 = vpop.f32.mrf.mxu0
        %2999 = vmatprep.mubr.f32.mxu0 0.0
        %3000 = vmatmul.mubr.f32.gmra.mxu0 %v2886
        %v3001 = vpop.f32.mrf.mxu0
        %v3002 = vadd.f32 0.0, %v3001
        %v3003 = vpop.f32.mrf.mxu0
        %3004 = vmatprep.mubr.f32.mxu0 0.0
        %3005 = vmatmul.mubr.f32.gmra.mxu0 %v2887
        %v3006 = vpop.f32.mrf.mxu0
        %v3007 = vadd.f32 0.0, %v3006
        %v3008 = vpop.f32.mrf.mxu0
        %3009 = vmatprep.mubr.f32.mxu0 0.0
        %3010 = vmatmul.mubr.f32.gmra.mxu0 %v2888
        %v3011 = vpop.f32.mrf.mxu0
        %v3012 = vadd.f32 0.0, %v3011
        %v3013 = vpop.f32.mrf.mxu0
        %3014 = vmatprep.mubr.f32.mxu0 0.0
        %3015 = vmatmul.mubr.f32.gmra.mxu0 %v2889
        %v3016 = vpop.f32.mrf.mxu0
        %v3017 = vadd.f32 0.0, %v3016
        %v3018 = vpop.f32.mrf.mxu0
        %3019 = vmatprep.mubr.f32.mxu0 0.0
        %3020 = vmatmul.mubr.f32.gmra.mxu0 %v2890
        %v3021 = vpop.f32.mrf.mxu0
        %v3022 = vadd.f32 0.0, %v3021
        %v3023 = vpop.f32.mrf.mxu0
        %3024 = vmatprep.mubr.f32.mxu0 0.0
        %3025 = vmatmul.mubr.f32.gmra.mxu0 %v2891
        %v3026 = vpop.f32.mrf.mxu0
        %v3027 = vadd.f32 0.0, %v3026
        %v3028 = vpop.f32.mrf.mxu0
        %3029 = vmatprep.mubr.f32.mxu0 0.0
        %3030 = vmatmul.mubr.f32.gmra.mxu0 %v2892
        %v3031 = vpop.f32.mrf.mxu0
        %v3032 = vadd.f32 0.0, %v3031
        %v3033 = vpop.f32.mrf.mxu0
        %3034 = vmatprep.mubr.f32.mxu0 0.0
        %3035 = vmatmul.mubr.f32.gmra.mxu0 %v2893
        %v3036 = vpop.f32.mrf.mxu0
        %v3037 = vadd.f32 0.0, %v3036
        %v3038 = vpop.f32.mrf.mxu0
        %3039 = vmatprep.mubr.f32.mxu0 0.0
        %3040 = vmatmul.mubr.f32.gmra.mxu0 %v2894
        %v3041 = vpop.f32.mrf.mxu0
        %v3042 = vadd.f32 0.0, %v3041
        %v3043 = vpop.f32.mrf.mxu0
        %3044 = vmatprep.mubr.f32.mxu0 0.0
        %3045 = vmatmul.mubr.f32.gmra.mxu0 %v2895
        %v3046 = vpop.f32.mrf.mxu0
        %v3047 = vadd.f32 0.0, %v3046
        %v3048 = vpop.f32.mrf.mxu0
        %3049 = vmatprep.mubr.f32.mxu0 0.0
        %3050 = vmatmul.mubr.f32.gmra.mxu0 %v2896
        %v3051 = vpop.f32.mrf.mxu0
        %v3052 = vadd.f32 0.0, %v3051
        %v3053 = vpop.f32.mrf.mxu0
        %3054 = vmatprep.mubr.f32.mxu0 0.0
        %3055 = vmatmul.mubr.f32.gmra.mxu0 %v2897
        %v3056 = vpop.f32.mrf.mxu0
        %v3057 = vadd.f32 0.0, %v3056
        %v3058 = vpop.f32.mrf.mxu0
        %3059 = vdwg.mxu0
        %v3060 = vadd.f32 %v2804, %v2982
        %v3061 = vadd.f32 %v2809, %v2987
        %v3062 = vadd.f32 %v2814, %v2992
        %v3063 = vadd.f32 %v2819, %v2997
        %v3064 = vadd.f32 %v2824, %v3002
        %v3065 = vadd.f32 %v2829, %v3007
        %v3066 = vadd.f32 %v2834, %v3012
        %v3067 = vadd.f32 %v2839, %v3017
        %v3068 = vadd.f32 %v2844, %v3022
        %v3069 = vadd.f32 %v2849, %v3027
        %v3070 = vadd.f32 %v2854, %v3032
        %v3071 = vadd.f32 %v2859, %v3037
        %v3072 = vadd.f32 %v2864, %v3042
        %v3073 = vadd.f32 %v2869, %v3047
        %v3074 = vadd.f32 %v2874, %v3052
        %v3075 = vadd.f32 %v2879, %v3057
        %v3076 = vadd.f32 %v2308, %v3060
        %v3077 = vadd.f32 %v2309, %v3061
        %v3078 = vadd.f32 %v2310, %v3062
        %v3079 = vadd.f32 %v2311, %v3063
        %v3080 = vadd.f32 %v2312, %v3064
        %v3081 = vadd.f32 %v2313, %v3065
        %v3082 = vadd.f32 %v2314, %v3066
        %v3083 = vadd.f32 %v2315, %v3067
        %v3084 = vadd.f32 %v2316, %v3068
        %v3085 = vadd.f32 %v2317, %v3069
        %v3086 = vadd.f32 %v2318, %v3070
        %v3087 = vadd.f32 %v2319, %v3071
        %v3088 = vadd.f32 %v2320, %v3072
        %v3089 = vadd.f32 %v2321, %v3073
        %v3090 = vadd.f32 %v2322, %v3074
        %v3091 = vadd.f32 %v2323, %v3075
        %s3092 = scalar_lea.vmem [#allocation6], 384
        %v3093 = vld [vmem:[%s3092] sm:$0xff]
        %v3094 = vld [vmem:[%s3092 + $0x8] sm:$0xff]
        %v3095 = vld [vmem:[%s3092 + $0x10] sm:$0xff]
        %v3096 = vld [vmem:[%s3092 + $0x18] sm:$0xff]
        %v3097 = vld [vmem:[%s3092 + $0x20] sm:$0xff]
        %v3098 = vld [vmem:[%s3092 + $0x28] sm:$0xff]
        %v3099 = vld [vmem:[%s3092 + $0x30] sm:$0xff]
        %v3100 = vld [vmem:[%s3092 + $0x38] sm:$0xff]
        %v3101 = vld [vmem:[%s3092 + $0x40] sm:$0xff]
        %v3102 = vld [vmem:[%s3092 + $0x48] sm:$0xff]
        %v3103 = vld [vmem:[%s3092 + $0x50] sm:$0xff]
        %v3104 = vld [vmem:[%s3092 + $0x58] sm:$0xff]
        %v3105 = vld [vmem:[%s3092 + $0x60] sm:$0xff]
        %v3106 = vld [vmem:[%s3092 + $0x68] sm:$0xff]
        %v3107 = vld [vmem:[%s3092 + $0x70] sm:$0xff]
        %v3108 = vld [vmem:[%s3092 + $0x78] sm:$0xff]
        %s3109 = scalar_lea.vmem [#allocation8], 3
        %v3110 = vld [vmem:[%s3109] sm:$0x1]
        %v3112 = vlaneseq
        %v3113 = vshrl.u32 %v3112, 7
        %v3114 = vsub.s32 0, %v3113
        %v3115 = vrot.slane %v3110, %v3114
        %3117 = vmatprep.subr.mxu0 0.0
        %3118 = vmatpush1.msra.mxu0 %v3108
        %3119 = vmatprep.subr.mxu0 0.0
        %3120 = vmatpush1.msra.mxu0 %v3107
        %3121 = vmatprep.subr.mxu0 0.0
        %3122 = vmatpush1.msra.mxu0 %v3106
        %3123 = vmatprep.subr.mxu0 0.0
        %3124 = vmatpush1.msra.mxu0 %v3105
        %3125 = vmatprep.subr.mxu0 0.0
        %3126 = vmatpush1.msra.mxu0 %v3104
        %3127 = vmatprep.subr.mxu0 0.0
        %3128 = vmatpush1.msra.mxu0 %v3103
        %3129 = vmatprep.subr.mxu0 0.0
        %3130 = vmatpush1.msra.mxu0 %v3102
        %3131 = vmatprep.subr.mxu0 0.0
        %3132 = vmatpush1.msra.mxu0 %v3101
        %3133 = vmatprep.subr.mxu0 0.0
        %3134 = vmatpush1.msra.mxu0 %v3100
        %3135 = vmatprep.subr.mxu0 0.0
        %3136 = vmatpush1.msra.mxu0 %v3099
        %3137 = vmatprep.subr.mxu0 0.0
        %3138 = vmatpush1.msra.mxu0 %v3098
        %3139 = vmatprep.subr.mxu0 0.0
        %3140 = vmatpush1.msra.mxu0 %v3097
        %3141 = vmatprep.subr.mxu0 0.0
        %3142 = vmatpush1.msra.mxu0 %v3096
        %3143 = vmatprep.subr.mxu0 0.0
        %3144 = vmatpush1.msra.mxu0 %v3095
        %3145 = vmatprep.subr.mxu0 0.0
        %3146 = vmatpush1.msra.mxu0 %v3094
        %3147 = vmatprep.subr.mxu0 0.0
        %3148 = vmatpush1.msra.mxu0 %v3093
        %3149 = vmatprep.subr.mxu0 0.0
        %3150 = vmatpush2.msra.mxu0 0.0
        %3151 = vmatprep.subr.mxu0 0.0
        %3152 = vmatpush2.msra.mxu0 0.0
        %3153 = vmatprep.subr.mxu0 0.0
        %3154 = vmatpush2.msra.mxu0 0.0
        %3155 = vmatprep.subr.mxu0 0.0
        %3156 = vmatpush2.msra.mxu0 0.0
        %3157 = vmatprep.subr.mxu0 0.0
        %3158 = vmatpush2.msra.mxu0 0.0
        %3159 = vmatprep.subr.mxu0 0.0
        %3160 = vmatpush2.msra.mxu0 0.0
        %3161 = vmatprep.subr.mxu0 0.0
        %3162 = vmatpush2.msra.mxu0 0.0
        %3163 = vmatprep.subr.mxu0 0.0
        %3164 = vmatpush2.msra.mxu0 0.0
        %3165 = vmatprep.subr.mxu0 0.0
        %3166 = vmatpush2.msra.mxu0 0.0
        %3167 = vmatprep.subr.mxu0 0.0
        %3168 = vmatpush2.msra.mxu0 0.0
        %3169 = vmatprep.subr.mxu0 0.0
        %3170 = vmatpush2.msra.mxu0 0.0
        %3171 = vmatprep.subr.mxu0 0.0
        %3172 = vmatpush2.msra.mxu0 0.0
        %3173 = vmatprep.subr.mxu0 0.0
        %3174 = vmatpush2.msra.mxu0 0.0
        %3175 = vmatprep.subr.mxu0 0.0
        %3176 = vmatpush2.msra.mxu0 0.0
        %3177 = vmatprep.subr.mxu0 0.0
        %3178 = vmatpush2.msra.mxu0 0.0
        %3179 = vmatprep.subr.mxu0 0.0
        %3180 = vmatpush2.msra.mxu0 0.0
        %3181 = vmatprep.mubr.f32.mxu0 0.0
        %3182 = vmatmul.mubr.f32.gmra.mxu0 %v414
        %v3183 = vpop.f32.mrf.mxu0
        %v3184 = vadd.f32 %v3115, %v3183
        %v3185 = vpop.f32.mrf.mxu0
        %3186 = vmatprep.mubr.f32.mxu0 0.0
        %3187 = vmatmul.mubr.f32.gmra.mxu0 %v415
        %v3188 = vpop.f32.mrf.mxu0
        %v3189 = vadd.f32 %v3115, %v3188
        %v3190 = vpop.f32.mrf.mxu0
        %3191 = vmatprep.mubr.f32.mxu0 0.0
        %3192 = vmatmul.mubr.f32.gmra.mxu0 %v416
        %v3193 = vpop.f32.mrf.mxu0
        %v3194 = vadd.f32 %v3115, %v3193
        %v3195 = vpop.f32.mrf.mxu0
        %3196 = vmatprep.mubr.f32.mxu0 0.0
        %3197 = vmatmul.mubr.f32.gmra.mxu0 %v417
        %v3198 = vpop.f32.mrf.mxu0
        %v3199 = vadd.f32 %v3115, %v3198
        %v3200 = vpop.f32.mrf.mxu0
        %3201 = vmatprep.mubr.f32.mxu0 0.0
        %3202 = vmatmul.mubr.f32.gmra.mxu0 %v418
        %v3203 = vpop.f32.mrf.mxu0
        %v3204 = vadd.f32 %v3115, %v3203
        %v3205 = vpop.f32.mrf.mxu0
        %3206 = vmatprep.mubr.f32.mxu0 0.0
        %3207 = vmatmul.mubr.f32.gmra.mxu0 %v419
        %v3208 = vpop.f32.mrf.mxu0
        %v3209 = vadd.f32 %v3115, %v3208
        %v3210 = vpop.f32.mrf.mxu0
        %3211 = vmatprep.mubr.f32.mxu0 0.0
        %3212 = vmatmul.mubr.f32.gmra.mxu0 %v420
        %v3213 = vpop.f32.mrf.mxu0
        %v3214 = vadd.f32 %v3115, %v3213
        %v3215 = vpop.f32.mrf.mxu0
        %3216 = vmatprep.mubr.f32.mxu0 0.0
        %3217 = vmatmul.mubr.f32.gmra.mxu0 %v421
        %v3218 = vpop.f32.mrf.mxu0
        %v3219 = vadd.f32 %v3115, %v3218
        %v3220 = vpop.f32.mrf.mxu0
        %3221 = vmatprep.mubr.f32.mxu0 0.0
        %3222 = vmatmul.mubr.f32.gmra.mxu0 %v422
        %v3223 = vpop.f32.mrf.mxu0
        %v3224 = vadd.f32 %v3115, %v3223
        %v3225 = vpop.f32.mrf.mxu0
        %3226 = vmatprep.mubr.f32.mxu0 0.0
        %3227 = vmatmul.mubr.f32.gmra.mxu0 %v423
        %v3228 = vpop.f32.mrf.mxu0
        %v3229 = vadd.f32 %v3115, %v3228
        %v3230 = vpop.f32.mrf.mxu0
        %3231 = vmatprep.mubr.f32.mxu0 0.0
        %3232 = vmatmul.mubr.f32.gmra.mxu0 %v424
        %v3233 = vpop.f32.mrf.mxu0
        %v3234 = vadd.f32 %v3115, %v3233
        %v3235 = vpop.f32.mrf.mxu0
        %3236 = vmatprep.mubr.f32.mxu0 0.0
        %3237 = vmatmul.mubr.f32.gmra.mxu0 %v425
        %v3238 = vpop.f32.mrf.mxu0
        %v3239 = vadd.f32 %v3115, %v3238
        %v3240 = vpop.f32.mrf.mxu0
        %3241 = vmatprep.mubr.f32.mxu0 0.0
        %3242 = vmatmul.mubr.f32.gmra.mxu0 %v426
        %v3243 = vpop.f32.mrf.mxu0
        %v3244 = vadd.f32 %v3115, %v3243
        %v3245 = vpop.f32.mrf.mxu0
        %3246 = vmatprep.mubr.f32.mxu0 0.0
        %3247 = vmatmul.mubr.f32.gmra.mxu0 %v427
        %v3248 = vpop.f32.mrf.mxu0
        %v3249 = vadd.f32 %v3115, %v3248
        %v3250 = vpop.f32.mrf.mxu0
        %3251 = vmatprep.mubr.f32.mxu0 0.0
        %3252 = vmatmul.mubr.f32.gmra.mxu0 %v428
        %v3253 = vpop.f32.mrf.mxu0
        %v3254 = vadd.f32 %v3115, %v3253
        %v3255 = vpop.f32.mrf.mxu0
        %3256 = vmatprep.mubr.f32.mxu0 0.0
        %3257 = vmatmul.mubr.f32.gmra.mxu0 %v429
        %v3258 = vpop.f32.mrf.mxu0
        %v3259 = vadd.f32 %v3115, %v3258
        %v3260 = vpop.f32.mrf.mxu0
        %3261 = vdwg.mxu0
        %v3262 = vmax.f32 %v3184, 0.0
        %v3263 = vmax.f32 %v3189, 0.0
        %v3264 = vmax.f32 %v3194, 0.0
        %v3265 = vmax.f32 %v3199, 0.0
        %v3266 = vmax.f32 %v3204, 0.0
        %v3267 = vmax.f32 %v3209, 0.0
        %v3268 = vmax.f32 %v3214, 0.0
        %v3269 = vmax.f32 %v3219, 0.0
        %v3270 = vmax.f32 %v3224, 0.0
        %v3271 = vmax.f32 %v3229, 0.0
        %v3272 = vmax.f32 %v3234, 0.0
        %v3273 = vmax.f32 %v3239, 0.0
        %v3274 = vmax.f32 %v3244, 0.0
        %v3275 = vmax.f32 %v3249, 0.0
        %v3276 = vmax.f32 %v3254, 0.0
        %v3277 = vmax.f32 %v3259, 0.0
        %3278 = vst [vmem:[#allocation2 + $0x4] sm:$0xff] %v3262
        %3279 = vst [vmem:[#allocation2 + $0xc] sm:$0xff] %v3263
        %3280 = vst [vmem:[#allocation2 + $0x1c] sm:$0xff] %v3264
        %3281 = vst [vmem:[#allocation2 + $0x24] sm:$0xff] %v3265
        %3282 = vst [vmem:[#allocation2 + $0x34] sm:$0xff] %v3266
        %3283 = vst [vmem:[#allocation2 + $0x3c] sm:$0xff] %v3267
        %3284 = vst [vmem:[#allocation2 + $0x4c] sm:$0xff] %v3268
        %3285 = vst [vmem:[#allocation2 + $0x54] sm:$0xff] %v3269
        %3286 = vst [vmem:[#allocation2 + $0x64] sm:$0xff] %v3270
        %3287 = vst [vmem:[#allocation2 + $0x6c] sm:$0xff] %v3271
        %3288 = vst [vmem:[#allocation2 + $0x7c] sm:$0xff] %v3272
        %3289 = vst [vmem:[#allocation2 + $0x84] sm:$0xff] %v3273
        %3290 = vst [vmem:[#allocation2 + $0x94] sm:$0xff] %v3274
        %3291 = vst [vmem:[#allocation2 + $0x9c] sm:$0xff] %v3275
        %3292 = vst [vmem:[#allocation2 + $0xac] sm:$0xff] %v3276
        %3293 = vst [vmem:[#allocation2 + $0xb4] sm:$0xff] %v3277
        %v3294 = vld [vmem:[#allocation2] sm:$0xff]
        %v3295 = vld [vmem:[#allocation2 + $0x8] sm:$0xff]
        %v3296 = vld [vmem:[#allocation2 + $0x18] sm:$0xff]
        %v3297 = vld [vmem:[#allocation2 + $0x20] sm:$0xff]
        %v3298 = vld [vmem:[#allocation2 + $0x30] sm:$0xff]
        %v3299 = vld [vmem:[#allocation2 + $0x38] sm:$0xff]
        %v3300 = vld [vmem:[#allocation2 + $0x48] sm:$0xff]
        %v3301 = vld [vmem:[#allocation2 + $0x50] sm:$0xff]
        %v3302 = vld [vmem:[#allocation2 + $0x60] sm:$0xff]
        %v3303 = vld [vmem:[#allocation2 + $0x68] sm:$0xff]
        %v3304 = vld [vmem:[#allocation2 + $0x78] sm:$0xff]
        %v3305 = vld [vmem:[#allocation2 + $0x80] sm:$0xff]
        %v3306 = vld [vmem:[#allocation2 + $0x90] sm:$0xff]
        %v3307 = vld [vmem:[#allocation2 + $0x98] sm:$0xff]
        %v3308 = vld [vmem:[#allocation2 + $0xa8] sm:$0xff]
        %v3309 = vld [vmem:[#allocation2 + $0xb0] sm:$0xff]
        %s3310 = scalar_lea.vmem [#allocation9], 1152
        %v3311 = vld [vmem:[%s3310] sm:$0xff]
        %v3312 = vld [vmem:[%s3310 + $0x8] sm:$0xff]
        %v3313 = vld [vmem:[%s3310 + $0x10] sm:$0xff]
        %v3314 = vld [vmem:[%s3310 + $0x18] sm:$0xff]
        %v3315 = vld [vmem:[%s3310 + $0x20] sm:$0xff]
        %v3316 = vld [vmem:[%s3310 + $0x28] sm:$0xff]
        %v3317 = vld [vmem:[%s3310 + $0x30] sm:$0xff]
        %v3318 = vld [vmem:[%s3310 + $0x38] sm:$0xff]
        %v3319 = vld [vmem:[%s3310 + $0x40] sm:$0xff]
        %v3320 = vld [vmem:[%s3310 + $0x48] sm:$0xff]
        %v3321 = vld [vmem:[%s3310 + $0x50] sm:$0xff]
        %v3322 = vld [vmem:[%s3310 + $0x58] sm:$0xff]
        %v3323 = vld [vmem:[%s3310 + $0x60] sm:$0xff]
        %v3324 = vld [vmem:[%s3310 + $0x68] sm:$0xff]
        %v3325 = vld [vmem:[%s3310 + $0x70] sm:$0xff]
        %v3326 = vld [vmem:[%s3310 + $0x78] sm:$0xff]
        %v3327 = vld [vmem:[#allocation2 + $0x4] sm:$0xff]
        %v3328 = vld [vmem:[#allocation2 + $0xc] sm:$0xff]
        %v3329 = vld [vmem:[#allocation2 + $0x1c] sm:$0xff]
        %v3330 = vld [vmem:[#allocation2 + $0x24] sm:$0xff]
        %v3331 = vld [vmem:[#allocation2 + $0x34] sm:$0xff]
        %v3332 = vld [vmem:[#allocation2 + $0x3c] sm:$0xff]
        %v3333 = vld [vmem:[#allocation2 + $0x4c] sm:$0xff]
        %v3334 = vld [vmem:[#allocation2 + $0x54] sm:$0xff]
        %v3335 = vld [vmem:[#allocation2 + $0x64] sm:$0xff]
        %v3336 = vld [vmem:[#allocation2 + $0x6c] sm:$0xff]
        %v3337 = vld [vmem:[#allocation2 + $0x7c] sm:$0xff]
        %v3338 = vld [vmem:[#allocation2 + $0x84] sm:$0xff]
        %v3339 = vld [vmem:[#allocation2 + $0x94] sm:$0xff]
        %v3340 = vld [vmem:[#allocation2 + $0x9c] sm:$0xff]
        %v3341 = vld [vmem:[#allocation2 + $0xac] sm:$0xff]
        %v3342 = vld [vmem:[#allocation2 + $0xb4] sm:$0xff]
        %s3343 = scalar_lea.vmem [#allocation9], 1280
        %v3344 = vld [vmem:[%s3343] sm:$0xff]
        %v3345 = vld [vmem:[%s3343 + $0x8] sm:$0xff]
        %v3346 = vld [vmem:[%s3343 + $0x10] sm:$0xff]
        %v3347 = vld [vmem:[%s3343 + $0x18] sm:$0xff]
        %v3348 = vld [vmem:[%s3343 + $0x20] sm:$0xff]
        %v3349 = vld [vmem:[%s3343 + $0x28] sm:$0xff]
        %v3350 = vld [vmem:[%s3343 + $0x30] sm:$0xff]
        %v3351 = vld [vmem:[%s3343 + $0x38] sm:$0xff]
        %v3352 = vld [vmem:[%s3343 + $0x40] sm:$0xff]
        %v3353 = vld [vmem:[%s3343 + $0x48] sm:$0xff]
        %v3354 = vld [vmem:[%s3343 + $0x50] sm:$0xff]
        %v3355 = vld [vmem:[%s3343 + $0x58] sm:$0xff]
        %v3356 = vld [vmem:[%s3343 + $0x60] sm:$0xff]
        %v3357 = vld [vmem:[%s3343 + $0x68] sm:$0xff]
        %v3358 = vld [vmem:[%s3343 + $0x70] sm:$0xff]
        %v3359 = vld [vmem:[%s3343 + $0x78] sm:$0xff]
        %3360 = vmatprep.subr.mxu0 0.0
        %3361 = vmatpush1.msra.mxu0 %v3359
        %3362 = vmatprep.subr.mxu0 0.0
        %3363 = vmatpush1.msra.mxu0 %v3358
        %3364 = vmatprep.subr.mxu0 0.0
        %3365 = vmatpush1.msra.mxu0 %v3357
        %3366 = vmatprep.subr.mxu0 0.0
        %3367 = vmatpush1.msra.mxu0 %v3356
        %3368 = vmatprep.subr.mxu0 0.0
        %3369 = vmatpush1.msra.mxu0 %v3355
        %3370 = vmatprep.subr.mxu0 0.0
        %3371 = vmatpush1.msra.mxu0 %v3354
        %3372 = vmatprep.subr.mxu0 0.0
        %3373 = vmatpush1.msra.mxu0 %v3353
        %3374 = vmatprep.subr.mxu0 0.0
        %3375 = vmatpush1.msra.mxu0 %v3352
        %3376 = vmatprep.subr.mxu0 0.0
        %3377 = vmatpush1.msra.mxu0 %v3351
        %3378 = vmatprep.subr.mxu0 0.0
        %3379 = vmatpush1.msra.mxu0 %v3350
        %3380 = vmatprep.subr.mxu0 0.0
        %3381 = vmatpush1.msra.mxu0 %v3349
        %3382 = vmatprep.subr.mxu0 0.0
        %3383 = vmatpush1.msra.mxu0 %v3348
        %3384 = vmatprep.subr.mxu0 0.0
        %3385 = vmatpush1.msra.mxu0 %v3347
        %3386 = vmatprep.subr.mxu0 0.0
        %3387 = vmatpush1.msra.mxu0 %v3346
        %3388 = vmatprep.subr.mxu0 0.0
        %3389 = vmatpush1.msra.mxu0 %v3345
        %3390 = vmatprep.subr.mxu0 0.0
        %3391 = vmatpush1.msra.mxu0 %v3344
        %3392 = vmatprep.subr.mxu0 0.0
        %3393 = vmatpush2.msra.mxu0 0.0
        %3394 = vmatprep.subr.mxu0 0.0
        %3395 = vmatpush2.msra.mxu0 0.0
        %3396 = vmatprep.subr.mxu0 0.0
        %3397 = vmatpush2.msra.mxu0 0.0
        %3398 = vmatprep.subr.mxu0 0.0
        %3399 = vmatpush2.msra.mxu0 0.0
        %3400 = vmatprep.subr.mxu0 0.0
        %3401 = vmatpush2.msra.mxu0 0.0
        %3402 = vmatprep.subr.mxu0 0.0
        %3403 = vmatpush2.msra.mxu0 0.0
        %3404 = vmatprep.subr.mxu0 0.0
        %3405 = vmatpush2.msra.mxu0 0.0
        %3406 = vmatprep.subr.mxu0 0.0
        %3407 = vmatpush2.msra.mxu0 0.0
        %3408 = vmatprep.subr.mxu0 0.0
        %3409 = vmatpush2.msra.mxu0 0.0
        %3410 = vmatprep.subr.mxu0 0.0
        %3411 = vmatpush2.msra.mxu0 0.0
        %3412 = vmatprep.subr.mxu0 0.0
        %3413 = vmatpush2.msra.mxu0 0.0
        %3414 = vmatprep.subr.mxu0 0.0
        %3415 = vmatpush2.msra.mxu0 0.0
        %3416 = vmatprep.subr.mxu0 0.0
        %3417 = vmatpush2.msra.mxu0 0.0
        %3418 = vmatprep.subr.mxu0 0.0
        %3419 = vmatpush2.msra.mxu0 0.0
        %3420 = vmatprep.subr.mxu0 0.0
        %3421 = vmatpush2.msra.mxu0 0.0
        %3422 = vmatprep.subr.mxu0 0.0
        %3423 = vmatpush2.msra.mxu0 0.0
        %3424 = vmatprep.mubr.f32.mxu0 0.0
        %3425 = vmatmul.mubr.f32.gmra.mxu0 %v3327
        %v3426 = vpop.f32.mrf.mxu0
        %v3427 = vadd.f32 0.0, %v3426
        %v3428 = vpop.f32.mrf.mxu0
        %3429 = vmatprep.mubr.f32.mxu0 0.0
        %3430 = vmatmul.mubr.f32.gmra.mxu0 %v3328
        %v3431 = vpop.f32.mrf.mxu0
        %v3432 = vadd.f32 0.0, %v3431
        %v3433 = vpop.f32.mrf.mxu0
        %3434 = vmatprep.mubr.f32.mxu0 0.0
        %3435 = vmatmul.mubr.f32.gmra.mxu0 %v3329
        %v3436 = vpop.f32.mrf.mxu0
        %v3437 = vadd.f32 0.0, %v3436
        %v3438 = vpop.f32.mrf.mxu0
        %3439 = vmatprep.mubr.f32.mxu0 0.0
        %3440 = vmatmul.mubr.f32.gmra.mxu0 %v3330
        %v3441 = vpop.f32.mrf.mxu0
        %v3442 = vadd.f32 0.0, %v3441
        %v3443 = vpop.f32.mrf.mxu0
        %3444 = vmatprep.mubr.f32.mxu0 0.0
        %3445 = vmatmul.mubr.f32.gmra.mxu0 %v3331
        %v3446 = vpop.f32.mrf.mxu0
        %v3447 = vadd.f32 0.0, %v3446
        %v3448 = vpop.f32.mrf.mxu0
        %3449 = vmatprep.mubr.f32.mxu0 0.0
        %3450 = vmatmul.mubr.f32.gmra.mxu0 %v3332
        %v3451 = vpop.f32.mrf.mxu0
        %v3452 = vadd.f32 0.0, %v3451
        %v3453 = vpop.f32.mrf.mxu0
        %3454 = vmatprep.mubr.f32.mxu0 0.0
        %3455 = vmatmul.mubr.f32.gmra.mxu0 %v3333
        %v3456 = vpop.f32.mrf.mxu0
        %v3457 = vadd.f32 0.0, %v3456
        %v3458 = vpop.f32.mrf.mxu0
        %3459 = vmatprep.mubr.f32.mxu0 0.0
        %3460 = vmatmul.mubr.f32.gmra.mxu0 %v3334
        %v3461 = vpop.f32.mrf.mxu0
        %v3462 = vadd.f32 0.0, %v3461
        %v3463 = vpop.f32.mrf.mxu0
        %3464 = vmatprep.mubr.f32.mxu0 0.0
        %3465 = vmatmul.mubr.f32.gmra.mxu0 %v3335
        %v3466 = vpop.f32.mrf.mxu0
        %v3467 = vadd.f32 0.0, %v3466
        %v3468 = vpop.f32.mrf.mxu0
        %3469 = vmatprep.mubr.f32.mxu0 0.0
        %3470 = vmatmul.mubr.f32.gmra.mxu0 %v3336
        %v3471 = vpop.f32.mrf.mxu0
        %v3472 = vadd.f32 0.0, %v3471
        %v3473 = vpop.f32.mrf.mxu0
        %3474 = vmatprep.mubr.f32.mxu0 0.0
        %3475 = vmatmul.mubr.f32.gmra.mxu0 %v3337
        %v3476 = vpop.f32.mrf.mxu0
        %v3477 = vadd.f32 0.0, %v3476
        %v3478 = vpop.f32.mrf.mxu0
        %3479 = vmatprep.mubr.f32.mxu0 0.0
        %3480 = vmatmul.mubr.f32.gmra.mxu0 %v3338
        %v3481 = vpop.f32.mrf.mxu0
        %v3482 = vadd.f32 0.0, %v3481
        %v3483 = vpop.f32.mrf.mxu0
        %3484 = vmatprep.mubr.f32.mxu0 0.0
        %3485 = vmatmul.mubr.f32.gmra.mxu0 %v3339
        %v3486 = vpop.f32.mrf.mxu0
        %v3487 = vadd.f32 0.0, %v3486
        %v3488 = vpop.f32.mrf.mxu0
        %3489 = vmatprep.mubr.f32.mxu0 0.0
        %3490 = vmatmul.mubr.f32.gmra.mxu0 %v3340
        %v3491 = vpop.f32.mrf.mxu0
        %v3492 = vadd.f32 0.0, %v3491
        %v3493 = vpop.f32.mrf.mxu0
        %3494 = vmatprep.mubr.f32.mxu0 0.0
        %3495 = vmatmul.mubr.f32.gmra.mxu0 %v3341
        %v3496 = vpop.f32.mrf.mxu0
        %v3497 = vadd.f32 0.0, %v3496
        %v3498 = vpop.f32.mrf.mxu0
        %3499 = vmatprep.mubr.f32.mxu0 0.0
        %3500 = vmatmul.mubr.f32.gmra.mxu0 %v3342
        %v3501 = vpop.f32.mrf.mxu0
        %v3502 = vadd.f32 0.0, %v3501
        %v3503 = vpop.f32.mrf.mxu0
        %3504 = vdwg.mxu0
        %3505 = vmatprep.subr.mxu0 0.0
        %3506 = vmatpush1.msra.mxu0 %v3326
        %3507 = vmatprep.subr.mxu0 0.0
        %3508 = vmatpush1.msra.mxu0 %v3325
        %3509 = vmatprep.subr.mxu0 0.0
        %3510 = vmatpush1.msra.mxu0 %v3324
        %3511 = vmatprep.subr.mxu0 0.0
        %3512 = vmatpush1.msra.mxu0 %v3323
        %3513 = vmatprep.subr.mxu0 0.0
        %3514 = vmatpush1.msra.mxu0 %v3322
        %3515 = vmatprep.subr.mxu0 0.0
        %3516 = vmatpush1.msra.mxu0 %v3321
        %3517 = vmatprep.subr.mxu0 0.0
        %3518 = vmatpush1.msra.mxu0 %v3320
        %3519 = vmatprep.subr.mxu0 0.0
        %3520 = vmatpush1.msra.mxu0 %v3319
        %3521 = vmatprep.subr.mxu0 0.0
        %3522 = vmatpush1.msra.mxu0 %v3318
        %3523 = vmatprep.subr.mxu0 0.0
        %3524 = vmatpush1.msra.mxu0 %v3317
        %3525 = vmatprep.subr.mxu0 0.0
        %3526 = vmatpush1.msra.mxu0 %v3316
        %3527 = vmatprep.subr.mxu0 0.0
        %3528 = vmatpush1.msra.mxu0 %v3315
        %3529 = vmatprep.subr.mxu0 0.0
        %3530 = vmatpush1.msra.mxu0 %v3314
        %3531 = vmatprep.subr.mxu0 0.0
        %3532 = vmatpush1.msra.mxu0 %v3313
        %3533 = vmatprep.subr.mxu0 0.0
        %3534 = vmatpush1.msra.mxu0 %v3312
        %3535 = vmatprep.subr.mxu0 0.0
        %3536 = vmatpush1.msra.mxu0 %v3311
        %3537 = vmatprep.subr.mxu0 0.0
        %3538 = vmatpush2.msra.mxu0 0.0
        %3539 = vmatprep.subr.mxu0 0.0
        %3540 = vmatpush2.msra.mxu0 0.0
        %3541 = vmatprep.subr.mxu0 0.0
        %3542 = vmatpush2.msra.mxu0 0.0
        %3543 = vmatprep.subr.mxu0 0.0
        %3544 = vmatpush2.msra.mxu0 0.0
        %3545 = vmatprep.subr.mxu0 0.0
        %3546 = vmatpush2.msra.mxu0 0.0
        %3547 = vmatprep.subr.mxu0 0.0
        %3548 = vmatpush2.msra.mxu0 0.0
        %3549 = vmatprep.subr.mxu0 0.0
        %3550 = vmatpush2.msra.mxu0 0.0
        %3551 = vmatprep.subr.mxu0 0.0
        %3552 = vmatpush2.msra.mxu0 0.0
        %3553 = vmatprep.subr.mxu0 0.0
        %3554 = vmatpush2.msra.mxu0 0.0
        %3555 = vmatprep.subr.mxu0 0.0
        %3556 = vmatpush2.msra.mxu0 0.0
        %3557 = vmatprep.subr.mxu0 0.0
        %3558 = vmatpush2.msra.mxu0 0.0
        %3559 = vmatprep.subr.mxu0 0.0
        %3560 = vmatpush2.msra.mxu0 0.0
        %3561 = vmatprep.subr.mxu0 0.0
        %3562 = vmatpush2.msra.mxu0 0.0
        %3563 = vmatprep.subr.mxu0 0.0
        %3564 = vmatpush2.msra.mxu0 0.0
        %3565 = vmatprep.subr.mxu0 0.0
        %3566 = vmatpush2.msra.mxu0 0.0
        %3567 = vmatprep.subr.mxu0 0.0
        %3568 = vmatpush2.msra.mxu0 0.0
        %3569 = vmatprep.mubr.f32.mxu0 0.0
        %3570 = vmatmul.mubr.f32.gmra.mxu0 %v3294
        %v3571 = vpop.f32.mrf.mxu0
        %v3572 = vadd.f32 %v3427, %v3571
        %v3573 = vpop.f32.mrf.mxu0
        %3574 = vmatprep.mubr.f32.mxu0 0.0
        %3575 = vmatmul.mubr.f32.gmra.mxu0 %v3295
        %v3576 = vpop.f32.mrf.mxu0
        %v3577 = vadd.f32 %v3432, %v3576
        %v3578 = vpop.f32.mrf.mxu0
        %3579 = vmatprep.mubr.f32.mxu0 0.0
        %3580 = vmatmul.mubr.f32.gmra.mxu0 %v3296
        %v3581 = vpop.f32.mrf.mxu0
        %v3582 = vadd.f32 %v3437, %v3581
        %v3583 = vpop.f32.mrf.mxu0
        %3584 = vmatprep.mubr.f32.mxu0 0.0
        %3585 = vmatmul.mubr.f32.gmra.mxu0 %v3297
        %v3586 = vpop.f32.mrf.mxu0
        %v3587 = vadd.f32 %v3442, %v3586
        %v3588 = vpop.f32.mrf.mxu0
        %3589 = vmatprep.mubr.f32.mxu0 0.0
        %3590 = vmatmul.mubr.f32.gmra.mxu0 %v3298
        %v3591 = vpop.f32.mrf.mxu0
        %v3592 = vadd.f32 %v3447, %v3591
        %v3593 = vpop.f32.mrf.mxu0
        %3594 = vmatprep.mubr.f32.mxu0 0.0
        %3595 = vmatmul.mubr.f32.gmra.mxu0 %v3299
        %v3596 = vpop.f32.mrf.mxu0
        %v3597 = vadd.f32 %v3452, %v3596
        %v3598 = vpop.f32.mrf.mxu0
        %3599 = vmatprep.mubr.f32.mxu0 0.0
        %3600 = vmatmul.mubr.f32.gmra.mxu0 %v3300
        %v3601 = vpop.f32.mrf.mxu0
        %v3602 = vadd.f32 %v3457, %v3601
        %v3603 = vpop.f32.mrf.mxu0
        %3604 = vmatprep.mubr.f32.mxu0 0.0
        %3605 = vmatmul.mubr.f32.gmra.mxu0 %v3301
        %v3606 = vpop.f32.mrf.mxu0
        %v3607 = vadd.f32 %v3462, %v3606
        %v3608 = vpop.f32.mrf.mxu0
        %3609 = vmatprep.mubr.f32.mxu0 0.0
        %3610 = vmatmul.mubr.f32.gmra.mxu0 %v3302
        %v3611 = vpop.f32.mrf.mxu0
        %v3612 = vadd.f32 %v3467, %v3611
        %v3613 = vpop.f32.mrf.mxu0
        %3614 = vmatprep.mubr.f32.mxu0 0.0
        %3615 = vmatmul.mubr.f32.gmra.mxu0 %v3303
        %v3616 = vpop.f32.mrf.mxu0
        %v3617 = vadd.f32 %v3472, %v3616
        %v3618 = vpop.f32.mrf.mxu0
        %3619 = vmatprep.mubr.f32.mxu0 0.0
        %3620 = vmatmul.mubr.f32.gmra.mxu0 %v3304
        %v3621 = vpop.f32.mrf.mxu0
        %v3622 = vadd.f32 %v3477, %v3621
        %v3623 = vpop.f32.mrf.mxu0
        %3624 = vmatprep.mubr.f32.mxu0 0.0
        %3625 = vmatmul.mubr.f32.gmra.mxu0 %v3305
        %v3626 = vpop.f32.mrf.mxu0
        %v3627 = vadd.f32 %v3482, %v3626
        %v3628 = vpop.f32.mrf.mxu0
        %3629 = vmatprep.mubr.f32.mxu0 0.0
        %3630 = vmatmul.mubr.f32.gmra.mxu0 %v3306
        %v3631 = vpop.f32.mrf.mxu0
        %v3632 = vadd.f32 %v3487, %v3631
        %v3633 = vpop.f32.mrf.mxu0
        %3634 = vmatprep.mubr.f32.mxu0 0.0
        %3635 = vmatmul.mubr.f32.gmra.mxu0 %v3307
        %v3636 = vpop.f32.mrf.mxu0
        %v3637 = vadd.f32 %v3492, %v3636
        %v3638 = vpop.f32.mrf.mxu0
        %3639 = vmatprep.mubr.f32.mxu0 0.0
        %3640 = vmatmul.mubr.f32.gmra.mxu0 %v3308
        %v3641 = vpop.f32.mrf.mxu0
        %v3642 = vadd.f32 %v3497, %v3641
        %v3643 = vpop.f32.mrf.mxu0
        %3644 = vmatprep.mubr.f32.mxu0 0.0
        %3645 = vmatmul.mubr.f32.gmra.mxu0 %v3309
        %v3646 = vpop.f32.mrf.mxu0
        %v3647 = vadd.f32 %v3502, %v3646
        %v3648 = vpop.f32.mrf.mxu0
        %3649 = vdwg.mxu0
        %v3650 = vld [vmem:[#allocation2 + $0x8] sm:$0xff]
        %v3651 = vld [vmem:[#allocation2 + $0x10] sm:$0xff]
        %v3652 = vld [vmem:[#allocation2 + $0x20] sm:$0xff]
        %v3653 = vld [vmem:[#allocation2 + $0x28] sm:$0xff]
        %v3654 = vld [vmem:[#allocation2 + $0x38] sm:$0xff]
        %v3655 = vld [vmem:[#allocation2 + $0x40] sm:$0xff]
        %v3656 = vld [vmem:[#allocation2 + $0x50] sm:$0xff]
        %v3657 = vld [vmem:[#allocation2 + $0x58] sm:$0xff]
        %v3658 = vld [vmem:[#allocation2 + $0x68] sm:$0xff]
        %v3659 = vld [vmem:[#allocation2 + $0x70] sm:$0xff]
        %v3660 = vld [vmem:[#allocation2 + $0x80] sm:$0xff]
        %v3661 = vld [vmem:[#allocation2 + $0x88] sm:$0xff]
        %v3662 = vld [vmem:[#allocation2 + $0x98] sm:$0xff]
        %v3663 = vld [vmem:[#allocation2 + $0xa0] sm:$0xff]
        %v3664 = vld [vmem:[#allocation2 + $0xb0] sm:$0xff]
        %v3665 = vld [vmem:[#allocation2 + $0xb8] sm:$0xff]
        %s3666 = scalar_lea.vmem [#allocation9], 1408
        %v3667 = vld [vmem:[%s3666] sm:$0xff]
        %v3668 = vld [vmem:[%s3666 + $0x8] sm:$0xff]
        %v3669 = vld [vmem:[%s3666 + $0x10] sm:$0xff]
        %v3670 = vld [vmem:[%s3666 + $0x18] sm:$0xff]
        %v3671 = vld [vmem:[%s3666 + $0x20] sm:$0xff]
        %v3672 = vld [vmem:[%s3666 + $0x28] sm:$0xff]
        %v3673 = vld [vmem:[%s3666 + $0x30] sm:$0xff]
        %v3674 = vld [vmem:[%s3666 + $0x38] sm:$0xff]
        %v3675 = vld [vmem:[%s3666 + $0x40] sm:$0xff]
        %v3676 = vld [vmem:[%s3666 + $0x48] sm:$0xff]
        %v3677 = vld [vmem:[%s3666 + $0x50] sm:$0xff]
        %v3678 = vld [vmem:[%s3666 + $0x58] sm:$0xff]
        %v3679 = vld [vmem:[%s3666 + $0x60] sm:$0xff]
        %v3680 = vld [vmem:[%s3666 + $0x68] sm:$0xff]
        %v3681 = vld [vmem:[%s3666 + $0x70] sm:$0xff]
        %v3682 = vld [vmem:[%s3666 + $0x78] sm:$0xff]
        %3683 = vmatprep.subr.mxu0 0.0
        %3684 = vmatpush1.msra.mxu0 %v3682
        %3685 = vmatprep.subr.mxu0 0.0
        %3686 = vmatpush1.msra.mxu0 %v3681
        %3687 = vmatprep.subr.mxu0 0.0
        %3688 = vmatpush1.msra.mxu0 %v3680
        %3689 = vmatprep.subr.mxu0 0.0
        %3690 = vmatpush1.msra.mxu0 %v3679
        %3691 = vmatprep.subr.mxu0 0.0
        %3692 = vmatpush1.msra.mxu0 %v3678
        %3693 = vmatprep.subr.mxu0 0.0
        %3694 = vmatpush1.msra.mxu0 %v3677
        %3695 = vmatprep.subr.mxu0 0.0
        %3696 = vmatpush1.msra.mxu0 %v3676
        %3697 = vmatprep.subr.mxu0 0.0
        %3698 = vmatpush1.msra.mxu0 %v3675
        %3699 = vmatprep.subr.mxu0 0.0
        %3700 = vmatpush1.msra.mxu0 %v3674
        %3701 = vmatprep.subr.mxu0 0.0
        %3702 = vmatpush1.msra.mxu0 %v3673
        %3703 = vmatprep.subr.mxu0 0.0
        %3704 = vmatpush1.msra.mxu0 %v3672
        %3705 = vmatprep.subr.mxu0 0.0
        %3706 = vmatpush1.msra.mxu0 %v3671
        %3707 = vmatprep.subr.mxu0 0.0
        %3708 = vmatpush1.msra.mxu0 %v3670
        %3709 = vmatprep.subr.mxu0 0.0
        %3710 = vmatpush1.msra.mxu0 %v3669
        %3711 = vmatprep.subr.mxu0 0.0
        %3712 = vmatpush1.msra.mxu0 %v3668
        %3713 = vmatprep.subr.mxu0 0.0
        %3714 = vmatpush1.msra.mxu0 %v3667
        %3715 = vmatprep.subr.mxu0 0.0
        %3716 = vmatpush2.msra.mxu0 0.0
        %3717 = vmatprep.subr.mxu0 0.0
        %3718 = vmatpush2.msra.mxu0 0.0
        %3719 = vmatprep.subr.mxu0 0.0
        %3720 = vmatpush2.msra.mxu0 0.0
        %3721 = vmatprep.subr.mxu0 0.0
        %3722 = vmatpush2.msra.mxu0 0.0
        %3723 = vmatprep.subr.mxu0 0.0
        %3724 = vmatpush2.msra.mxu0 0.0
        %3725 = vmatprep.subr.mxu0 0.0
        %3726 = vmatpush2.msra.mxu0 0.0
        %3727 = vmatprep.subr.mxu0 0.0
        %3728 = vmatpush2.msra.mxu0 0.0
        %3729 = vmatprep.subr.mxu0 0.0
        %3730 = vmatpush2.msra.mxu0 0.0
        %3731 = vmatprep.subr.mxu0 0.0
        %3732 = vmatpush2.msra.mxu0 0.0
        %3733 = vmatprep.subr.mxu0 0.0
        %3734 = vmatpush2.msra.mxu0 0.0
        %3735 = vmatprep.subr.mxu0 0.0
        %3736 = vmatpush2.msra.mxu0 0.0
        %3737 = vmatprep.subr.mxu0 0.0
        %3738 = vmatpush2.msra.mxu0 0.0
        %3739 = vmatprep.subr.mxu0 0.0
        %3740 = vmatpush2.msra.mxu0 0.0
        %3741 = vmatprep.subr.mxu0 0.0
        %3742 = vmatpush2.msra.mxu0 0.0
        %3743 = vmatprep.subr.mxu0 0.0
        %3744 = vmatpush2.msra.mxu0 0.0
        %3745 = vmatprep.subr.mxu0 0.0
        %3746 = vmatpush2.msra.mxu0 0.0
        %3747 = vmatprep.mubr.f32.mxu0 0.0
        %3748 = vmatmul.mubr.f32.gmra.mxu0 %v3650
        %v3749 = vpop.f32.mrf.mxu0
        %v3750 = vadd.f32 0.0, %v3749
        %v3751 = vpop.f32.mrf.mxu0
        %3752 = vmatprep.mubr.f32.mxu0 0.0
        %3753 = vmatmul.mubr.f32.gmra.mxu0 %v3651
        %v3754 = vpop.f32.mrf.mxu0
        %v3755 = vadd.f32 0.0, %v3754
        %v3756 = vpop.f32.mrf.mxu0
        %3757 = vmatprep.mubr.f32.mxu0 0.0
        %3758 = vmatmul.mubr.f32.gmra.mxu0 %v3652
        %v3759 = vpop.f32.mrf.mxu0
        %v3760 = vadd.f32 0.0, %v3759
        %v3761 = vpop.f32.mrf.mxu0
        %3762 = vmatprep.mubr.f32.mxu0 0.0
        %3763 = vmatmul.mubr.f32.gmra.mxu0 %v3653
        %v3764 = vpop.f32.mrf.mxu0
        %v3765 = vadd.f32 0.0, %v3764
        %v3766 = vpop.f32.mrf.mxu0
        %3767 = vmatprep.mubr.f32.mxu0 0.0
        %3768 = vmatmul.mubr.f32.gmra.mxu0 %v3654
        %v3769 = vpop.f32.mrf.mxu0
        %v3770 = vadd.f32 0.0, %v3769
        %v3771 = vpop.f32.mrf.mxu0
        %3772 = vmatprep.mubr.f32.mxu0 0.0
        %3773 = vmatmul.mubr.f32.gmra.mxu0 %v3655
        %v3774 = vpop.f32.mrf.mxu0
        %v3775 = vadd.f32 0.0, %v3774
        %v3776 = vpop.f32.mrf.mxu0
        %3777 = vmatprep.mubr.f32.mxu0 0.0
        %3778 = vmatmul.mubr.f32.gmra.mxu0 %v3656
        %v3779 = vpop.f32.mrf.mxu0
        %v3780 = vadd.f32 0.0, %v3779
        %v3781 = vpop.f32.mrf.mxu0
        %3782 = vmatprep.mubr.f32.mxu0 0.0
        %3783 = vmatmul.mubr.f32.gmra.mxu0 %v3657
        %v3784 = vpop.f32.mrf.mxu0
        %v3785 = vadd.f32 0.0, %v3784
        %v3786 = vpop.f32.mrf.mxu0
        %3787 = vmatprep.mubr.f32.mxu0 0.0
        %3788 = vmatmul.mubr.f32.gmra.mxu0 %v3658
        %v3789 = vpop.f32.mrf.mxu0
        %v3790 = vadd.f32 0.0, %v3789
        %v3791 = vpop.f32.mrf.mxu0
        %3792 = vmatprep.mubr.f32.mxu0 0.0
        %3793 = vmatmul.mubr.f32.gmra.mxu0 %v3659
        %v3794 = vpop.f32.mrf.mxu0
        %v3795 = vadd.f32 0.0, %v3794
        %v3796 = vpop.f32.mrf.mxu0
        %3797 = vmatprep.mubr.f32.mxu0 0.0
        %3798 = vmatmul.mubr.f32.gmra.mxu0 %v3660
        %v3799 = vpop.f32.mrf.mxu0
        %v3800 = vadd.f32 0.0, %v3799
        %v3801 = vpop.f32.mrf.mxu0
        %3802 = vmatprep.mubr.f32.mxu0 0.0
        %3803 = vmatmul.mubr.f32.gmra.mxu0 %v3661
        %v3804 = vpop.f32.mrf.mxu0
        %v3805 = vadd.f32 0.0, %v3804
        %v3806 = vpop.f32.mrf.mxu0
        %3807 = vmatprep.mubr.f32.mxu0 0.0
        %3808 = vmatmul.mubr.f32.gmra.mxu0 %v3662
        %v3809 = vpop.f32.mrf.mxu0
        %v3810 = vadd.f32 0.0, %v3809
        %v3811 = vpop.f32.mrf.mxu0
        %3812 = vmatprep.mubr.f32.mxu0 0.0
        %3813 = vmatmul.mubr.f32.gmra.mxu0 %v3663
        %v3814 = vpop.f32.mrf.mxu0
        %v3815 = vadd.f32 0.0, %v3814
        %v3816 = vpop.f32.mrf.mxu0
        %3817 = vmatprep.mubr.f32.mxu0 0.0
        %3818 = vmatmul.mubr.f32.gmra.mxu0 %v3664
        %v3819 = vpop.f32.mrf.mxu0
        %v3820 = vadd.f32 0.0, %v3819
        %v3821 = vpop.f32.mrf.mxu0
        %3822 = vmatprep.mubr.f32.mxu0 0.0
        %3823 = vmatmul.mubr.f32.gmra.mxu0 %v3665
        %v3824 = vpop.f32.mrf.mxu0
        %v3825 = vadd.f32 0.0, %v3824
        %v3826 = vpop.f32.mrf.mxu0
        %3827 = vdwg.mxu0
        %v3828 = vadd.f32 %v3572, %v3750
        %v3829 = vadd.f32 %v3577, %v3755
        %v3830 = vadd.f32 %v3582, %v3760
        %v3831 = vadd.f32 %v3587, %v3765
        %v3832 = vadd.f32 %v3592, %v3770
        %v3833 = vadd.f32 %v3597, %v3775
        %v3834 = vadd.f32 %v3602, %v3780
        %v3835 = vadd.f32 %v3607, %v3785
        %v3836 = vadd.f32 %v3612, %v3790
        %v3837 = vadd.f32 %v3617, %v3795
        %v3838 = vadd.f32 %v3622, %v3800
        %v3839 = vadd.f32 %v3627, %v3805
        %v3840 = vadd.f32 %v3632, %v3810
        %v3841 = vadd.f32 %v3637, %v3815
        %v3842 = vadd.f32 %v3642, %v3820
        %v3843 = vadd.f32 %v3647, %v3825
        %v3844 = vadd.f32 %v3076, %v3828
        %v3845 = vadd.f32 %v3077, %v3829
        %v3846 = vadd.f32 %v3078, %v3830
        %v3847 = vadd.f32 %v3079, %v3831
        %v3848 = vadd.f32 %v3080, %v3832
        %v3849 = vadd.f32 %v3081, %v3833
        %v3850 = vadd.f32 %v3082, %v3834
        %v3851 = vadd.f32 %v3083, %v3835
        %v3852 = vadd.f32 %v3084, %v3836
        %v3853 = vadd.f32 %v3085, %v3837
        %v3854 = vadd.f32 %v3086, %v3838
        %v3855 = vadd.f32 %v3087, %v3839
        %v3856 = vadd.f32 %v3088, %v3840
        %v3857 = vadd.f32 %v3089, %v3841
        %v3858 = vadd.f32 %v3090, %v3842
        %v3859 = vadd.f32 %v3091, %v3843
        %s3860 = scalar_lea.vmem [#allocation6], 512
        %v3861 = vld [vmem:[%s3860] sm:$0xff]
        %v3862 = vld [vmem:[%s3860 + $0x8] sm:$0xff]
        %v3863 = vld [vmem:[%s3860 + $0x10] sm:$0xff]
        %v3864 = vld [vmem:[%s3860 + $0x18] sm:$0xff]
        %v3865 = vld [vmem:[%s3860 + $0x20] sm:$0xff]
        %v3866 = vld [vmem:[%s3860 + $0x28] sm:$0xff]
        %v3867 = vld [vmem:[%s3860 + $0x30] sm:$0xff]
        %v3868 = vld [vmem:[%s3860 + $0x38] sm:$0xff]
        %v3869 = vld [vmem:[%s3860 + $0x40] sm:$0xff]
        %v3870 = vld [vmem:[%s3860 + $0x48] sm:$0xff]
        %v3871 = vld [vmem:[%s3860 + $0x50] sm:$0xff]
        %v3872 = vld [vmem:[%s3860 + $0x58] sm:$0xff]
        %v3873 = vld [vmem:[%s3860 + $0x60] sm:$0xff]
        %v3874 = vld [vmem:[%s3860 + $0x68] sm:$0xff]
        %v3875 = vld [vmem:[%s3860 + $0x70] sm:$0xff]
        %v3876 = vld [vmem:[%s3860 + $0x78] sm:$0xff]
        %s3877 = scalar_lea.vmem [#allocation8], 4
        %v3878 = vld [vmem:[%s3877] sm:$0x1]
        %v3880 = vlaneseq
        %v3881 = vshrl.u32 %v3880, 7
        %v3882 = vsub.s32 0, %v3881
        %v3883 = vrot.slane %v3878, %v3882
        %3885 = vmatprep.subr.mxu0 0.0
        %3886 = vmatpush1.msra.mxu0 %v3876
        %3887 = vmatprep.subr.mxu0 0.0
        %3888 = vmatpush1.msra.mxu0 %v3875
        %3889 = vmatprep.subr.mxu0 0.0
        %3890 = vmatpush1.msra.mxu0 %v3874
        %3891 = vmatprep.subr.mxu0 0.0
        %3892 = vmatpush1.msra.mxu0 %v3873
        %3893 = vmatprep.subr.mxu0 0.0
        %3894 = vmatpush1.msra.mxu0 %v3872
        %3895 = vmatprep.subr.mxu0 0.0
        %3896 = vmatpush1.msra.mxu0 %v3871
        %3897 = vmatprep.subr.mxu0 0.0
        %3898 = vmatpush1.msra.mxu0 %v3870
        %3899 = vmatprep.subr.mxu0 0.0
        %3900 = vmatpush1.msra.mxu0 %v3869
        %3901 = vmatprep.subr.mxu0 0.0
        %3902 = vmatpush1.msra.mxu0 %v3868
        %3903 = vmatprep.subr.mxu0 0.0
        %3904 = vmatpush1.msra.mxu0 %v3867
        %3905 = vmatprep.subr.mxu0 0.0
        %3906 = vmatpush1.msra.mxu0 %v3866
        %3907 = vmatprep.subr.mxu0 0.0
        %3908 = vmatpush1.msra.mxu0 %v3865
        %3909 = vmatprep.subr.mxu0 0.0
        %3910 = vmatpush1.msra.mxu0 %v3864
        %3911 = vmatprep.subr.mxu0 0.0
        %3912 = vmatpush1.msra.mxu0 %v3863
        %3913 = vmatprep.subr.mxu0 0.0
        %3914 = vmatpush1.msra.mxu0 %v3862
        %3915 = vmatprep.subr.mxu0 0.0
        %3916 = vmatpush1.msra.mxu0 %v3861
        %3917 = vmatprep.subr.mxu0 0.0
        %3918 = vmatpush2.msra.mxu0 0.0
        %3919 = vmatprep.subr.mxu0 0.0
        %3920 = vmatpush2.msra.mxu0 0.0
        %3921 = vmatprep.subr.mxu0 0.0
        %3922 = vmatpush2.msra.mxu0 0.0
        %3923 = vmatprep.subr.mxu0 0.0
        %3924 = vmatpush2.msra.mxu0 0.0
        %3925 = vmatprep.subr.mxu0 0.0
        %3926 = vmatpush2.msra.mxu0 0.0
        %3927 = vmatprep.subr.mxu0 0.0
        %3928 = vmatpush2.msra.mxu0 0.0
        %3929 = vmatprep.subr.mxu0 0.0
        %3930 = vmatpush2.msra.mxu0 0.0
        %3931 = vmatprep.subr.mxu0 0.0
        %3932 = vmatpush2.msra.mxu0 0.0
        %3933 = vmatprep.subr.mxu0 0.0
        %3934 = vmatpush2.msra.mxu0 0.0
        %3935 = vmatprep.subr.mxu0 0.0
        %3936 = vmatpush2.msra.mxu0 0.0
        %3937 = vmatprep.subr.mxu0 0.0
        %3938 = vmatpush2.msra.mxu0 0.0
        %3939 = vmatprep.subr.mxu0 0.0
        %3940 = vmatpush2.msra.mxu0 0.0
        %3941 = vmatprep.subr.mxu0 0.0
        %3942 = vmatpush2.msra.mxu0 0.0
        %3943 = vmatprep.subr.mxu0 0.0
        %3944 = vmatpush2.msra.mxu0 0.0
        %3945 = vmatprep.subr.mxu0 0.0
        %3946 = vmatpush2.msra.mxu0 0.0
        %3947 = vmatprep.subr.mxu0 0.0
        %3948 = vmatpush2.msra.mxu0 0.0
        %3949 = vmatprep.mubr.f32.mxu0 0.0
        %3950 = vmatmul.mubr.f32.gmra.mxu0 %v414
        %v3951 = vpop.f32.mrf.mxu0
        %v3952 = vadd.f32 %v3883, %v3951
        %v3953 = vpop.f32.mrf.mxu0
        %3954 = vmatprep.mubr.f32.mxu0 0.0
        %3955 = vmatmul.mubr.f32.gmra.mxu0 %v415
        %v3956 = vpop.f32.mrf.mxu0
        %v3957 = vadd.f32 %v3883, %v3956
        %v3958 = vpop.f32.mrf.mxu0
        %3959 = vmatprep.mubr.f32.mxu0 0.0
        %3960 = vmatmul.mubr.f32.gmra.mxu0 %v416
        %v3961 = vpop.f32.mrf.mxu0
        %v3962 = vadd.f32 %v3883, %v3961
        %v3963 = vpop.f32.mrf.mxu0
        %3964 = vmatprep.mubr.f32.mxu0 0.0
        %3965 = vmatmul.mubr.f32.gmra.mxu0 %v417
        %v3966 = vpop.f32.mrf.mxu0
        %v3967 = vadd.f32 %v3883, %v3966
        %v3968 = vpop.f32.mrf.mxu0
        %3969 = vmatprep.mubr.f32.mxu0 0.0
        %3970 = vmatmul.mubr.f32.gmra.mxu0 %v418
        %v3971 = vpop.f32.mrf.mxu0
        %v3972 = vadd.f32 %v3883, %v3971
        %v3973 = vpop.f32.mrf.mxu0
        %3974 = vmatprep.mubr.f32.mxu0 0.0
        %3975 = vmatmul.mubr.f32.gmra.mxu0 %v419
        %v3976 = vpop.f32.mrf.mxu0
        %v3977 = vadd.f32 %v3883, %v3976
        %v3978 = vpop.f32.mrf.mxu0
        %3979 = vmatprep.mubr.f32.mxu0 0.0
        %3980 = vmatmul.mubr.f32.gmra.mxu0 %v420
        %v3981 = vpop.f32.mrf.mxu0
        %v3982 = vadd.f32 %v3883, %v3981
        %v3983 = vpop.f32.mrf.mxu0
        %3984 = vmatprep.mubr.f32.mxu0 0.0
        %3985 = vmatmul.mubr.f32.gmra.mxu0 %v421
        %v3986 = vpop.f32.mrf.mxu0
        %v3987 = vadd.f32 %v3883, %v3986
        %v3988 = vpop.f32.mrf.mxu0
        %3989 = vmatprep.mubr.f32.mxu0 0.0
        %3990 = vmatmul.mubr.f32.gmra.mxu0 %v422
        %v3991 = vpop.f32.mrf.mxu0
        %v3992 = vadd.f32 %v3883, %v3991
        %v3993 = vpop.f32.mrf.mxu0
        %3994 = vmatprep.mubr.f32.mxu0 0.0
        %3995 = vmatmul.mubr.f32.gmra.mxu0 %v423
        %v3996 = vpop.f32.mrf.mxu0
        %v3997 = vadd.f32 %v3883, %v3996
        %v3998 = vpop.f32.mrf.mxu0
        %3999 = vmatprep.mubr.f32.mxu0 0.0
        %4000 = vmatmul.mubr.f32.gmra.mxu0 %v424
        %v4001 = vpop.f32.mrf.mxu0
        %v4002 = vadd.f32 %v3883, %v4001
        %v4003 = vpop.f32.mrf.mxu0
        %4004 = vmatprep.mubr.f32.mxu0 0.0
        %4005 = vmatmul.mubr.f32.gmra.mxu0 %v425
        %v4006 = vpop.f32.mrf.mxu0
        %v4007 = vadd.f32 %v3883, %v4006
        %v4008 = vpop.f32.mrf.mxu0
        %4009 = vmatprep.mubr.f32.mxu0 0.0
        %4010 = vmatmul.mubr.f32.gmra.mxu0 %v426
        %v4011 = vpop.f32.mrf.mxu0
        %v4012 = vadd.f32 %v3883, %v4011
        %v4013 = vpop.f32.mrf.mxu0
        %4014 = vmatprep.mubr.f32.mxu0 0.0
        %4015 = vmatmul.mubr.f32.gmra.mxu0 %v427
        %v4016 = vpop.f32.mrf.mxu0
        %v4017 = vadd.f32 %v3883, %v4016
        %v4018 = vpop.f32.mrf.mxu0
        %4019 = vmatprep.mubr.f32.mxu0 0.0
        %4020 = vmatmul.mubr.f32.gmra.mxu0 %v428
        %v4021 = vpop.f32.mrf.mxu0
        %v4022 = vadd.f32 %v3883, %v4021
        %v4023 = vpop.f32.mrf.mxu0
        %4024 = vmatprep.mubr.f32.mxu0 0.0
        %4025 = vmatmul.mubr.f32.gmra.mxu0 %v429
        %v4026 = vpop.f32.mrf.mxu0
        %v4027 = vadd.f32 %v3883, %v4026
        %v4028 = vpop.f32.mrf.mxu0
        %4029 = vdwg.mxu0
        %v4030 = vmax.f32 %v3952, 0.0
        %v4031 = vmax.f32 %v3957, 0.0
        %v4032 = vmax.f32 %v3962, 0.0
        %v4033 = vmax.f32 %v3967, 0.0
        %v4034 = vmax.f32 %v3972, 0.0
        %v4035 = vmax.f32 %v3977, 0.0
        %v4036 = vmax.f32 %v3982, 0.0
        %v4037 = vmax.f32 %v3987, 0.0
        %v4038 = vmax.f32 %v3992, 0.0
        %v4039 = vmax.f32 %v3997, 0.0
        %v4040 = vmax.f32 %v4002, 0.0
        %v4041 = vmax.f32 %v4007, 0.0
        %v4042 = vmax.f32 %v4012, 0.0
        %v4043 = vmax.f32 %v4017, 0.0
        %v4044 = vmax.f32 %v4022, 0.0
        %v4045 = vmax.f32 %v4027, 0.0
        %4046 = vst [vmem:[#allocation2 + $0x4] sm:$0xff] %v4030
        %4047 = vst [vmem:[#allocation2 + $0xc] sm:$0xff] %v4031
        %4048 = vst [vmem:[#allocation2 + $0x1c] sm:$0xff] %v4032
        %4049 = vst [vmem:[#allocation2 + $0x24] sm:$0xff] %v4033
        %4050 = vst [vmem:[#allocation2 + $0x34] sm:$0xff] %v4034
        %4051 = vst [vmem:[#allocation2 + $0x3c] sm:$0xff] %v4035
        %4052 = vst [vmem:[#allocation2 + $0x4c] sm:$0xff] %v4036
        %4053 = vst [vmem:[#allocation2 + $0x54] sm:$0xff] %v4037
        %4054 = vst [vmem:[#allocation2 + $0x64] sm:$0xff] %v4038
        %4055 = vst [vmem:[#allocation2 + $0x6c] sm:$0xff] %v4039
        %4056 = vst [vmem:[#allocation2 + $0x7c] sm:$0xff] %v4040
        %4057 = vst [vmem:[#allocation2 + $0x84] sm:$0xff] %v4041
        %4058 = vst [vmem:[#allocation2 + $0x94] sm:$0xff] %v4042
        %4059 = vst [vmem:[#allocation2 + $0x9c] sm:$0xff] %v4043
        %4060 = vst [vmem:[#allocation2 + $0xac] sm:$0xff] %v4044
        %4061 = vst [vmem:[#allocation2 + $0xb4] sm:$0xff] %v4045
        %v4062 = vld [vmem:[#allocation2 + $0x3] sm:$0xff]
        %v4063 = vld [vmem:[#allocation2 + $0xb] sm:$0xff]
        %v4064 = vld [vmem:[#allocation2 + $0x1b] sm:$0xff]
        %v4065 = vld [vmem:[#allocation2 + $0x23] sm:$0xff]
        %v4066 = vld [vmem:[#allocation2 + $0x33] sm:$0xff]
        %v4067 = vld [vmem:[#allocation2 + $0x3b] sm:$0xff]
        %v4068 = vld [vmem:[#allocation2 + $0x4b] sm:$0xff]
        %v4069 = vld [vmem:[#allocation2 + $0x53] sm:$0xff]
        %v4070 = vld [vmem:[#allocation2 + $0x63] sm:$0xff]
        %v4071 = vld [vmem:[#allocation2 + $0x6b] sm:$0xff]
        %v4072 = vld [vmem:[#allocation2 + $0x7b] sm:$0xff]
        %v4073 = vld [vmem:[#allocation2 + $0x83] sm:$0xff]
        %v4074 = vld [vmem:[#allocation2 + $0x93] sm:$0xff]
        %v4075 = vld [vmem:[#allocation2 + $0x9b] sm:$0xff]
        %v4076 = vld [vmem:[#allocation2 + $0xab] sm:$0xff]
        %v4077 = vld [vmem:[#allocation2 + $0xb3] sm:$0xff]
        %v4078 = vld [vmem:[#allocation2 + $0x4] sm:$0xff]
        %v4079 = vld [vmem:[#allocation2 + $0xc] sm:$0xff]
        %v4080 = vld [vmem:[#allocation2 + $0x1c] sm:$0xff]
        %v4081 = vld [vmem:[#allocation2 + $0x24] sm:$0xff]
        %v4082 = vld [vmem:[#allocation2 + $0x34] sm:$0xff]
        %v4083 = vld [vmem:[#allocation2 + $0x3c] sm:$0xff]
        %v4084 = vld [vmem:[#allocation2 + $0x4c] sm:$0xff]
        %v4085 = vld [vmem:[#allocation2 + $0x54] sm:$0xff]
        %v4086 = vld [vmem:[#allocation2 + $0x64] sm:$0xff]
        %v4087 = vld [vmem:[#allocation2 + $0x6c] sm:$0xff]
        %v4088 = vld [vmem:[#allocation2 + $0x7c] sm:$0xff]
        %v4089 = vld [vmem:[#allocation2 + $0x84] sm:$0xff]
        %v4090 = vld [vmem:[#allocation2 + $0x94] sm:$0xff]
        %v4091 = vld [vmem:[#allocation2 + $0x9c] sm:$0xff]
        %v4092 = vld [vmem:[#allocation2 + $0xac] sm:$0xff]
        %v4093 = vld [vmem:[#allocation2 + $0xb4] sm:$0xff]
        %v4094 = vmax.f32 %v4062, %v4078
        %v4095 = vmax.f32 %v4063, %v4079
        %v4096 = vmax.f32 %v4064, %v4080
        %v4097 = vmax.f32 %v4065, %v4081
        %v4098 = vmax.f32 %v4066, %v4082
        %v4099 = vmax.f32 %v4067, %v4083
        %v4100 = vmax.f32 %v4068, %v4084
        %v4101 = vmax.f32 %v4069, %v4085
        %v4102 = vmax.f32 %v4070, %v4086
        %v4103 = vmax.f32 %v4071, %v4087
        %v4104 = vmax.f32 %v4072, %v4088
        %v4105 = vmax.f32 %v4073, %v4089
        %v4106 = vmax.f32 %v4074, %v4090
        %v4107 = vmax.f32 %v4075, %v4091
        %v4108 = vmax.f32 %v4076, %v4092
        %v4109 = vmax.f32 %v4077, %v4093
        %v4110 = vld [vmem:[#allocation2 + $0x5] sm:$0xff]
        %v4111 = vld [vmem:[#allocation2 + $0xd] sm:$0xff]
        %v4112 = vld [vmem:[#allocation2 + $0x1d] sm:$0xff]
        %v4113 = vld [vmem:[#allocation2 + $0x25] sm:$0xff]
        %v4114 = vld [vmem:[#allocation2 + $0x35] sm:$0xff]
        %v4115 = vld [vmem:[#allocation2 + $0x3d] sm:$0xff]
        %v4116 = vld [vmem:[#allocation2 + $0x4d] sm:$0xff]
        %v4117 = vld [vmem:[#allocation2 + $0x55] sm:$0xff]
        %v4118 = vld [vmem:[#allocation2 + $0x65] sm:$0xff]
        %v4119 = vld [vmem:[#allocation2 + $0x6d] sm:$0xff]
        %v4120 = vld [vmem:[#allocation2 + $0x7d] sm:$0xff]
        %v4121 = vld [vmem:[#allocation2 + $0x85] sm:$0xff]
        %v4122 = vld [vmem:[#allocation2 + $0x95] sm:$0xff]
        %v4123 = vld [vmem:[#allocation2 + $0x9d] sm:$0xff]
        %v4124 = vld [vmem:[#allocation2 + $0xad] sm:$0xff]
        %v4125 = vld [vmem:[#allocation2 + $0xb5] sm:$0xff]
        %v4126 = vmax.f32 %v4094, %v4110
        %v4127 = vmax.f32 %v4095, %v4111
        %v4128 = vmax.f32 %v4096, %v4112
        %v4129 = vmax.f32 %v4097, %v4113
        %v4130 = vmax.f32 %v4098, %v4114
        %v4131 = vmax.f32 %v4099, %v4115
        %v4132 = vmax.f32 %v4100, %v4116
        %v4133 = vmax.f32 %v4101, %v4117
        %v4134 = vmax.f32 %v4102, %v4118
        %v4135 = vmax.f32 %v4103, %v4119
        %v4136 = vmax.f32 %v4104, %v4120
        %v4137 = vmax.f32 %v4105, %v4121
        %v4138 = vmax.f32 %v4106, %v4122
        %v4139 = vmax.f32 %v4107, %v4123
        %v4140 = vmax.f32 %v4108, %v4124
        %v4141 = vmax.f32 %v4109, %v4125
        %v4142 = vld [vmem:[#allocation11] sm:$0xff]
        %v4143 = vld [vmem:[#allocation11 + $0x8] sm:$0xff]
        %v4144 = vld [vmem:[#allocation11 + $0x10] sm:$0xff]
        %v4145 = vld [vmem:[#allocation11 + $0x18] sm:$0xff]
        %v4146 = vld [vmem:[#allocation11 + $0x20] sm:$0xff]
        %v4147 = vld [vmem:[#allocation11 + $0x28] sm:$0xff]
        %v4148 = vld [vmem:[#allocation11 + $0x30] sm:$0xff]
        %v4149 = vld [vmem:[#allocation11 + $0x38] sm:$0xff]
        %v4150 = vld [vmem:[#allocation11 + $0x40] sm:$0xff]
        %v4151 = vld [vmem:[#allocation11 + $0x48] sm:$0xff]
        %v4152 = vld [vmem:[#allocation11 + $0x50] sm:$0xff]
        %v4153 = vld [vmem:[#allocation11 + $0x58] sm:$0xff]
        %v4154 = vld [vmem:[#allocation11 + $0x60] sm:$0xff]
        %v4155 = vld [vmem:[#allocation11 + $0x68] sm:$0xff]
        %v4156 = vld [vmem:[#allocation11 + $0x70] sm:$0xff]
        %v4157 = vld [vmem:[#allocation11 + $0x78] sm:$0xff]
        %4158 = vmatprep.subr.mxu0 0.0
        %4159 = vmatpush1.msra.mxu0 %v4157
        %4160 = vmatprep.subr.mxu0 0.0
        %4161 = vmatpush1.msra.mxu0 %v4156
        %4162 = vmatprep.subr.mxu0 0.0
        %4163 = vmatpush1.msra.mxu0 %v4155
        %4164 = vmatprep.subr.mxu0 0.0
        %4165 = vmatpush1.msra.mxu0 %v4154
        %4166 = vmatprep.subr.mxu0 0.0
        %4167 = vmatpush1.msra.mxu0 %v4153
        %4168 = vmatprep.subr.mxu0 0.0
        %4169 = vmatpush1.msra.mxu0 %v4152
        %4170 = vmatprep.subr.mxu0 0.0
        %4171 = vmatpush1.msra.mxu0 %v4151
        %4172 = vmatprep.subr.mxu0 0.0
        %4173 = vmatpush1.msra.mxu0 %v4150
        %4174 = vmatprep.subr.mxu0 0.0
        %4175 = vmatpush1.msra.mxu0 %v4149
        %4176 = vmatprep.subr.mxu0 0.0
        %4177 = vmatpush1.msra.mxu0 %v4148
        %4178 = vmatprep.subr.mxu0 0.0
        %4179 = vmatpush1.msra.mxu0 %v4147
        %4180 = vmatprep.subr.mxu0 0.0
        %4181 = vmatpush1.msra.mxu0 %v4146
        %4182 = vmatprep.subr.mxu0 0.0
        %4183 = vmatpush1.msra.mxu0 %v4145
        %4184 = vmatprep.subr.mxu0 0.0
        %4185 = vmatpush1.msra.mxu0 %v4144
        %4186 = vmatprep.subr.mxu0 0.0
        %4187 = vmatpush1.msra.mxu0 %v4143
        %4188 = vmatprep.subr.mxu0 0.0
        %4189 = vmatpush1.msra.mxu0 %v4142
        %4190 = vmatprep.subr.mxu0 0.0
        %4191 = vmatpush2.msra.mxu0 0.0
        %4192 = vmatprep.subr.mxu0 0.0
        %4193 = vmatpush2.msra.mxu0 0.0
        %4194 = vmatprep.subr.mxu0 0.0
        %4195 = vmatpush2.msra.mxu0 0.0
        %4196 = vmatprep.subr.mxu0 0.0
        %4197 = vmatpush2.msra.mxu0 0.0
        %4198 = vmatprep.subr.mxu0 0.0
        %4199 = vmatpush2.msra.mxu0 0.0
        %4200 = vmatprep.subr.mxu0 0.0
        %4201 = vmatpush2.msra.mxu0 0.0
        %4202 = vmatprep.subr.mxu0 0.0
        %4203 = vmatpush2.msra.mxu0 0.0
        %4204 = vmatprep.subr.mxu0 0.0
        %4205 = vmatpush2.msra.mxu0 0.0
        %4206 = vmatprep.subr.mxu0 0.0
        %4207 = vmatpush2.msra.mxu0 0.0
        %4208 = vmatprep.subr.mxu0 0.0
        %4209 = vmatpush2.msra.mxu0 0.0
        %4210 = vmatprep.subr.mxu0 0.0
        %4211 = vmatpush2.msra.mxu0 0.0
        %4212 = vmatprep.subr.mxu0 0.0
        %4213 = vmatpush2.msra.mxu0 0.0
        %4214 = vmatprep.subr.mxu0 0.0
        %4215 = vmatpush2.msra.mxu0 0.0
        %4216 = vmatprep.subr.mxu0 0.0
        %4217 = vmatpush2.msra.mxu0 0.0
        %4218 = vmatprep.subr.mxu0 0.0
        %4219 = vmatpush2.msra.mxu0 0.0
        %4220 = vmatprep.subr.mxu0 0.0
        %4221 = vmatpush2.msra.mxu0 0.0
        %4222 = vmatprep.mubr.f32.mxu0 0.0
        %4223 = vmatmul.mubr.f32.gmra.mxu0 %v4126
        %v4224 = vpop.f32.mrf.mxu0
        %v4225 = vadd.f32 0.0, %v4224
        %v4226 = vpop.f32.mrf.mxu0
        %4227 = vmatprep.mubr.f32.mxu0 0.0
        %4228 = vmatmul.mubr.f32.gmra.mxu0 %v4127
        %v4229 = vpop.f32.mrf.mxu0
        %v4230 = vadd.f32 0.0, %v4229
        %v4231 = vpop.f32.mrf.mxu0
        %4232 = vmatprep.mubr.f32.mxu0 0.0
        %4233 = vmatmul.mubr.f32.gmra.mxu0 %v4128
        %v4234 = vpop.f32.mrf.mxu0
        %v4235 = vadd.f32 0.0, %v4234
        %v4236 = vpop.f32.mrf.mxu0
        %4237 = vmatprep.mubr.f32.mxu0 0.0
        %4238 = vmatmul.mubr.f32.gmra.mxu0 %v4129
        %v4239 = vpop.f32.mrf.mxu0
        %v4240 = vadd.f32 0.0, %v4239
        %v4241 = vpop.f32.mrf.mxu0
        %4242 = vmatprep.mubr.f32.mxu0 0.0
        %4243 = vmatmul.mubr.f32.gmra.mxu0 %v4130
        %v4244 = vpop.f32.mrf.mxu0
        %v4245 = vadd.f32 0.0, %v4244
        %v4246 = vpop.f32.mrf.mxu0
        %4247 = vmatprep.mubr.f32.mxu0 0.0
        %4248 = vmatmul.mubr.f32.gmra.mxu0 %v4131
        %v4249 = vpop.f32.mrf.mxu0
        %v4250 = vadd.f32 0.0, %v4249
        %v4251 = vpop.f32.mrf.mxu0
        %4252 = vmatprep.mubr.f32.mxu0 0.0
        %4253 = vmatmul.mubr.f32.gmra.mxu0 %v4132
        %v4254 = vpop.f32.mrf.mxu0
        %v4255 = vadd.f32 0.0, %v4254
        %v4256 = vpop.f32.mrf.mxu0
        %4257 = vmatprep.mubr.f32.mxu0 0.0
        %4258 = vmatmul.mubr.f32.gmra.mxu0 %v4133
        %v4259 = vpop.f32.mrf.mxu0
        %v4260 = vadd.f32 0.0, %v4259
        %v4261 = vpop.f32.mrf.mxu0
        %4262 = vmatprep.mubr.f32.mxu0 0.0
        %4263 = vmatmul.mubr.f32.gmra.mxu0 %v4134
        %v4264 = vpop.f32.mrf.mxu0
        %v4265 = vadd.f32 0.0, %v4264
        %v4266 = vpop.f32.mrf.mxu0
        %4267 = vmatprep.mubr.f32.mxu0 0.0
        %4268 = vmatmul.mubr.f32.gmra.mxu0 %v4135
        %v4269 = vpop.f32.mrf.mxu0
        %v4270 = vadd.f32 0.0, %v4269
        %v4271 = vpop.f32.mrf.mxu0
        %4272 = vmatprep.mubr.f32.mxu0 0.0
        %4273 = vmatmul.mubr.f32.gmra.mxu0 %v4136
        %v4274 = vpop.f32.mrf.mxu0
        %v4275 = vadd.f32 0.0, %v4274
        %v4276 = vpop.f32.mrf.mxu0
        %4277 = vmatprep.mubr.f32.mxu0 0.0
        %4278 = vmatmul.mubr.f32.gmra.mxu0 %v4137
        %v4279 = vpop.f32.mrf.mxu0
        %v4280 = vadd.f32 0.0, %v4279
        %v4281 = vpop.f32.mrf.mxu0
        %4282 = vmatprep.mubr.f32.mxu0 0.0
        %4283 = vmatmul.mubr.f32.gmra.mxu0 %v4138
        %v4284 = vpop.f32.mrf.mxu0
        %v4285 = vadd.f32 0.0, %v4284
        %v4286 = vpop.f32.mrf.mxu0
        %4287 = vmatprep.mubr.f32.mxu0 0.0
        %4288 = vmatmul.mubr.f32.gmra.mxu0 %v4139
        %v4289 = vpop.f32.mrf.mxu0
        %v4290 = vadd.f32 0.0, %v4289
        %v4291 = vpop.f32.mrf.mxu0
        %4292 = vmatprep.mubr.f32.mxu0 0.0
        %4293 = vmatmul.mubr.f32.gmra.mxu0 %v4140
        %v4294 = vpop.f32.mrf.mxu0
        %v4295 = vadd.f32 0.0, %v4294
        %v4296 = vpop.f32.mrf.mxu0
        %4297 = vmatprep.mubr.f32.mxu0 0.0
        %4298 = vmatmul.mubr.f32.gmra.mxu0 %v4141
        %v4299 = vpop.f32.mrf.mxu0
        %v4300 = vadd.f32 0.0, %v4299
        %v4301 = vpop.f32.mrf.mxu0
        %4302 = vdwg.mxu0
        %v4303 = vadd.f32 %v3844, %v4225
        %v4304 = vadd.f32 %v3845, %v4230
        %v4305 = vadd.f32 %v3846, %v4235
        %v4306 = vadd.f32 %v3847, %v4240
        %v4307 = vadd.f32 %v3848, %v4245
        %v4308 = vadd.f32 %v3849, %v4250
        %v4309 = vadd.f32 %v3850, %v4255
        %v4310 = vadd.f32 %v3851, %v4260
        %v4311 = vadd.f32 %v3852, %v4265
        %v4312 = vadd.f32 %v3853, %v4270
        %v4313 = vadd.f32 %v3854, %v4275
        %v4314 = vadd.f32 %v3855, %v4280
        %v4315 = vadd.f32 %v3856, %v4285
        %v4316 = vadd.f32 %v3857, %v4290
        %v4317 = vadd.f32 %v3858, %v4295
        %v4318 = vadd.f32 %v3859, %v4300
        %4319 = vst [vmem:[%s411] sm:$0xff] %v4303
        %4320 = vst [vmem:[%s411 + $0x8] sm:$0xff] %v4304
        %4321 = vst [vmem:[%s411 + $0x10] sm:$0xff] %v4305
        %4322 = vst [vmem:[%s411 + $0x18] sm:$0xff] %v4306
        %4323 = vst [vmem:[%s411 + $0x20] sm:$0xff] %v4307
        %4324 = vst [vmem:[%s411 + $0x28] sm:$0xff] %v4308
        %4325 = vst [vmem:[%s411 + $0x30] sm:$0xff] %v4309
        %4326 = vst [vmem:[%s411 + $0x38] sm:$0xff] %v4310
        %4327 = vst [vmem:[%s411 + $0x40] sm:$0xff] %v4311
        %4328 = vst [vmem:[%s411 + $0x48] sm:$0xff] %v4312
        %4329 = vst [vmem:[%s411 + $0x50] sm:$0xff] %v4313
        %4330 = vst [vmem:[%s411 + $0x58] sm:$0xff] %v4314
        %4331 = vst [vmem:[%s411 + $0x60] sm:$0xff] %v4315
        %4332 = vst [vmem:[%s411 + $0x68] sm:$0xff] %v4316
        %4333 = vst [vmem:[%s411 + $0x70] sm:$0xff] %v4317
        %4334 = vst [vmem:[%s411 + $0x78] sm:$0xff] %v4318
        %s4335 = sand.u32 %s209, 1
        %s4336 = scalar_lea.sflag [#allocation5], %s4335
        %s4337 = sand.u32 %s209, 1
        %s4338 = smul.addr %s4337, 128
        %s4339 = scalar_lea.vmem [#allocation15], %s4338
        // Predicated region
        $region81: #{tpu_custom_call.1} parent=51 // pred_check
          %p4340 = pneg %p219
        $region82: #{tpu_custom_call.1} parent=51 // pred_check_branch
          %4342 = sbr.rel (%p4340) target = $region84
        $region83: #{tpu_custom_call.1} parent=51 // pred_region
          %s4343 = smul.u32 8, %s28
          %s4345 = ssub.s32 2048, 2048
          %4346 = vsyncadd %s4336, %s4345
          %s4347 = smul.addr %s4343, 2
          %s4348 = smul.addr %s4347, 128
          %s4349 = scalar_lea.hbm %s8, %s4348
          %s4350 = sshll.u32 %s4339, 4
          %s4351 = int_to_ptr.vmem [resolvable:$true] %s4350
          %4356 = dma.vmem_to_hbm [thread:$0]  %s4351, 2048, %s4349, %s4336, 128, 128, 8
        $region84: #{tpu_custom_call.1} parent=51 // pred_fallthru
          _
      $region52: #{tpu_custom_call.1} parent=5 // pred_fallthru
        _
      %p4357 = scmp.le.s32.totalorder 2, %s23
      // Predicated region
      $region85: #{tpu_custom_call.1} parent=5 // pred_check
        %p4358 = pneg %p4357
      $region86: #{tpu_custom_call.1} parent=5 // pred_check_branch
        %4360 = sbr.rel (%p4358) target = $region88
      $region87: #{tpu_custom_call.1} parent=5 // pred_region
        %s4361 = ssub.s32 %s23, 2
        // Predicated region
        $region89: #{tpu_custom_call.1} parent=87 // pred_check
          %p4362 = pneg %p225
        $region90: #{tpu_custom_call.1} parent=87 // pred_check_branch
          %4364 = sbr.rel (%p4362) target = $region92
        $region91: #{tpu_custom_call.1} parent=87 // pred_region
          %s4365 = sand.u32 %s210, 1
          %s4366 = scalar_lea.sflag [#allocation5], %s4365
          %s4367 = sand.u32 %s210, 1
          %s4368 = smul.addr %s4367, 128
          %s4369 = scalar_lea.vmem [#allocation15], %s4368
          %4370 = dma.done %s4366, 2048
        $region92: #{tpu_custom_call.1} parent=87 // pred_fallthru
          _
      $region88: #{tpu_custom_call.1} parent=5 // pred_fallthru
        _
    $region6: #{tpu_custom_call.1} parent=1 // loop_footer
      %s27 = sadd.s32 1, %s23
    $region7: #{tpu_custom_call.1} parent=1 // loop_footer_branch
      %22 = sbr.rel target = $region3
    $region8: #{tpu_custom_call.1} parent=1 // loop_exit
      _
    %4371 = vsyncpa [#allocation4], 1
    %s4372 = scalar_lea.sflag [#allocation4], 1
    %4373 = vsyncpa %s4372, 1
    %4374 = vsyncpa [#allocation7], 1
    %4375 = vsyncpa [#allocation10], 1
    %4376 = vsyncpa [#allocation13], 1
    %4377 = vsyncpa [#allocation5], 1
    %s4378 = scalar_lea.sflag [#allocation5], 1
    %4379 = vsyncpa %s4378, 1

</llo_original>
